<compile_context>
chip_gen: v5e
topology: v5e:2x2
jax: 0.10.0
libtpu: 0.0.40
codegen_flags: <defaults>
</compile_context>

<pallas_src>
import functools
import math

import jax
import jax.numpy as jnp
from jax import lax
from jax.experimental import pallas as pl
from jax.experimental.pallas import tpu as pltpu

TEMPERATURE = 100.0
UNROLL = 20


def _vmem_spec():
    return pl.BlockSpec(memory_space=pltpu.MemorySpace.VMEM)


# ------------------------------ Fused Sinkhorn + GRU kernel ---------------------------

def fused_gru_kernel(pm_ref, lt_ref, wir_ref, wiz_ref, win_ref, whr_ref, whz_ref, whn_ref,
                     x_ref, out_ref, *, T, B):
    H = pm_ref.shape[0]

    # ---- Sinkhorn normalization (fixed trip count -> fully unrolled) ----
    m = pm_ref[...]
    mat = jnp.exp(TEMPERATURE * (m - jnp.max(m)))
    for _ in range(UNROLL):
        mat = mat * pl.reciprocal(jnp.sum(mat, axis=1, keepdims=True), approx=False)
        mat = mat * pl.reciprocal(jnp.sum(mat, axis=0, keepdims=True), approx=False)

    # output_lower = (P @ L @ P^T)^T = P @ (P @ L)^T; contract dim 1 of both operands so no
    # explicit transpose (XLU vxpose) is materialized.
    q = jnp.dot(mat, lt_ref[...], preferred_element_type=jnp.float32)       # P @ L
    lower = lax.dot_general(mat, q, (((1,), (1,)), ((), ())),
                            preferred_element_type=jnp.float32)             # (H, H)

    # ---- Masked + gate-fused weights (loop invariant; tiny at H=32, lives in vregs) ----
    w_x = jnp.concatenate([wir_ref[...] * lower,
                           wiz_ref[...] * lower,
                           win_ref[...] * lower], axis=1)                    # (H, 3H)
    w_h = jnp.concatenate([whr_ref[...] * lower,
                           whz_ref[...] * lower], axis=1)                    # (H, 2H)
    w_hn = whn_ref[...] * lower                                              # (H, H)

    # ---- x-side gate pre-activations for ALL timesteps (independent of the recurrence) ----
    xw_all = jnp.dot(x_ref[...], w_x, preferred_element_type=jnp.float32)    # (T*B, 3H)

    # ---- Sequential recurrence: h carried as a register value, fully unrolled ----
    h = jnp.zeros((B, H), jnp.float32)
    for t in range(T):
        xw = xw_all[t * B:(t + 1) * B, :]                                    # static slice
        hw = jnp.dot(h, w_h, preferred_element_type=jnp.float32)             # (B, 2H)
        rz = jax.nn.sigmoid(xw[:, :2 * H] + hw)                              # fused r/z sigmoid
        r_t = rz[:, :H]
        z_t = rz[:, H:]
        n_t = jnp.tanh(xw[:, 2 * H:]
                       + jnp.dot(r_t * h, w_hn, preferred_element_type=jnp.float32))
        h = n_t + z_t * (h - n_t)                                            # == h*z + (1-z)*n
        # Store into the compact (T*B, H) slab; off the serial chain (nothing reads it back).
        out_ref[pl.ds(t * B, B), :] = h


def permuted_gru_forward(input_, params):
    """input_: (T, B, H) float32. Returns (hidden_states (T,B,H), last_states (B,H))."""
    T, B, H = input_.shape
    x2d = input_.reshape(T * B, H)

    kernel = functools.partial(fused_gru_kernel, T=T, B=B)
    hs2d = pl.pallas_call(
        kernel,
        out_shape=jax.ShapeDtypeStruct((T * B, H), jnp.float32),
        in_specs=[_vmem_spec()] * 9,
        out_specs=_vmem_spec(),
        compiler_params=pltpu.CompilerParams(vmem_limit_bytes=32 * 1024 * 1024),
    )(params["perm_matrix"], params["lower_tri"],
      params["W_ir"], params["W_iz"], params["W_in"],
      params["W_hr"], params["W_hz"], params["W_hn"],
      x2d)

    hidden_states = hs2d.reshape(T, B, H)
    # lengths=None -> lengths = [T]*B -> last_states[idx] = hidden_states[T-1, idx, :]
    last_states = hidden_states[T - 1]
    return hidden_states, last_states


# ----------------------------- Parameter init (kaiming_uniform, a=sqrt(5)) ------------

def kaiming_uniform(key, shape):
    # PyTorch kaiming_uniform_(a=sqrt(5)) on (H, H): bound = 1/sqrt(fan_in) = 1/sqrt(H)
    fan_in = shape[1]
    bound = 1.0 / math.sqrt(fan_in)
    return jax.random.uniform(key, shape, jnp.float32, -bound, bound)


def init_params(key, hidden_size):
    keys = jax.random.split(key, 7)
    names = ["perm_matrix", "W_ir", "W_hr", "W_iz", "W_hz", "W_in", "W_hn"]
    params = {n: kaiming_uniform(k, (hidden_size, hidden_size)) for n, k in zip(names, keys)}
    params["lower_tri"] = jnp.tril(jnp.ones((hidden_size, hidden_size), jnp.float32))
    return params


# ------------------------------------- Reference --------------------------------------

def ref_forward(input_, params):
    m = params["perm_matrix"]
    mat = jnp.exp(TEMPERATURE * (m - jnp.max(m)))
    for _ in range(UNROLL):
        mat = mat / jnp.sum(mat, axis=1, keepdims=True)
        mat = mat / jnp.sum(mat, axis=0, keepdims=True)
    lower = (mat @ params["lower_tri"] @ mat.T).T

    T, B, H = input_.shape
    h = jnp.zeros((B, H), jnp.float32)
    outs = []
    Wir = params["W_ir"] * lower
    Whr = params["W_hr"] * lower
    Wiz = params["W_iz"] * lower
    Whz = params["W_hz"] * lower
    Win = params["W_in"] * lower
    Whn = params["W_hn"] * lower
    for t in range(T):
        x = input_[t]
        r = jax.nn.sigmoid(x @ Wir + h @ Whr)
        z = jax.nn.sigmoid(x @ Wiz + h @ Whz)
        n = jnp.tanh(x @ Win + (r * h) @ Whn)
        h = h * z + (1.0 - z) * n
        outs.append(h)
    hs = jnp.stack(outs)
    return hs, hs[T - 1]


# --------------------------------------- Main -----------------------------------------

if __name__ == "__main__":
    T, B, H = 8, 2, 32
    key = jax.random.PRNGKey(0)
    k_params, k_x = jax.random.split(key)
    params = init_params(k_params, H)
    input_ = jax.random.normal(k_x, (T, B, H), jnp.float32)

    hidden_states, last_states = jax.block_until_ready(
        jax.jit(permuted_gru_forward)(input_, params))

    hs_ref, ls_ref = ref_forward(input_, params)
    assert hidden_states.shape == (T, B, H) and last_states.shape == (B, H)
    assert jnp.allclose(hidden_states, hs_ref, rtol=1e-3, atol=1e-3)
    assert jnp.allclose(last_states, ls_ref, rtol=1e-3, atol=1e-3)

    print("KERNEL_OK")
</pallas_src>

<mosaic_0001>
module attributes {stable_mosaic.version = 11 : i64} {
  func.func @fused_gru_kernel(%arg0: memref<32x32xf32, #tpu.memory_space<vmem>>, %arg1: memref<32x32xf32, #tpu.memory_space<vmem>>, %arg2: memref<32x32xf32, #tpu.memory_space<vmem>>, %arg3: memref<32x32xf32, #tpu.memory_space<vmem>>, %arg4: memref<32x32xf32, #tpu.memory_space<vmem>>, %arg5: memref<32x32xf32, #tpu.memory_space<vmem>>, %arg6: memref<32x32xf32, #tpu.memory_space<vmem>>, %arg7: memref<32x32xf32, #tpu.memory_space<vmem>>, %arg8: memref<16x32xf32, #tpu.memory_space<vmem>>, %arg9: memref<16x32xf32, #tpu.memory_space<vmem>>) attributes {dimension_semantics = [], scalar_prefetch = 0 : i64, scratch_operands = 0 : i64, tpu.core_type = #tpu.core_type<tc>} {
    %c0 = arith.constant 0 : index
    %c0_0 = arith.constant 0 : index
    %0 = vector.load %arg0[%c0, %c0_0] : memref<32x32xf32, #tpu.memory_space<vmem>>, vector<32x32xf32>
    %1 = vector.shape_cast %0 : vector<32x32xf32> to vector<1x32x32xf32>
    %cst = arith.constant dense<0xFF800000> : vector<1xf32>
    %2 = vector.multi_reduction <maximumf>, %1, %cst [1, 2] : vector<1x32x32xf32> to vector<1xf32>
    %3 = vector.shape_cast %2 : vector<1xf32> to vector<1x1x1xf32>
    %4 = vector.extract %3[0, 0, 0] : f32 from vector<1x1x1xf32>
    %5 = vector.broadcast %4 : f32 to vector<32x32xf32>
    %6 = arith.subf %0, %5 : vector<32x32xf32>
    %cst_1 = arith.constant 1.000000e+02 : f32
    %7 = vector.broadcast %cst_1 : f32 to vector<32x32xf32>
    %8 = arith.mulf %7, %6 : vector<32x32xf32>
    %9 = math.exp %8 : vector<32x32xf32>
    %cst_2 = arith.constant dense<0.000000e+00> : vector<32xf32>
    %10 = vector.multi_reduction <add>, %9, %cst_2 [1] : vector<32x32xf32> to vector<32xf32>
    %11 = vector.shape_cast %10 : vector<32xf32> to vector<32x1xf32>
    %12 = tpu.reciprocal %11 : vector<32x1xf32> -> vector<32x1xf32>
    %13 = vector.broadcast %12 : vector<32x1xf32> to vector<32x32xf32>
    %14 = arith.mulf %9, %13 : vector<32x32xf32>
    %cst_3 = arith.constant dense<0.000000e+00> : vector<32xf32>
    %15 = vector.multi_reduction <add>, %14, %cst_3 [0] : vector<32x32xf32> to vector<32xf32>
    %16 = vector.shape_cast %15 : vector<32xf32> to vector<1x32xf32>
    %17 = tpu.reciprocal %16 : vector<1x32xf32> -> vector<1x32xf32>
    %18 = vector.broadcast %17 : vector<1x32xf32> to vector<32x32xf32>
    %19 = arith.mulf %14, %18 : vector<32x32xf32>
    %cst_4 = arith.constant dense<0.000000e+00> : vector<32xf32>
    %20 = vector.multi_reduction <add>, %19, %cst_4 [1] : vector<32x32xf32> to vector<32xf32>
    %21 = vector.shape_cast %20 : vector<32xf32> to vector<32x1xf32>
    %22 = tpu.reciprocal %21 : vector<32x1xf32> -> vector<32x1xf32>
    %23 = vector.broadcast %22 : vector<32x1xf32> to vector<32x32xf32>
    %24 = arith.mulf %19, %23 : vector<32x32xf32>
    %cst_5 = arith.constant dense<0.000000e+00> : vector<32xf32>
    %25 = vector.multi_reduction <add>, %24, %cst_5 [0] : vector<32x32xf32> to vector<32xf32>
    %26 = vector.shape_cast %25 : vector<32xf32> to vector<1x32xf32>
    %27 = tpu.reciprocal %26 : vector<1x32xf32> -> vector<1x32xf32>
    %28 = vector.broadcast %27 : vector<1x32xf32> to vector<32x32xf32>
    %29 = arith.mulf %24, %28 : vector<32x32xf32>
    %cst_6 = arith.constant dense<0.000000e+00> : vector<32xf32>
    %30 = vector.multi_reduction <add>, %29, %cst_6 [1] : vector<32x32xf32> to vector<32xf32>
    %31 = vector.shape_cast %30 : vector<32xf32> to vector<32x1xf32>
    %32 = tpu.reciprocal %31 : vector<32x1xf32> -> vector<32x1xf32>
    %33 = vector.broadcast %32 : vector<32x1xf32> to vector<32x32xf32>
    %34 = arith.mulf %29, %33 : vector<32x32xf32>
    %cst_7 = arith.constant dense<0.000000e+00> : vector<32xf32>
    %35 = vector.multi_reduction <add>, %34, %cst_7 [0] : vector<32x32xf32> to vector<32xf32>
    %36 = vector.shape_cast %35 : vector<32xf32> to vector<1x32xf32>
    %37 = tpu.reciprocal %36 : vector<1x32xf32> -> vector<1x32xf32>
    %38 = vector.broadcast %37 : vector<1x32xf32> to vector<32x32xf32>
    %39 = arith.mulf %34, %38 : vector<32x32xf32>
    %cst_8 = arith.constant dense<0.000000e+00> : vector<32xf32>
    %40 = vector.multi_reduction <add>, %39, %cst_8 [1] : vector<32x32xf32> to vector<32xf32>
    %41 = vector.shape_cast %40 : vector<32xf32> to vector<32x1xf32>
    %42 = tpu.reciprocal %41 : vector<32x1xf32> -> vector<32x1xf32>
    %43 = vector.broadcast %42 : vector<32x1xf32> to vector<32x32xf32>
    %44 = arith.mulf %39, %43 : vector<32x32xf32>
    %cst_9 = arith.constant dense<0.000000e+00> : vector<32xf32>
    %45 = vector.multi_reduction <add>, %44, %cst_9 [0] : vector<32x32xf32> to vector<32xf32>
    %46 = vector.shape_cast %45 : vector<32xf32> to vector<1x32xf32>
    %47 = tpu.reciprocal %46 : vector<1x32xf32> -> vector<1x32xf32>
    %48 = vector.broadcast %47 : vector<1x32xf32> to vector<32x32xf32>
    %49 = arith.mulf %44, %48 : vector<32x32xf32>
    %cst_10 = arith.constant dense<0.000000e+00> : vector<32xf32>
    %50 = vector.multi_reduction <add>, %49, %cst_10 [1] : vector<32x32xf32> to vector<32xf32>
    %51 = vector.shape_cast %50 : vector<32xf32> to vector<32x1xf32>
    %52 = tpu.reciprocal %51 : vector<32x1xf32> -> vector<32x1xf32>
    %53 = vector.broadcast %52 : vector<32x1xf32> to vector<32x32xf32>
    %54 = arith.mulf %49, %53 : vector<32x32xf32>
    %cst_11 = arith.constant dense<0.000000e+00> : vector<32xf32>
    %55 = vector.multi_reduction <add>, %54, %cst_11 [0] : vector<32x32xf32> to vector<32xf32>
    %56 = vector.shape_cast %55 : vector<32xf32> to vector<1x32xf32>
    %57 = tpu.reciprocal %56 : vector<1x32xf32> -> vector<1x32xf32>
    %58 = vector.broadcast %57 : vector<1x32xf32> to vector<32x32xf32>
    %59 = arith.mulf %54, %58 : vector<32x32xf32>
    %cst_12 = arith.constant dense<0.000000e+00> : vector<32xf32>
    %60 = vector.multi_reduction <add>, %59, %cst_12 [1] : vector<32x32xf32> to vector<32xf32>
    %61 = vector.shape_cast %60 : vector<32xf32> to vector<32x1xf32>
    %62 = tpu.reciprocal %61 : vector<32x1xf32> -> vector<32x1xf32>
    %63 = vector.broadcast %62 : vector<32x1xf32> to vector<32x32xf32>
    %64 = arith.mulf %59, %63 : vector<32x32xf32>
    %cst_13 = arith.constant dense<0.000000e+00> : vector<32xf32>
    %65 = vector.multi_reduction <add>, %64, %cst_13 [0] : vector<32x32xf32> to vector<32xf32>
    %66 = vector.shape_cast %65 : vector<32xf32> to vector<1x32xf32>
    %67 = tpu.reciprocal %66 : vector<1x32xf32> -> vector<1x32xf32>
    %68 = vector.broadcast %67 : vector<1x32xf32> to vector<32x32xf32>
    %69 = arith.mulf %64, %68 : vector<32x32xf32>
    %cst_14 = arith.constant dense<0.000000e+00> : vector<32xf32>
    %70 = vector.multi_reduction <add>, %69, %cst_14 [1] : vector<32x32xf32> to vector<32xf32>
    %71 = vector.shape_cast %70 : vector<32xf32> to vector<32x1xf32>
    %72 = tpu.reciprocal %71 : vector<32x1xf32> -> vector<32x1xf32>
    %73 = vector.broadcast %72 : vector<32x1xf32> to vector<32x32xf32>
    %74 = arith.mulf %69, %73 : vector<32x32xf32>
    %cst_15 = arith.constant dense<0.000000e+00> : vector<32xf32>
    %75 = vector.multi_reduction <add>, %74, %cst_15 [0] : vector<32x32xf32> to vector<32xf32>
    %76 = vector.shape_cast %75 : vector<32xf32> to vector<1x32xf32>
    %77 = tpu.reciprocal %76 : vector<1x32xf32> -> vector<1x32xf32>
    %78 = vector.broadcast %77 : vector<1x32xf32> to vector<32x32xf32>
    %79 = arith.mulf %74, %78 : vector<32x32xf32>
    %cst_16 = arith.constant dense<0.000000e+00> : vector<32xf32>
    %80 = vector.multi_reduction <add>, %79, %cst_16 [1] : vector<32x32xf32> to vector<32xf32>
    %81 = vector.shape_cast %80 : vector<32xf32> to vector<32x1xf32>
    %82 = tpu.reciprocal %81 : vector<32x1xf32> -> vector<32x1xf32>
    %83 = vector.broadcast %82 : vector<32x1xf32> to vector<32x32xf32>
    %84 = arith.mulf %79, %83 : vector<32x32xf32>
    %cst_17 = arith.constant dense<0.000000e+00> : vector<32xf32>
    %85 = vector.multi_reduction <add>, %84, %cst_17 [0] : vector<32x32xf32> to vector<32xf32>
    %86 = vector.shape_cast %85 : vector<32xf32> to vector<1x32xf32>
    %87 = tpu.reciprocal %86 : vector<1x32xf32> -> vector<1x32xf32>
    %88 = vector.broadcast %87 : vector<1x32xf32> to vector<32x32xf32>
    %89 = arith.mulf %84, %88 : vector<32x32xf32>
    %cst_18 = arith.constant dense<0.000000e+00> : vector<32xf32>
    %90 = vector.multi_reduction <add>, %89, %cst_18 [1] : vector<32x32xf32> to vector<32xf32>
    %91 = vector.shape_cast %90 : vector<32xf32> to vector<32x1xf32>
    %92 = tpu.reciprocal %91 : vector<32x1xf32> -> vector<32x1xf32>
    %93 = vector.broadcast %92 : vector<32x1xf32> to vector<32x32xf32>
    %94 = arith.mulf %89, %93 : vector<32x32xf32>
    %cst_19 = arith.constant dense<0.000000e+00> : vector<32xf32>
    %95 = vector.multi_reduction <add>, %94, %cst_19 [0] : vector<32x32xf32> to vector<32xf32>
    %96 = vector.shape_cast %95 : vector<32xf32> to vector<1x32xf32>
    %97 = tpu.reciprocal %96 : vector<1x32xf32> -> vector<1x32xf32>
    %98 = vector.broadcast %97 : vector<1x32xf32> to vector<32x32xf32>
    %99 = arith.mulf %94, %98 : vector<32x32xf32>
    %cst_20 = arith.constant dense<0.000000e+00> : vector<32xf32>
    %100 = vector.multi_reduction <add>, %99, %cst_20 [1] : vector<32x32xf32> to vector<32xf32>
    %101 = vector.shape_cast %100 : vector<32xf32> to vector<32x1xf32>
    %102 = tpu.reciprocal %101 : vector<32x1xf32> -> vector<32x1xf32>
    %103 = vector.broadcast %102 : vector<32x1xf32> to vector<32x32xf32>
    %104 = arith.mulf %99, %103 : vector<32x32xf32>
    %cst_21 = arith.constant dense<0.000000e+00> : vector<32xf32>
    %105 = vector.multi_reduction <add>, %104, %cst_21 [0] : vector<32x32xf32> to vector<32xf32>
    %106 = vector.shape_cast %105 : vector<32xf32> to vector<1x32xf32>
    %107 = tpu.reciprocal %106 : vector<1x32xf32> -> vector<1x32xf32>
    %108 = vector.broadcast %107 : vector<1x32xf32> to vector<32x32xf32>
    %109 = arith.mulf %104, %108 : vector<32x32xf32>
    %cst_22 = arith.constant dense<0.000000e+00> : vector<32xf32>
    %110 = vector.multi_reduction <add>, %109, %cst_22 [1] : vector<32x32xf32> to vector<32xf32>
    %111 = vector.shape_cast %110 : vector<32xf32> to vector<32x1xf32>
    %112 = tpu.reciprocal %111 : vector<32x1xf32> -> vector<32x1xf32>
    %113 = vector.broadcast %112 : vector<32x1xf32> to vector<32x32xf32>
    %114 = arith.mulf %109, %113 : vector<32x32xf32>
    %cst_23 = arith.constant dense<0.000000e+00> : vector<32xf32>
    %115 = vector.multi_reduction <add>, %114, %cst_23 [0] : vector<32x32xf32> to vector<32xf32>
    %116 = vector.shape_cast %115 : vector<32xf32> to vector<1x32xf32>
    %117 = tpu.reciprocal %116 : vector<1x32xf32> -> vector<1x32xf32>
    %118 = vector.broadcast %117 : vector<1x32xf32> to vector<32x32xf32>
    %119 = arith.mulf %114, %118 : vector<32x32xf32>
    %cst_24 = arith.constant dense<0.000000e+00> : vector<32xf32>
    %120 = vector.multi_reduction <add>, %119, %cst_24 [1] : vector<32x32xf32> to vector<32xf32>
    %121 = vector.shape_cast %120 : vector<32xf32> to vector<32x1xf32>
    %122 = tpu.reciprocal %121 : vector<32x1xf32> -> vector<32x1xf32>
    %123 = vector.broadcast %122 : vector<32x1xf32> to vector<32x32xf32>
    %124 = arith.mulf %119, %123 : vector<32x32xf32>
    %cst_25 = arith.constant dense<0.000000e+00> : vector<32xf32>
    %125 = vector.multi_reduction <add>, %124, %cst_25 [0] : vector<32x32xf32> to vector<32xf32>
    %126 = vector.shape_cast %125 : vector<32xf32> to vector<1x32xf32>
    %127 = tpu.reciprocal %126 : vector<1x32xf32> -> vector<1x32xf32>
    %128 = vector.broadcast %127 : vector<1x32xf32> to vector<32x32xf32>
    %129 = arith.mulf %124, %128 : vector<32x32xf32>
    %cst_26 = arith.constant dense<0.000000e+00> : vector<32xf32>
    %130 = vector.multi_reduction <add>, %129, %cst_26 [1] : vector<32x32xf32> to vector<32xf32>
    %131 = vector.shape_cast %130 : vector<32xf32> to vector<32x1xf32>
    %132 = tpu.reciprocal %131 : vector<32x1xf32> -> vector<32x1xf32>
    %133 = vector.broadcast %132 : vector<32x1xf32> to vector<32x32xf32>
    %134 = arith.mulf %129, %133 : vector<32x32xf32>
    %cst_27 = arith.constant dense<0.000000e+00> : vector<32xf32>
    %135 = vector.multi_reduction <add>, %134, %cst_27 [0] : vector<32x32xf32> to vector<32xf32>
    %136 = vector.shape_cast %135 : vector<32xf32> to vector<1x32xf32>
    %137 = tpu.reciprocal %136 : vector<1x32xf32> -> vector<1x32xf32>
    %138 = vector.broadcast %137 : vector<1x32xf32> to vector<32x32xf32>
    %139 = arith.mulf %134, %138 : vector<32x32xf32>
    %cst_28 = arith.constant dense<0.000000e+00> : vector<32xf32>
    %140 = vector.multi_reduction <add>, %139, %cst_28 [1] : vector<32x32xf32> to vector<32xf32>
    %141 = vector.shape_cast %140 : vector<32xf32> to vector<32x1xf32>
    %142 = tpu.reciprocal %141 : vector<32x1xf32> -> vector<32x1xf32>
    %143 = vector.broadcast %142 : vector<32x1xf32> to vector<32x32xf32>
    %144 = arith.mulf %139, %143 : vector<32x32xf32>
    %cst_29 = arith.constant dense<0.000000e+00> : vector<32xf32>
    %145 = vector.multi_reduction <add>, %144, %cst_29 [0] : vector<32x32xf32> to vector<32xf32>
    %146 = vector.shape_cast %145 : vector<32xf32> to vector<1x32xf32>
    %147 = tpu.reciprocal %146 : vector<1x32xf32> -> vector<1x32xf32>
    %148 = vector.broadcast %147 : vector<1x32xf32> to vector<32x32xf32>
    %149 = arith.mulf %144, %148 : vector<32x32xf32>
    %cst_30 = arith.constant dense<0.000000e+00> : vector<32xf32>
    %150 = vector.multi_reduction <add>, %149, %cst_30 [1] : vector<32x32xf32> to vector<32xf32>
    %151 = vector.shape_cast %150 : vector<32xf32> to vector<32x1xf32>
    %152 = tpu.reciprocal %151 : vector<32x1xf32> -> vector<32x1xf32>
    %153 = vector.broadcast %152 : vector<32x1xf32> to vector<32x32xf32>
    %154 = arith.mulf %149, %153 : vector<32x32xf32>
    %cst_31 = arith.constant dense<0.000000e+00> : vector<32xf32>
    %155 = vector.multi_reduction <add>, %154, %cst_31 [0] : vector<32x32xf32> to vector<32xf32>
    %156 = vector.shape_cast %155 : vector<32xf32> to vector<1x32xf32>
    %157 = tpu.reciprocal %156 : vector<1x32xf32> -> vector<1x32xf32>
    %158 = vector.broadcast %157 : vector<1x32xf32> to vector<32x32xf32>
    %159 = arith.mulf %154, %158 : vector<32x32xf32>
    %cst_32 = arith.constant dense<0.000000e+00> : vector<32xf32>
    %160 = vector.multi_reduction <add>, %159, %cst_32 [1] : vector<32x32xf32> to vector<32xf32>
    %161 = vector.shape_cast %160 : vector<32xf32> to vector<32x1xf32>
    %162 = tpu.reciprocal %161 : vector<32x1xf32> -> vector<32x1xf32>
    %163 = vector.broadcast %162 : vector<32x1xf32> to vector<32x32xf32>
    %164 = arith.mulf %159, %163 : vector<32x32xf32>
    %cst_33 = arith.constant dense<0.000000e+00> : vector<32xf32>
    %165 = vector.multi_reduction <add>, %164, %cst_33 [0] : vector<32x32xf32> to vector<32xf32>
    %166 = vector.shape_cast %165 : vector<32xf32> to vector<1x32xf32>
    %167 = tpu.reciprocal %166 : vector<1x32xf32> -> vector<1x32xf32>
    %168 = vector.broadcast %167 : vector<1x32xf32> to vector<32x32xf32>
    %169 = arith.mulf %164, %168 : vector<32x32xf32>
    %cst_34 = arith.constant dense<0.000000e+00> : vector<32xf32>
    %170 = vector.multi_reduction <add>, %169, %cst_34 [1] : vector<32x32xf32> to vector<32xf32>
    %171 = vector.shape_cast %170 : vector<32xf32> to vector<32x1xf32>
    %172 = tpu.reciprocal %171 : vector<32x1xf32> -> vector<32x1xf32>
    %173 = vector.broadcast %172 : vector<32x1xf32> to vector<32x32xf32>
    %174 = arith.mulf %169, %173 : vector<32x32xf32>
    %cst_35 = arith.constant dense<0.000000e+00> : vector<32xf32>
    %175 = vector.multi_reduction <add>, %174, %cst_35 [0] : vector<32x32xf32> to vector<32xf32>
    %176 = vector.shape_cast %175 : vector<32xf32> to vector<1x32xf32>
    %177 = tpu.reciprocal %176 : vector<1x32xf32> -> vector<1x32xf32>
    %178 = vector.broadcast %177 : vector<1x32xf32> to vector<32x32xf32>
    %179 = arith.mulf %174, %178 : vector<32x32xf32>
    %cst_36 = arith.constant dense<0.000000e+00> : vector<32xf32>
    %180 = vector.multi_reduction <add>, %179, %cst_36 [1] : vector<32x32xf32> to vector<32xf32>
    %181 = vector.shape_cast %180 : vector<32xf32> to vector<32x1xf32>
    %182 = tpu.reciprocal %181 : vector<32x1xf32> -> vector<32x1xf32>
    %183 = vector.broadcast %182 : vector<32x1xf32> to vector<32x32xf32>
    %184 = arith.mulf %179, %183 : vector<32x32xf32>
    %cst_37 = arith.constant dense<0.000000e+00> : vector<32xf32>
    %185 = vector.multi_reduction <add>, %184, %cst_37 [0] : vector<32x32xf32> to vector<32xf32>
    %186 = vector.shape_cast %185 : vector<32xf32> to vector<1x32xf32>
    %187 = tpu.reciprocal %186 : vector<1x32xf32> -> vector<1x32xf32>
    %188 = vector.broadcast %187 : vector<1x32xf32> to vector<32x32xf32>
    %189 = arith.mulf %184, %188 : vector<32x32xf32>
    %cst_38 = arith.constant dense<0.000000e+00> : vector<32xf32>
    %190 = vector.multi_reduction <add>, %189, %cst_38 [1] : vector<32x32xf32> to vector<32xf32>
    %191 = vector.shape_cast %190 : vector<32xf32> to vector<32x1xf32>
    %192 = tpu.reciprocal %191 : vector<32x1xf32> -> vector<32x1xf32>
    %193 = vector.broadcast %192 : vector<32x1xf32> to vector<32x32xf32>
    %194 = arith.mulf %189, %193 : vector<32x32xf32>
    %cst_39 = arith.constant dense<0.000000e+00> : vector<32xf32>
    %195 = vector.multi_reduction <add>, %194, %cst_39 [0] : vector<32x32xf32> to vector<32xf32>
    %196 = vector.shape_cast %195 : vector<32xf32> to vector<1x32xf32>
    %197 = tpu.reciprocal %196 : vector<1x32xf32> -> vector<1x32xf32>
    %198 = vector.broadcast %197 : vector<1x32xf32> to vector<32x32xf32>
    %199 = arith.mulf %194, %198 : vector<32x32xf32>
    %cst_40 = arith.constant dense<0.000000e+00> : vector<32xf32>
    %200 = vector.multi_reduction <add>, %199, %cst_40 [1] : vector<32x32xf32> to vector<32xf32>
    %201 = vector.shape_cast %200 : vector<32xf32> to vector<32x1xf32>
    %202 = tpu.reciprocal %201 : vector<32x1xf32> -> vector<32x1xf32>
    %203 = vector.broadcast %202 : vector<32x1xf32> to vector<32x32xf32>
    %204 = arith.mulf %199, %203 : vector<32x32xf32>
    %cst_41 = arith.constant dense<0.000000e+00> : vector<32xf32>
    %205 = vector.multi_reduction <add>, %204, %cst_41 [0] : vector<32x32xf32> to vector<32xf32>
    %206 = vector.shape_cast %205 : vector<32xf32> to vector<1x32xf32>
    %207 = tpu.reciprocal %206 : vector<1x32xf32> -> vector<1x32xf32>
    %208 = vector.broadcast %207 : vector<1x32xf32> to vector<32x32xf32>
    %209 = arith.mulf %204, %208 : vector<32x32xf32>
    %c0_42 = arith.constant 0 : index
    %c0_43 = arith.constant 0 : index
    %210 = vector.load %arg1[%c0_42, %c0_43] : memref<32x32xf32, #tpu.memory_space<vmem>>, vector<32x32xf32>
    %cst_44 = arith.constant dense<0.000000e+00> : vector<32x32xf32>
    %211 = tpu.matmul %209, %210, %cst_44 {dimension_numbers = #tpu.dot_dimension_numbers<[1], [0], [0], [1], [0, 0, 1, 1], [], []>} : vector<32x32xf32>, vector<32x32xf32>, vector<32x32xf32> -> vector<32x32xf32>
    %cst_45 = arith.constant dense<0.000000e+00> : vector<32x32xf32>
    %212 = tpu.matmul %209, %211, %cst_45 {dimension_numbers = #tpu.dot_dimension_numbers<[1], [1], [0], [0], [0, 0, 1, 0], [], []>} : vector<32x32xf32>, vector<32x32xf32>, vector<32x32xf32> -> vector<32x32xf32>
    %c0_46 = arith.constant 0 : index
    %c0_47 = arith.constant 0 : index
    %213 = vector.load %arg2[%c0_46, %c0_47] : memref<32x32xf32, #tpu.memory_space<vmem>>, vector<32x32xf32>
    %214 = arith.mulf %213, %212 : vector<32x32xf32>
    %c0_48 = arith.constant 0 : index
    %c0_49 = arith.constant 0 : index
    %215 = vector.load %arg3[%c0_48, %c0_49] : memref<32x32xf32, #tpu.memory_space<vmem>>, vector<32x32xf32>
    %216 = arith.mulf %215, %212 : vector<32x32xf32>
    %c0_50 = arith.constant 0 : index
    %c0_51 = arith.constant 0 : index
    %217 = vector.load %arg4[%c0_50, %c0_51] : memref<32x32xf32, #tpu.memory_space<vmem>>, vector<32x32xf32>
    %218 = arith.mulf %217, %212 : vector<32x32xf32>
    %219 = tpu.concatenate %214, %216, %218 in 1 : vector<32x32xf32>, vector<32x32xf32>, vector<32x32xf32> -> vector<32x96xf32>
    %c0_52 = arith.constant 0 : index
    %c0_53 = arith.constant 0 : index
    %220 = vector.load %arg5[%c0_52, %c0_53] : memref<32x32xf32, #tpu.memory_space<vmem>>, vector<32x32xf32>
    %221 = arith.mulf %220, %212 : vector<32x32xf32>
    %c0_54 = arith.constant 0 : index
    %c0_55 = arith.constant 0 : index
    %222 = vector.load %arg6[%c0_54, %c0_55] : memref<32x32xf32, #tpu.memory_space<vmem>>, vector<32x32xf32>
    %223 = arith.mulf %222, %212 : vector<32x32xf32>
    %224 = tpu.concatenate %221, %223 in 1 : vector<32x32xf32>, vector<32x32xf32> -> vector<32x64xf32>
    %c0_56 = arith.constant 0 : index
    %c0_57 = arith.constant 0 : index
    %225 = vector.load %arg7[%c0_56, %c0_57] : memref<32x32xf32, #tpu.memory_space<vmem>>, vector<32x32xf32>
    %226 = arith.mulf %225, %212 : vector<32x32xf32>
    %c0_58 = arith.constant 0 : index
    %c0_59 = arith.constant 0 : index
    %227 = vector.load %arg8[%c0_58, %c0_59] : memref<16x32xf32, #tpu.memory_space<vmem>>, vector<16x32xf32>
    %cst_60 = arith.constant dense<0.000000e+00> : vector<16x96xf32>
    %228 = tpu.matmul %227, %219, %cst_60 {dimension_numbers = #tpu.dot_dimension_numbers<[1], [0], [0], [1], [0, 0, 1, 1], [], []>} : vector<16x32xf32>, vector<32x96xf32>, vector<16x96xf32> -> vector<16x96xf32>
    %cst_61 = arith.constant 0.000000e+00 : f32
    %229 = vector.broadcast %cst_61 : f32 to vector<2x32xf32>
    %230 = vector.extract_strided_slice %228 {offsets = [0, 0], sizes = [2, 96], strides = [1, 1]} : vector<16x96xf32> to vector<2x96xf32>
    %cst_62 = arith.constant dense<0.000000e+00> : vector<2x64xf32>
    %231 = tpu.matmul %229, %224, %cst_62 {dimension_numbers = #tpu.dot_dimension_numbers<[1], [0], [0], [1], [0, 0, 1, 1], [], []>} : vector<2x32xf32>, vector<32x64xf32>, vector<2x64xf32> -> vector<2x64xf32>
    %232 = vector.extract_strided_slice %230 {offsets = [0, 0], sizes = [2, 64], strides = [1, 1]} : vector<2x96xf32> to vector<2x64xf32>
    %233 = arith.addf %232, %231 : vector<2x64xf32>
    %234 = arith.negf %233 : vector<2x64xf32>
    %235 = math.exp %234 : vector<2x64xf32>
    %cst_63 = arith.constant 1.000000e+00 : f32
    %236 = vector.broadcast %cst_63 : f32 to vector<2x64xf32>
    %237 = arith.addf %236, %235 : vector<2x64xf32>
    %238 = arith.divf %236, %237 : vector<2x64xf32>
    %239 = vector.extract_strided_slice %238 {offsets = [0, 0], sizes = [2, 32], strides = [1, 1]} : vector<2x64xf32> to vector<2x32xf32>
    %240 = vector.extract_strided_slice %238 {offsets = [0, 32], sizes = [2, 32], strides = [1, 1]} : vector<2x64xf32> to vector<2x32xf32>
    %241 = vector.extract_strided_slice %230 {offsets = [0, 64], sizes = [2, 32], strides = [1, 1]} : vector<2x96xf32> to vector<2x32xf32>
    %242 = arith.mulf %239, %229 : vector<2x32xf32>
    %cst_64 = arith.constant dense<0.000000e+00> : vector<2x32xf32>
    %243 = tpu.matmul %242, %226, %cst_64 {dimension_numbers = #tpu.dot_dimension_numbers<[1], [0], [0], [1], [0, 0, 1, 1], [], []>} : vector<2x32xf32>, vector<32x32xf32>, vector<2x32xf32> -> vector<2x32xf32>
    %244 = arith.addf %241, %243 : vector<2x32xf32>
    %245 = math.tanh %244 : vector<2x32xf32>
    %246 = arith.subf %229, %245 : vector<2x32xf32>
    %247 = arith.mulf %240, %246 : vector<2x32xf32>
    %248 = arith.addf %245, %247 : vector<2x32xf32>
    %c0_65 = arith.constant 0 : index
    %c0_66 = arith.constant 0 : index
    %249 = vector.load %arg9[%c0_65, %c0_66] : memref<16x32xf32, #tpu.memory_space<vmem>>, vector<2x32xf32>
    tpu.vector_store %arg9[%c0_65, %c0_66], %248 {strides = array<i32>} : memref<16x32xf32, #tpu.memory_space<vmem>>, vector<2x32xf32>,
    %250 = vector.extract_strided_slice %228 {offsets = [2, 0], sizes = [2, 96], strides = [1, 1]} : vector<16x96xf32> to vector<2x96xf32>
    %cst_67 = arith.constant dense<0.000000e+00> : vector<2x64xf32>
    %251 = tpu.matmul %248, %224, %cst_67 {dimension_numbers = #tpu.dot_dimension_numbers<[1], [0], [0], [1], [0, 0, 1, 1], [], []>} : vector<2x32xf32>, vector<32x64xf32>, vector<2x64xf32> -> vector<2x64xf32>
    %252 = vector.extract_strided_slice %250 {offsets = [0, 0], sizes = [2, 64], strides = [1, 1]} : vector<2x96xf32> to vector<2x64xf32>
    %253 = arith.addf %252, %251 : vector<2x64xf32>
    %254 = arith.negf %253 : vector<2x64xf32>
    %255 = math.exp %254 : vector<2x64xf32>
    %cst_68 = arith.constant 1.000000e+00 : f32
    %256 = vector.broadcast %cst_68 : f32 to vector<2x64xf32>
    %257 = arith.addf %256, %255 : vector<2x64xf32>
    %258 = arith.divf %256, %257 : vector<2x64xf32>
    %259 = vector.extract_strided_slice %258 {offsets = [0, 0], sizes = [2, 32], strides = [1, 1]} : vector<2x64xf32> to vector<2x32xf32>
    %260 = vector.extract_strided_slice %258 {offsets = [0, 32], sizes = [2, 32], strides = [1, 1]} : vector<2x64xf32> to vector<2x32xf32>
    %261 = vector.extract_strided_slice %250 {offsets = [0, 64], sizes = [2, 32], strides = [1, 1]} : vector<2x96xf32> to vector<2x32xf32>
    %262 = arith.mulf %259, %248 : vector<2x32xf32>
    %cst_69 = arith.constant dense<0.000000e+00> : vector<2x32xf32>
    %263 = tpu.matmul %262, %226, %cst_69 {dimension_numbers = #tpu.dot_dimension_numbers<[1], [0], [0], [1], [0, 0, 1, 1], [], []>} : vector<2x32xf32>, vector<32x32xf32>, vector<2x32xf32> -> vector<2x32xf32>
    %264 = arith.addf %261, %263 : vector<2x32xf32>
    %265 = math.tanh %264 : vector<2x32xf32>
    %266 = arith.subf %248, %265 : vector<2x32xf32>
    %267 = arith.mulf %260, %266 : vector<2x32xf32>
    %268 = arith.addf %265, %267 : vector<2x32xf32>
    %c2 = arith.constant 2 : index
    %c0_70 = arith.constant 0 : index
    %269 = vector.load %arg9[%c2, %c0_70] : memref<16x32xf32, #tpu.memory_space<vmem>>, vector<2x32xf32>
    tpu.vector_store %arg9[%c2, %c0_70], %268 {strides = array<i32>} : memref<16x32xf32, #tpu.memory_space<vmem>>, vector<2x32xf32>,
    %270 = vector.extract_strided_slice %228 {offsets = [4, 0], sizes = [2, 96], strides = [1, 1]} : vector<16x96xf32> to vector<2x96xf32>
    %cst_71 = arith.constant dense<0.000000e+00> : vector<2x64xf32>
    %271 = tpu.matmul %268, %224, %cst_71 {dimension_numbers = #tpu.dot_dimension_numbers<[1], [0], [0], [1], [0, 0, 1, 1], [], []>} : vector<2x32xf32>, vector<32x64xf32>, vector<2x64xf32> -> vector<2x64xf32>
    %272 = vector.extract_strided_slice %270 {offsets = [0, 0], sizes = [2, 64], strides = [1, 1]} : vector<2x96xf32> to vector<2x64xf32>
    %273 = arith.addf %272, %271 : vector<2x64xf32>
    %274 = arith.negf %273 : vector<2x64xf32>
    %275 = math.exp %274 : vector<2x64xf32>
    %cst_72 = arith.constant 1.000000e+00 : f32
    %276 = vector.broadcast %cst_72 : f32 to vector<2x64xf32>
    %277 = arith.addf %276, %275 : vector<2x64xf32>
    %278 = arith.divf %276, %277 : vector<2x64xf32>
    %279 = vector.extract_strided_slice %278 {offsets = [0, 0], sizes = [2, 32], strides = [1, 1]} : vector<2x64xf32> to vector<2x32xf32>
    %280 = vector.extract_strided_slice %278 {offsets = [0, 32], sizes = [2, 32], strides = [1, 1]} : vector<2x64xf32> to vector<2x32xf32>
    %281 = vector.extract_strided_slice %270 {offsets = [0, 64], sizes = [2, 32], strides = [1, 1]} : vector<2x96xf32> to vector<2x32xf32>
    %282 = arith.mulf %279, %268 : vector<2x32xf32>
    %cst_73 = arith.constant dense<0.000000e+00> : vector<2x32xf32>
    %283 = tpu.matmul %282, %226, %cst_73 {dimension_numbers = #tpu.dot_dimension_numbers<[1], [0], [0], [1], [0, 0, 1, 1], [], []>} : vector<2x32xf32>, vector<32x32xf32>, vector<2x32xf32> -> vector<2x32xf32>
    %284 = arith.addf %281, %283 : vector<2x32xf32>
    %285 = math.tanh %284 : vector<2x32xf32>
    %286 = arith.subf %268, %285 : vector<2x32xf32>
    %287 = arith.mulf %280, %286 : vector<2x32xf32>
    %288 = arith.addf %285, %287 : vector<2x32xf32>
    %c4 = arith.constant 4 : index
    %c0_74 = arith.constant 0 : index
    %289 = vector.load %arg9[%c4, %c0_74] : memref<16x32xf32, #tpu.memory_space<vmem>>, vector<2x32xf32>
    tpu.vector_store %arg9[%c4, %c0_74], %288 {strides = array<i32>} : memref<16x32xf32, #tpu.memory_space<vmem>>, vector<2x32xf32>,
    %290 = vector.extract_strided_slice %228 {offsets = [6, 0], sizes = [2, 96], strides = [1, 1]} : vector<16x96xf32> to vector<2x96xf32>
    %cst_75 = arith.constant dense<0.000000e+00> : vector<2x64xf32>
    %291 = tpu.matmul %288, %224, %cst_75 {dimension_numbers = #tpu.dot_dimension_numbers<[1], [0], [0], [1], [0, 0, 1, 1], [], []>} : vector<2x32xf32>, vector<32x64xf32>, vector<2x64xf32> -> vector<2x64xf32>
    %292 = vector.extract_strided_slice %290 {offsets = [0, 0], sizes = [2, 64], strides = [1, 1]} : vector<2x96xf32> to vector<2x64xf32>
    %293 = arith.addf %292, %291 : vector<2x64xf32>
    %294 = arith.negf %293 : vector<2x64xf32>
    %295 = math.exp %294 : vector<2x64xf32>
    %cst_76 = arith.constant 1.000000e+00 : f32
    %296 = vector.broadcast %cst_76 : f32 to vector<2x64xf32>
    %297 = arith.addf %296, %295 : vector<2x64xf32>
    %298 = arith.divf %296, %297 : vector<2x64xf32>
    %299 = vector.extract_strided_slice %298 {offsets = [0, 0], sizes = [2, 32], strides = [1, 1]} : vector<2x64xf32> to vector<2x32xf32>
    %300 = vector.extract_strided_slice %298 {offsets = [0, 32], sizes = [2, 32], strides = [1, 1]} : vector<2x64xf32> to vector<2x32xf32>
    %301 = vector.extract_strided_slice %290 {offsets = [0, 64], sizes = [2, 32], strides = [1, 1]} : vector<2x96xf32> to vector<2x32xf32>
    %302 = arith.mulf %299, %288 : vector<2x32xf32>
    %cst_77 = arith.constant dense<0.000000e+00> : vector<2x32xf32>
    %303 = tpu.matmul %302, %226, %cst_77 {dimension_numbers = #tpu.dot_dimension_numbers<[1], [0], [0], [1], [0, 0, 1, 1], [], []>} : vector<2x32xf32>, vector<32x32xf32>, vector<2x32xf32> -> vector<2x32xf32>
    %304 = arith.addf %301, %303 : vector<2x32xf32>
    %305 = math.tanh %304 : vector<2x32xf32>
    %306 = arith.subf %288, %305 : vector<2x32xf32>
    %307 = arith.mulf %300, %306 : vector<2x32xf32>
    %308 = arith.addf %305, %307 : vector<2x32xf32>
    %c6 = arith.constant 6 : index
    %c0_78 = arith.constant 0 : index
    %309 = vector.load %arg9[%c6, %c0_78] : memref<16x32xf32, #tpu.memory_space<vmem>>, vector<2x32xf32>
    tpu.vector_store %arg9[%c6, %c0_78], %308 {strides = array<i32>} : memref<16x32xf32, #tpu.memory_space<vmem>>, vector<2x32xf32>,
    %310 = vector.extract_strided_slice %228 {offsets = [8, 0], sizes = [2, 96], strides = [1, 1]} : vector<16x96xf32> to vector<2x96xf32>
    %cst_79 = arith.constant dense<0.000000e+00> : vector<2x64xf32>
    %311 = tpu.matmul %308, %224, %cst_79 {dimension_numbers = #tpu.dot_dimension_numbers<[1], [0], [0], [1], [0, 0, 1, 1], [], []>} : vector<2x32xf32>, vector<32x64xf32>, vector<2x64xf32> -> vector<2x64xf32>
    %312 = vector.extract_strided_slice %310 {offsets = [0, 0], sizes = [2, 64], strides = [1, 1]} : vector<2x96xf32> to vector<2x64xf32>
    %313 = arith.addf %312, %311 : vector<2x64xf32>
    %314 = arith.negf %313 : vector<2x64xf32>
    %315 = math.exp %314 : vector<2x64xf32>
    %cst_80 = arith.constant 1.000000e+00 : f32
    %316 = vector.broadcast %cst_80 : f32 to vector<2x64xf32>
    %317 = arith.addf %316, %315 : vector<2x64xf32>
    %318 = arith.divf %316, %317 : vector<2x64xf32>
    %319 = vector.extract_strided_slice %318 {offsets = [0, 0], sizes = [2, 32], strides = [1, 1]} : vector<2x64xf32> to vector<2x32xf32>
    %320 = vector.extract_strided_slice %318 {offsets = [0, 32], sizes = [2, 32], strides = [1, 1]} : vector<2x64xf32> to vector<2x32xf32>
    %321 = vector.extract_strided_slice %310 {offsets = [0, 64], sizes = [2, 32], strides = [1, 1]} : vector<2x96xf32> to vector<2x32xf32>
    %322 = arith.mulf %319, %308 : vector<2x32xf32>
    %cst_81 = arith.constant dense<0.000000e+00> : vector<2x32xf32>
    %323 = tpu.matmul %322, %226, %cst_81 {dimension_numbers = #tpu.dot_dimension_numbers<[1], [0], [0], [1], [0, 0, 1, 1], [], []>} : vector<2x32xf32>, vector<32x32xf32>, vector<2x32xf32> -> vector<2x32xf32>
    %324 = arith.addf %321, %323 : vector<2x32xf32>
    %325 = math.tanh %324 : vector<2x32xf32>
    %326 = arith.subf %308, %325 : vector<2x32xf32>
    %327 = arith.mulf %320, %326 : vector<2x32xf32>
    %328 = arith.addf %325, %327 : vector<2x32xf32>
    %c8 = arith.constant 8 : index
    %c0_82 = arith.constant 0 : index
    %329 = vector.load %arg9[%c8, %c0_82] : memref<16x32xf32, #tpu.memory_space<vmem>>, vector<2x32xf32>
    tpu.vector_store %arg9[%c8, %c0_82], %328 {strides = array<i32>} : memref<16x32xf32, #tpu.memory_space<vmem>>, vector<2x32xf32>,
    %330 = vector.extract_strided_slice %228 {offsets = [10, 0], sizes = [2, 96], strides = [1, 1]} : vector<16x96xf32> to vector<2x96xf32>
    %cst_83 = arith.constant dense<0.000000e+00> : vector<2x64xf32>
    %331 = tpu.matmul %328, %224, %cst_83 {dimension_numbers = #tpu.dot_dimension_numbers<[1], [0], [0], [1], [0, 0, 1, 1], [], []>} : vector<2x32xf32>, vector<32x64xf32>, vector<2x64xf32> -> vector<2x64xf32>
    %332 = vector.extract_strided_slice %330 {offsets = [0, 0], sizes = [2, 64], strides = [1, 1]} : vector<2x96xf32> to vector<2x64xf32>
    %333 = arith.addf %332, %331 : vector<2x64xf32>
    %334 = arith.negf %333 : vector<2x64xf32>
    %335 = math.exp %334 : vector<2x64xf32>
    %cst_84 = arith.constant 1.000000e+00 : f32
    %336 = vector.broadcast %cst_84 : f32 to vector<2x64xf32>
    %337 = arith.addf %336, %335 : vector<2x64xf32>
    %338 = arith.divf %336, %337 : vector<2x64xf32>
    %339 = vector.extract_strided_slice %338 {offsets = [0, 0], sizes = [2, 32], strides = [1, 1]} : vector<2x64xf32> to vector<2x32xf32>
    %340 = vector.extract_strided_slice %338 {offsets = [0, 32], sizes = [2, 32], strides = [1, 1]} : vector<2x64xf32> to vector<2x32xf32>
    %341 = vector.extract_strided_slice %330 {offsets = [0, 64], sizes = [2, 32], strides = [1, 1]} : vector<2x96xf32> to vector<2x32xf32>
    %342 = arith.mulf %339, %328 : vector<2x32xf32>
    %cst_85 = arith.constant dense<0.000000e+00> : vector<2x32xf32>
    %343 = tpu.matmul %342, %226, %cst_85 {dimension_numbers = #tpu.dot_dimension_numbers<[1], [0], [0], [1], [0, 0, 1, 1], [], []>} : vector<2x32xf32>, vector<32x32xf32>, vector<2x32xf32> -> vector<2x32xf32>
    %344 = arith.addf %341, %343 : vector<2x32xf32>
    %345 = math.tanh %344 : vector<2x32xf32>
    %346 = arith.subf %328, %345 : vector<2x32xf32>
    %347 = arith.mulf %340, %346 : vector<2x32xf32>
    %348 = arith.addf %345, %347 : vector<2x32xf32>
    %c10 = arith.constant 10 : index
    %c0_86 = arith.constant 0 : index
    %349 = vector.load %arg9[%c10, %c0_86] : memref<16x32xf32, #tpu.memory_space<vmem>>, vector<2x32xf32>
    tpu.vector_store %arg9[%c10, %c0_86], %348 {strides = array<i32>} : memref<16x32xf32, #tpu.memory_space<vmem>>, vector<2x32xf32>,
    %350 = vector.extract_strided_slice %228 {offsets = [12, 0], sizes = [2, 96], strides = [1, 1]} : vector<16x96xf32> to vector<2x96xf32>
    %cst_87 = arith.constant dense<0.000000e+00> : vector<2x64xf32>
    %351 = tpu.matmul %348, %224, %cst_87 {dimension_numbers = #tpu.dot_dimension_numbers<[1], [0], [0], [1], [0, 0, 1, 1], [], []>} : vector<2x32xf32>, vector<32x64xf32>, vector<2x64xf32> -> vector<2x64xf32>
    %352 = vector.extract_strided_slice %350 {offsets = [0, 0], sizes = [2, 64], strides = [1, 1]} : vector<2x96xf32> to vector<2x64xf32>
    %353 = arith.addf %352, %351 : vector<2x64xf32>
    %354 = arith.negf %353 : vector<2x64xf32>
    %355 = math.exp %354 : vector<2x64xf32>
    %cst_88 = arith.constant 1.000000e+00 : f32
    %356 = vector.broadcast %cst_88 : f32 to vector<2x64xf32>
    %357 = arith.addf %356, %355 : vector<2x64xf32>
    %358 = arith.divf %356, %357 : vector<2x64xf32>
    %359 = vector.extract_strided_slice %358 {offsets = [0, 0], sizes = [2, 32], strides = [1, 1]} : vector<2x64xf32> to vector<2x32xf32>
    %360 = vector.extract_strided_slice %358 {offsets = [0, 32], sizes = [2, 32], strides = [1, 1]} : vector<2x64xf32> to vector<2x32xf32>
    %361 = vector.extract_strided_slice %350 {offsets = [0, 64], sizes = [2, 32], strides = [1, 1]} : vector<2x96xf32> to vector<2x32xf32>
    %362 = arith.mulf %359, %348 : vector<2x32xf32>
    %cst_89 = arith.constant dense<0.000000e+00> : vector<2x32xf32>
    %363 = tpu.matmul %362, %226, %cst_89 {dimension_numbers = #tpu.dot_dimension_numbers<[1], [0], [0], [1], [0, 0, 1, 1], [], []>} : vector<2x32xf32>, vector<32x32xf32>, vector<2x32xf32> -> vector<2x32xf32>
    %364 = arith.addf %361, %363 : vector<2x32xf32>
    %365 = math.tanh %364 : vector<2x32xf32>
    %366 = arith.subf %348, %365 : vector<2x32xf32>
    %367 = arith.mulf %360, %366 : vector<2x32xf32>
    %368 = arith.addf %365, %367 : vector<2x32xf32>
    %c12 = arith.constant 12 : index
    %c0_90 = arith.constant 0 : index
    %369 = vector.load %arg9[%c12, %c0_90] : memref<16x32xf32, #tpu.memory_space<vmem>>, vector<2x32xf32>
    tpu.vector_store %arg9[%c12, %c0_90], %368 {strides = array<i32>} : memref<16x32xf32, #tpu.memory_space<vmem>>, vector<2x32xf32>,
    %370 = vector.extract_strided_slice %228 {offsets = [14, 0], sizes = [2, 96], strides = [1, 1]} : vector<16x96xf32> to vector<2x96xf32>
    %cst_91 = arith.constant dense<0.000000e+00> : vector<2x64xf32>
    %371 = tpu.matmul %368, %224, %cst_91 {dimension_numbers = #tpu.dot_dimension_numbers<[1], [0], [0], [1], [0, 0, 1, 1], [], []>} : vector<2x32xf32>, vector<32x64xf32>, vector<2x64xf32> -> vector<2x64xf32>
    %372 = vector.extract_strided_slice %370 {offsets = [0, 0], sizes = [2, 64], strides = [1, 1]} : vector<2x96xf32> to vector<2x64xf32>
    %373 = arith.addf %372, %371 : vector<2x64xf32>
    %374 = arith.negf %373 : vector<2x64xf32>
    %375 = math.exp %374 : vector<2x64xf32>
    %cst_92 = arith.constant 1.000000e+00 : f32
    %376 = vector.broadcast %cst_92 : f32 to vector<2x64xf32>
    %377 = arith.addf %376, %375 : vector<2x64xf32>
    %378 = arith.divf %376, %377 : vector<2x64xf32>
    %379 = vector.extract_strided_slice %378 {offsets = [0, 0], sizes = [2, 32], strides = [1, 1]} : vector<2x64xf32> to vector<2x32xf32>
    %380 = vector.extract_strided_slice %378 {offsets = [0, 32], sizes = [2, 32], strides = [1, 1]} : vector<2x64xf32> to vector<2x32xf32>
    %381 = vector.extract_strided_slice %370 {offsets = [0, 64], sizes = [2, 32], strides = [1, 1]} : vector<2x96xf32> to vector<2x32xf32>
    %382 = arith.mulf %379, %368 : vector<2x32xf32>
    %cst_93 = arith.constant dense<0.000000e+00> : vector<2x32xf32>
    %383 = tpu.matmul %382, %226, %cst_93 {dimension_numbers = #tpu.dot_dimension_numbers<[1], [0], [0], [1], [0, 0, 1, 1], [], []>} : vector<2x32xf32>, vector<32x32xf32>, vector<2x32xf32> -> vector<2x32xf32>
    %384 = arith.addf %381, %383 : vector<2x32xf32>
    %385 = math.tanh %384 : vector<2x32xf32>
    %386 = arith.subf %368, %385 : vector<2x32xf32>
    %387 = arith.mulf %380, %386 : vector<2x32xf32>
    %388 = arith.addf %385, %387 : vector<2x32xf32>
    %c14 = arith.constant 14 : index
    %c0_94 = arith.constant 0 : index
    %389 = vector.load %arg9[%c14, %c0_94] : memref<16x32xf32, #tpu.memory_space<vmem>>, vector<2x32xf32>
    tpu.vector_store %arg9[%c14, %c0_94], %388 {strides = array<i32>} : memref<16x32xf32, #tpu.memory_space<vmem>>, vector<2x32xf32>,
    return
  }
}

</mosaic_0001>

<llo_original>
// kernel: permuted_gru_forward.1
$region0: #{permuted_gru_forward.1}
  #allocation0 [shape = 'u32[]', space=smem, size = 0x4, offset = 0x4, fixed_abs, tag = 'smem constant byte address 0x4 - core index']
  #allocation1 [shape = 'u32[72,128]{1,0:T(1,128)}', space=vmem, size = 0x9000, scoped, tag = 'internal scratch']
  %s0 = inlined_call_operand.hbm [shape: f32[32,32], index: 0, kind: input, shape index: {}]
  %s1 = inlined_call_operand.hbm [shape: f32[32,32], index: 1, kind: input, shape index: {}]
  %s2 = inlined_call_operand.hbm [shape: f32[32,32], index: 2, kind: input, shape index: {}]
  %s3 = inlined_call_operand.hbm [shape: f32[32,32], index: 3, kind: input, shape index: {}]
  %s4 = inlined_call_operand.hbm [shape: f32[32,32], index: 4, kind: input, shape index: {}]
  %s5 = inlined_call_operand.hbm [shape: f32[32,32], index: 5, kind: input, shape index: {}]
  %s6 = inlined_call_operand.hbm [shape: f32[32,32], index: 6, kind: input, shape index: {}]
  %s7 = inlined_call_operand.hbm [shape: f32[32,32], index: 7, kind: input, shape index: {}]
  %s8 = inlined_call_operand.hbm [shape: f32[16,32], index: 8, kind: input, shape index: {}]
  %s9 = inlined_call_operand.vmem [shape: f32[16,32], index: 9, kind: output, shape index: {}]
  %s10 = sld [smem:[#allocation0]]
  $region82: #{permuted_gru_forward.1} parent=0
    _
  %s12 = ssub.s32 1, %s10
  %s13 = scalar_select 0, %s12, %s10
  $region1: #{permuted_gru_forward.1} parent=0
    #allocation2 [shape = 'u8[16384]{0}', space=vmem, size = 0x4000, scoped, tag = 'input window, operand 0, single buffered']
    #allocation3 [shape = 's32[1]{0}', space=sflag, size = 0x4, scoped, tag = 'scoped memory for permuted_gru_forward.1']
    #allocation4 [shape = 'u8[16384]{0}', space=vmem, size = 0x4000, scoped, tag = 'input window, operand 1, single buffered']
    #allocation5 [shape = 's32[1]{0}', space=sflag, size = 0x4, scoped, tag = 'scoped memory for permuted_gru_forward.1']
    #allocation6 [shape = 'u8[16384]{0}', space=vmem, size = 0x4000, scoped, tag = 'input window, operand 2, single buffered']
    #allocation7 [shape = 'u8[16384]{0}', space=vmem, size = 0x4000, scoped, tag = 'input window, operand 3, single buffered']
    #allocation8 [shape = 's32[1]{0}', space=sflag, size = 0x4, scoped, tag = 'scoped memory for permuted_gru_forward.1']
    #allocation9 [shape = 'u8[16384]{0}', space=vmem, size = 0x4000, scoped, tag = 'input window, operand 4, single buffered']
    #allocation10 [shape = 'u8[16384]{0}', space=vmem, size = 0x4000, scoped, tag = 'input window, operand 5, single buffered']
    #allocation11 [shape = 's32[1]{0}', space=sflag, size = 0x4, scoped, tag = 'scoped memory for permuted_gru_forward.1']
    #allocation12 [shape = 'u8[16384]{0}', space=vmem, size = 0x4000, scoped, tag = 'input window, operand 6, single buffered']
    #allocation13 [shape = 'u8[16384]{0}', space=vmem, size = 0x4000, scoped, tag = 'input window, operand 7, single buffered']
    #allocation14 [shape = 's32[1]{0}', space=sflag, size = 0x4, scoped, tag = 'scoped memory for permuted_gru_forward.1']
    #allocation15 [shape = 'u8[8192]{0}', space=vmem, size = 0x2000, scoped, tag = 'input window, operand 8, single buffered']
    %14 = vsyncpa [#allocation3], 0
    %15 = vsyncpa [#allocation5], 0
    %16 = vsyncpa [#allocation8], 0
    %17 = vsyncpa [#allocation11], 0
    %18 = vsyncpa [#allocation14], 0
    // Predicated region
    $region2: #{permuted_gru_forward.1} parent=1 // pred_check
      _
    $region3: #{permuted_gru_forward.1} parent=1 // pred_check_branch
      %20 = sbr.rel (0) target = $region5
    $region4: #{permuted_gru_forward.1} parent=1 // pred_region
      %22 = vsyncadd [#allocation3], 0
      %s23 = sshll.u32 %s0, 4
      %s24 = int_to_ptr.hbm [resolvable:$true] %s23
      %s25 = sshll.u32 [#allocation2], 4
      %s26 = int_to_ptr.vmem [resolvable:$true] %s25
      %31 = dma.hbm_to_vmem [thread:$0]  %s24, 512, %s26, [#allocation3], 128, 128, 8
    $region5: #{permuted_gru_forward.1} parent=1 // pred_fallthru
      _
    // Predicated region
    $region6: #{permuted_gru_forward.1} parent=1 // pred_check
      _
    $region7: #{permuted_gru_forward.1} parent=1 // pred_check_branch
      %33 = sbr.rel (0) target = $region9
    $region8: #{permuted_gru_forward.1} parent=1 // pred_region
      %35 = vsyncadd [#allocation5], 0
      %s36 = sshll.u32 %s1, 4
      %s37 = int_to_ptr.hbm [resolvable:$true] %s36
      %s38 = sshll.u32 [#allocation4], 4
      %s39 = int_to_ptr.vmem [resolvable:$true] %s38
      %44 = dma.hbm_to_vmem [thread:$0]  %s37, 512, %s39, [#allocation5], 128, 128, 8
    $region9: #{permuted_gru_forward.1} parent=1 // pred_fallthru
      _
    // Predicated region
    $region10: #{permuted_gru_forward.1} parent=1 // pred_check
      _
    $region11: #{permuted_gru_forward.1} parent=1 // pred_check_branch
      %46 = sbr.rel (0) target = $region13
    $region12: #{permuted_gru_forward.1} parent=1 // pred_region
      %48 = vsyncadd [#allocation5], 0
      %s49 = sshll.u32 %s2, 4
      %s50 = int_to_ptr.hbm [resolvable:$true] %s49
      %s51 = sshll.u32 [#allocation6], 4
      %s52 = int_to_ptr.vmem [resolvable:$true] %s51
      %57 = dma.hbm_to_vmem [thread:$0]  %s50, 512, %s52, [#allocation5], 128, 128, 8
    $region13: #{permuted_gru_forward.1} parent=1 // pred_fallthru
      _
    // Predicated region
    $region14: #{permuted_gru_forward.1} parent=1 // pred_check
      _
    $region15: #{permuted_gru_forward.1} parent=1 // pred_check_branch
      %59 = sbr.rel (0) target = $region17
    $region16: #{permuted_gru_forward.1} parent=1 // pred_region
      %61 = vsyncadd [#allocation8], 0
      %s62 = sshll.u32 %s3, 4
      %s63 = int_to_ptr.hbm [resolvable:$true] %s62
      %s64 = sshll.u32 [#allocation7], 4
      %s65 = int_to_ptr.vmem [resolvable:$true] %s64
      %70 = dma.hbm_to_vmem [thread:$0]  %s63, 512, %s65, [#allocation8], 128, 128, 8
    $region17: #{permuted_gru_forward.1} parent=1 // pred_fallthru
      _
    // Predicated region
    $region18: #{permuted_gru_forward.1} parent=1 // pred_check
      _
    $region19: #{permuted_gru_forward.1} parent=1 // pred_check_branch
      %72 = sbr.rel (0) target = $region21
    $region20: #{permuted_gru_forward.1} parent=1 // pred_region
      %74 = vsyncadd [#allocation8], 0
      %s75 = sshll.u32 %s4, 4
      %s76 = int_to_ptr.hbm [resolvable:$true] %s75
      %s77 = sshll.u32 [#allocation9], 4
      %s78 = int_to_ptr.vmem [resolvable:$true] %s77
      %83 = dma.hbm_to_vmem [thread:$0]  %s76, 512, %s78, [#allocation8], 128, 128, 8
    $region21: #{permuted_gru_forward.1} parent=1 // pred_fallthru
      _
    // Predicated region
    $region22: #{permuted_gru_forward.1} parent=1 // pred_check
      _
    $region23: #{permuted_gru_forward.1} parent=1 // pred_check_branch
      %85 = sbr.rel (0) target = $region25
    $region24: #{permuted_gru_forward.1} parent=1 // pred_region
      %87 = vsyncadd [#allocation11], 0
      %s88 = sshll.u32 %s5, 4
      %s89 = int_to_ptr.hbm [resolvable:$true] %s88
      %s90 = sshll.u32 [#allocation10], 4
      %s91 = int_to_ptr.vmem [resolvable:$true] %s90
      %96 = dma.hbm_to_vmem [thread:$0]  %s89, 512, %s91, [#allocation11], 128, 128, 8
    $region25: #{permuted_gru_forward.1} parent=1 // pred_fallthru
      _
    // Predicated region
    $region26: #{permuted_gru_forward.1} parent=1 // pred_check
      _
    $region27: #{permuted_gru_forward.1} parent=1 // pred_check_branch
      %98 = sbr.rel (0) target = $region29
    $region28: #{permuted_gru_forward.1} parent=1 // pred_region
      %100 = vsyncadd [#allocation11], 0
      %s101 = sshll.u32 %s6, 4
      %s102 = int_to_ptr.hbm [resolvable:$true] %s101
      %s103 = sshll.u32 [#allocation12], 4
      %s104 = int_to_ptr.vmem [resolvable:$true] %s103
      %109 = dma.hbm_to_vmem [thread:$0]  %s102, 512, %s104, [#allocation11], 128, 128, 8
    $region29: #{permuted_gru_forward.1} parent=1 // pred_fallthru
      _
    // Predicated region
    $region30: #{permuted_gru_forward.1} parent=1 // pred_check
      _
    $region31: #{permuted_gru_forward.1} parent=1 // pred_check_branch
      %111 = sbr.rel (0) target = $region33
    $region32: #{permuted_gru_forward.1} parent=1 // pred_region
      %113 = vsyncadd [#allocation14], 0
      %s114 = sshll.u32 %s7, 4
      %s115 = int_to_ptr.hbm [resolvable:$true] %s114
      %s116 = sshll.u32 [#allocation13], 4
      %s117 = int_to_ptr.vmem [resolvable:$true] %s116
      %122 = dma.hbm_to_vmem [thread:$0]  %s115, 512, %s117, [#allocation14], 128, 128, 8
    $region33: #{permuted_gru_forward.1} parent=1 // pred_fallthru
      _
    // Predicated region
    $region34: #{permuted_gru_forward.1} parent=1 // pred_check
      _
    $region35: #{permuted_gru_forward.1} parent=1 // pred_check_branch
      %124 = sbr.rel (0) target = $region37
    $region36: #{permuted_gru_forward.1} parent=1 // pred_region
      %126 = vsyncadd [#allocation14], 0
      %s127 = sshll.u32 %s8, 4
      %s128 = int_to_ptr.hbm [resolvable:$true] %s127
      %s129 = sshll.u32 [#allocation15], 4
      %s130 = int_to_ptr.vmem [resolvable:$true] %s129
      %135 = dma.hbm_to_vmem [thread:$0]  %s128, 256, %s130, [#allocation14], 128, 128, 8
    $region37: #{permuted_gru_forward.1} parent=1 // pred_fallthru
      _
    // Predicated region
    $region38: #{permuted_gru_forward.1} parent=1 // pred_check
      _
    $region39: #{permuted_gru_forward.1} parent=1 // pred_check_branch
      %137 = sbr.rel (0) target = $region41
    $region40: #{permuted_gru_forward.1} parent=1 // pred_region
      %139 = dma.done [#allocation3], 512
    $region41: #{permuted_gru_forward.1} parent=1 // pred_fallthru
      _
    // Predicated region
    $region42: #{permuted_gru_forward.1} parent=1 // pred_check
      _
    $region43: #{permuted_gru_forward.1} parent=1 // pred_check_branch
      %141 = sbr.rel (0) target = $region45
    $region44: #{permuted_gru_forward.1} parent=1 // pred_region
      %143 = dma.done [#allocation5], 512
    $region45: #{permuted_gru_forward.1} parent=1 // pred_fallthru
      _
    // Predicated region
    $region46: #{permuted_gru_forward.1} parent=1 // pred_check
      _
    $region47: #{permuted_gru_forward.1} parent=1 // pred_check_branch
      %145 = sbr.rel (0) target = $region49
    $region48: #{permuted_gru_forward.1} parent=1 // pred_region
      %147 = dma.done [#allocation5], 512
    $region49: #{permuted_gru_forward.1} parent=1 // pred_fallthru
      _
    // Predicated region
    $region50: #{permuted_gru_forward.1} parent=1 // pred_check
      _
    $region51: #{permuted_gru_forward.1} parent=1 // pred_check_branch
      %149 = sbr.rel (0) target = $region53
    $region52: #{permuted_gru_forward.1} parent=1 // pred_region
      %151 = dma.done [#allocation8], 512
    $region53: #{permuted_gru_forward.1} parent=1 // pred_fallthru
      _
    // Predicated region
    $region54: #{permuted_gru_forward.1} parent=1 // pred_check
      _
    $region55: #{permuted_gru_forward.1} parent=1 // pred_check_branch
      %153 = sbr.rel (0) target = $region57
    $region56: #{permuted_gru_forward.1} parent=1 // pred_region
      %155 = dma.done [#allocation8], 512
    $region57: #{permuted_gru_forward.1} parent=1 // pred_fallthru
      _
    // Predicated region
    $region58: #{permuted_gru_forward.1} parent=1 // pred_check
      _
    $region59: #{permuted_gru_forward.1} parent=1 // pred_check_branch
      %157 = sbr.rel (0) target = $region61
    $region60: #{permuted_gru_forward.1} parent=1 // pred_region
      %159 = dma.done [#allocation11], 512
    $region61: #{permuted_gru_forward.1} parent=1 // pred_fallthru
      _
    // Predicated region
    $region62: #{permuted_gru_forward.1} parent=1 // pred_check
      _
    $region63: #{permuted_gru_forward.1} parent=1 // pred_check_branch
      %161 = sbr.rel (0) target = $region65
    $region64: #{permuted_gru_forward.1} parent=1 // pred_region
      %163 = dma.done [#allocation11], 512
    $region65: #{permuted_gru_forward.1} parent=1 // pred_fallthru
      _
    // Predicated region
    $region66: #{permuted_gru_forward.1} parent=1 // pred_check
      _
    $region67: #{permuted_gru_forward.1} parent=1 // pred_check_branch
      %165 = sbr.rel (0) target = $region69
    $region68: #{permuted_gru_forward.1} parent=1 // pred_region
      %167 = dma.done [#allocation14], 512
    $region69: #{permuted_gru_forward.1} parent=1 // pred_fallthru
      _
    // Predicated region
    $region70: #{permuted_gru_forward.1} parent=1 // pred_check
      _
    $region71: #{permuted_gru_forward.1} parent=1 // pred_check_branch
      %169 = sbr.rel (0) target = $region73
    $region72: #{permuted_gru_forward.1} parent=1 // pred_region
      %171 = dma.done [#allocation14], 256
    $region73: #{permuted_gru_forward.1} parent=1 // pred_fallthru
      _
    %v172 = vld [vmem:[#allocation2] sm:$0xff]
    %v173 = vld [vmem:[#allocation2 + $0x8] sm:$0xff]
    %v174 = vld [vmem:[#allocation2 + $0x10] sm:$0xff]
    %v175 = vld [vmem:[#allocation2 + $0x18] sm:$0xff]
    %vm176 = vcmask 261120
    %v177 = vsel %vm176, %v172, -inf
    %v178 = vsel %vm176, %v173, -inf
    %v179 = vsel %vm176, %v174, -inf
    %v180 = vsel %vm176, %v175, -inf
    %v181 = vmax.f32 %v177, %v178
    %v182 = vmax.f32 %v179, %v180
    %v183 = vmax.f32 %v181, %v182
    %184 = vmax.xlane.f32.xlu0 %v183
    %v185 = vpop.xlane.xlu0 %184
    %v186 = vrot.slane %v185, 4
    %v187 = vmax.f32 %v185, %v186
    %v188 = vrot.slane %v187, 2
    %v189 = vmax.f32 %v187, %v188
    %v190 = vrot.slane %v189, 1
    %v191 = vmax.f32 %v189, %v190
    %s192 = vtos %v191
    %v193 = vstv %s192
    %v194 = vsub.f32 %v172, %v193
    %v195 = vsub.f32 %v173, %v193
    %v196 = vsub.f32 %v174, %v193
    %v197 = vsub.f32 %v175, %v193
    %v198 = vmul.f32 %v194, 100.0
    %v199 = vmul.f32 %v195, 100.0
    %v200 = vmul.f32 %v196, 100.0
    %v201 = vmul.f32 %v197, 100.0
    %v202 = vmul.f32 %v198, 1.442695
    %v203 = vpow.pop %v202
    %v204 = vmul.f32 %v199, 1.442695
    %v205 = vpow.pop %v204
    %v206 = vmul.f32 %v200, 1.442695
    %v207 = vpow.pop %v206
    %v208 = vmul.f32 %v201, 1.442695
    %v209 = vpow.pop %v208
    %v210 = vsel %vm176, %v203, 0.0
    %211 = vadd.xlane.f32.xlu0 %v210
    %v212 = vpop.xlane.xlu0 %211
    %v213 = vsel %vm176, %v205, 0.0
    %214 = vadd.xlane.f32.xlu0 %v213
    %v215 = vpop.xlane.xlu0 %214
    %v216 = vsel %vm176, %v207, 0.0
    %217 = vadd.xlane.f32.xlu0 %v216
    %v218 = vpop.xlane.xlu0 %217
    %v219 = vsel %vm176, %v209, 0.0
    %220 = vadd.xlane.f32.xlu0 %v219
    %v221 = vpop.xlane.xlu0 %220
    %v222 = vrcp.pop %v212
    %v223 = vmul.f32 %v212, %v222
    %v224 = vsub.f32 1.0, %v223
    %v225 = vmul.f32 %v222, %v224
    %v226 = vadd.f32 %v222, %v225
    %vm227 = vweird.f32 %v212
    %vm228 = vweird.f32 %v222
    %vm229 = vmor %vm227, %vm228
    %v230 = vsel %vm229, %v222, %v226
    %v231 = vand.u32 2147483647, %v212
    %vm232 = vcmp.eq.f32.partialorder %v231, 8.507059e+37
    %v233 = vand.u32 %v212, 2147483648
    %v234 = vor.u32 1.1754944e-38, %v233
    %v235 = vsel %vm232, %v234, %v230
    %v236 = vrcp.pop %v215
    %v237 = vmul.f32 %v215, %v236
    %v238 = vsub.f32 1.0, %v237
    %v239 = vmul.f32 %v236, %v238
    %v240 = vadd.f32 %v236, %v239
    %vm241 = vweird.f32 %v215
    %vm242 = vweird.f32 %v236
    %vm243 = vmor %vm241, %vm242
    %v244 = vsel %vm243, %v236, %v240
    %v245 = vand.u32 2147483647, %v215
    %vm246 = vcmp.eq.f32.partialorder %v245, 8.507059e+37
    %v247 = vand.u32 %v215, 2147483648
    %v248 = vor.u32 1.1754944e-38, %v247
    %v249 = vsel %vm246, %v248, %v244
    %v250 = vrcp.pop %v218
    %v251 = vmul.f32 %v218, %v250
    %v252 = vsub.f32 1.0, %v251
    %v253 = vmul.f32 %v250, %v252
    %v254 = vadd.f32 %v250, %v253
    %vm255 = vweird.f32 %v218
    %vm256 = vweird.f32 %v250
    %vm257 = vmor %vm255, %vm256
    %v258 = vsel %vm257, %v250, %v254
    %v259 = vand.u32 2147483647, %v218
    %vm260 = vcmp.eq.f32.partialorder %v259, 8.507059e+37
    %v261 = vand.u32 %v218, 2147483648
    %v262 = vor.u32 1.1754944e-38, %v261
    %v263 = vsel %vm260, %v262, %v258
    %v264 = vrcp.pop %v221
    %v265 = vmul.f32 %v221, %v264
    %v266 = vsub.f32 1.0, %v265
    %v267 = vmul.f32 %v264, %v266
    %v268 = vadd.f32 %v264, %v267
    %vm269 = vweird.f32 %v221
    %vm270 = vweird.f32 %v264
    %vm271 = vmor %vm269, %vm270
    %v272 = vsel %vm271, %v264, %v268
    %v273 = vand.u32 2147483647, %v221
    %vm274 = vcmp.eq.f32.partialorder %v273, 8.507059e+37
    %v275 = vand.u32 %v221, 2147483648
    %v276 = vor.u32 1.1754944e-38, %v275
    %v277 = vsel %vm274, %v276, %v272
    %v278 = vmul.f32 %v203, %v235
    %v279 = vmul.f32 %v205, %v249
    %v280 = vmul.f32 %v207, %v263
    %v281 = vmul.f32 %v209, %v277
    %v282 = vsel %vm176, %v278, 0.0
    %v283 = vsel %vm176, %v279, 0.0
    %v284 = vadd.f32 %v282, %v283
    %v285 = vsel %vm176, %v280, 0.0
    %v286 = vadd.f32 %v284, %v285
    %v287 = vsel %vm176, %v281, 0.0
    %v288 = vadd.f32 %v286, %v287
    %v289 = vrot.slane %v288, 4
    %v290 = vadd.f32 %v288, %v289
    %v291 = vrot.slane %v290, 2
    %v292 = vadd.f32 %v290, %v291
    %v293 = vrot.slane %v292, 1
    %v294 = vadd.f32 %v292, %v293
    %v295 = vrcp.pop %v294
    %v296 = vmul.f32 %v294, %v295
    %v297 = vsub.f32 1.0, %v296
    %v298 = vmul.f32 %v295, %v297
    %v299 = vadd.f32 %v295, %v298
    %vm300 = vweird.f32 %v294
    %vm301 = vweird.f32 %v295
    %vm302 = vmor %vm300, %vm301
    %v303 = vsel %vm302, %v295, %v299
    %v304 = vand.u32 2147483647, %v294
    %vm305 = vcmp.eq.f32.partialorder %v304, 8.507059e+37
    %v306 = vand.u32 %v294, 2147483648
    %v307 = vor.u32 1.1754944e-38, %v306
    %v308 = vsel %vm305, %v307, %v303
    %v309 = vmul.f32 %v278, %v308
    %v310 = vmul.f32 %v279, %v308
    %v311 = vmul.f32 %v280, %v308
    %v312 = vmul.f32 %v281, %v308
    %v313 = vsel %vm176, %v309, 0.0
    %314 = vadd.xlane.f32.xlu0 %v313
    %v315 = vpop.xlane.xlu0 %314
    %v316 = vsel %vm176, %v310, 0.0
    %317 = vadd.xlane.f32.xlu0 %v316
    %v318 = vpop.xlane.xlu0 %317
    %v319 = vsel %vm176, %v311, 0.0
    %320 = vadd.xlane.f32.xlu0 %v319
    %v321 = vpop.xlane.xlu0 %320
    %v322 = vsel %vm176, %v312, 0.0
    %323 = vadd.xlane.f32.xlu0 %v322
    %v324 = vpop.xlane.xlu0 %323
    %v325 = vrcp.pop %v315
    %v326 = vmul.f32 %v315, %v325
    %v327 = vsub.f32 1.0, %v326
    %v328 = vmul.f32 %v325, %v327
    %v329 = vadd.f32 %v325, %v328
    %vm330 = vweird.f32 %v315
    %vm331 = vweird.f32 %v325
    %vm332 = vmor %vm330, %vm331
    %v333 = vsel %vm332, %v325, %v329
    %v334 = vand.u32 2147483647, %v315
    %vm335 = vcmp.eq.f32.partialorder %v334, 8.507059e+37
    %v336 = vand.u32 %v315, 2147483648
    %v337 = vor.u32 1.1754944e-38, %v336
    %v338 = vsel %vm335, %v337, %v333
    %v339 = vrcp.pop %v318
    %v340 = vmul.f32 %v318, %v339
    %v341 = vsub.f32 1.0, %v340
    %v342 = vmul.f32 %v339, %v341
    %v343 = vadd.f32 %v339, %v342
    %vm344 = vweird.f32 %v318
    %vm345 = vweird.f32 %v339
    %vm346 = vmor %vm344, %vm345
    %v347 = vsel %vm346, %v339, %v343
    %v348 = vand.u32 2147483647, %v318
    %vm349 = vcmp.eq.f32.partialorder %v348, 8.507059e+37
    %v350 = vand.u32 %v318, 2147483648
    %v351 = vor.u32 1.1754944e-38, %v350
    %v352 = vsel %vm349, %v351, %v347
    %v353 = vrcp.pop %v321
    %v354 = vmul.f32 %v321, %v353
    %v355 = vsub.f32 1.0, %v354
    %v356 = vmul.f32 %v353, %v355
    %v357 = vadd.f32 %v353, %v356
    %vm358 = vweird.f32 %v321
    %vm359 = vweird.f32 %v353
    %vm360 = vmor %vm358, %vm359
    %v361 = vsel %vm360, %v353, %v357
    %v362 = vand.u32 2147483647, %v321
    %vm363 = vcmp.eq.f32.partialorder %v362, 8.507059e+37
    %v364 = vand.u32 %v321, 2147483648
    %v365 = vor.u32 1.1754944e-38, %v364
    %v366 = vsel %vm363, %v365, %v361
    %v367 = vrcp.pop %v324
    %v368 = vmul.f32 %v324, %v367
    %v369 = vsub.f32 1.0, %v368
    %v370 = vmul.f32 %v367, %v369
    %v371 = vadd.f32 %v367, %v370
    %vm372 = vweird.f32 %v324
    %vm373 = vweird.f32 %v367
    %vm374 = vmor %vm372, %vm373
    %v375 = vsel %vm374, %v367, %v371
    %v376 = vand.u32 2147483647, %v324
    %vm377 = vcmp.eq.f32.partialorder %v376, 8.507059e+37
    %v378 = vand.u32 %v324, 2147483648
    %v379 = vor.u32 1.1754944e-38, %v378
    %v380 = vsel %vm377, %v379, %v375
    %v381 = vmul.f32 %v309, %v338
    %v382 = vmul.f32 %v310, %v352
    %v383 = vmul.f32 %v311, %v366
    %v384 = vmul.f32 %v312, %v380
    %v385 = vsel %vm176, %v381, 0.0
    %v386 = vsel %vm176, %v382, 0.0
    %v387 = vadd.f32 %v385, %v386
    %v388 = vsel %vm176, %v383, 0.0
    %v389 = vadd.f32 %v387, %v388
    %v390 = vsel %vm176, %v384, 0.0
    %v391 = vadd.f32 %v389, %v390
    %v392 = vrot.slane %v391, 4
    %v393 = vadd.f32 %v391, %v392
    %v394 = vrot.slane %v393, 2
    %v395 = vadd.f32 %v393, %v394
    %v396 = vrot.slane %v395, 1
    %v397 = vadd.f32 %v395, %v396
    %v398 = vrcp.pop %v397
    %v399 = vmul.f32 %v397, %v398
    %v400 = vsub.f32 1.0, %v399
    %v401 = vmul.f32 %v398, %v400
    %v402 = vadd.f32 %v398, %v401
    %vm403 = vweird.f32 %v397
    %vm404 = vweird.f32 %v398
    %vm405 = vmor %vm403, %vm404
    %v406 = vsel %vm405, %v398, %v402
    %v407 = vand.u32 2147483647, %v397
    %vm408 = vcmp.eq.f32.partialorder %v407, 8.507059e+37
    %v409 = vand.u32 %v397, 2147483648
    %v410 = vor.u32 1.1754944e-38, %v409
    %v411 = vsel %vm408, %v410, %v406
    %v412 = vmul.f32 %v381, %v411
    %v413 = vmul.f32 %v382, %v411
    %v414 = vmul.f32 %v383, %v411
    %v415 = vmul.f32 %v384, %v411
    %v416 = vsel %vm176, %v412, 0.0
    %417 = vadd.xlane.f32.xlu0 %v416
    %v418 = vpop.xlane.xlu0 %417
    %v419 = vsel %vm176, %v413, 0.0
    %420 = vadd.xlane.f32.xlu0 %v419
    %v421 = vpop.xlane.xlu0 %420
    %v422 = vsel %vm176, %v414, 0.0
    %423 = vadd.xlane.f32.xlu0 %v422
    %v424 = vpop.xlane.xlu0 %423
    %v425 = vsel %vm176, %v415, 0.0
    %426 = vadd.xlane.f32.xlu0 %v425
    %v427 = vpop.xlane.xlu0 %426
    %v428 = vrcp.pop %v418
    %v429 = vmul.f32 %v418, %v428
    %v430 = vsub.f32 1.0, %v429
    %v431 = vmul.f32 %v428, %v430
    %v432 = vadd.f32 %v428, %v431
    %vm433 = vweird.f32 %v418
    %vm434 = vweird.f32 %v428
    %vm435 = vmor %vm433, %vm434
    %v436 = vsel %vm435, %v428, %v432
    %v437 = vand.u32 2147483647, %v418
    %vm438 = vcmp.eq.f32.partialorder %v437, 8.507059e+37
    %v439 = vand.u32 %v418, 2147483648
    %v440 = vor.u32 1.1754944e-38, %v439
    %v441 = vsel %vm438, %v440, %v436
    %v442 = vrcp.pop %v421
    %v443 = vmul.f32 %v421, %v442
    %v444 = vsub.f32 1.0, %v443
    %v445 = vmul.f32 %v442, %v444
    %v446 = vadd.f32 %v442, %v445
    %vm447 = vweird.f32 %v421
    %vm448 = vweird.f32 %v442
    %vm449 = vmor %vm447, %vm448
    %v450 = vsel %vm449, %v442, %v446
    %v451 = vand.u32 2147483647, %v421
    %vm452 = vcmp.eq.f32.partialorder %v451, 8.507059e+37
    %v453 = vand.u32 %v421, 2147483648
    %v454 = vor.u32 1.1754944e-38, %v453
    %v455 = vsel %vm452, %v454, %v450
    %v456 = vrcp.pop %v424
    %v457 = vmul.f32 %v424, %v456
    %v458 = vsub.f32 1.0, %v457
    %v459 = vmul.f32 %v456, %v458
    %v460 = vadd.f32 %v456, %v459
    %vm461 = vweird.f32 %v424
    %vm462 = vweird.f32 %v456
    %vm463 = vmor %vm461, %vm462
    %v464 = vsel %vm463, %v456, %v460
    %v465 = vand.u32 2147483647, %v424
    %vm466 = vcmp.eq.f32.partialorder %v465, 8.507059e+37
    %v467 = vand.u32 %v424, 2147483648
    %v468 = vor.u32 1.1754944e-38, %v467
    %v469 = vsel %vm466, %v468, %v464
    %v470 = vrcp.pop %v427
    %v471 = vmul.f32 %v427, %v470
    %v472 = vsub.f32 1.0, %v471
    %v473 = vmul.f32 %v470, %v472
    %v474 = vadd.f32 %v470, %v473
    %vm475 = vweird.f32 %v427
    %vm476 = vweird.f32 %v470
    %vm477 = vmor %vm475, %vm476
    %v478 = vsel %vm477, %v470, %v474
    %v479 = vand.u32 2147483647, %v427
    %vm480 = vcmp.eq.f32.partialorder %v479, 8.507059e+37
    %v481 = vand.u32 %v427, 2147483648
    %v482 = vor.u32 1.1754944e-38, %v481
    %v483 = vsel %vm480, %v482, %v478
    %v484 = vmul.f32 %v412, %v441
    %v485 = vmul.f32 %v413, %v455
    %v486 = vmul.f32 %v414, %v469
    %v487 = vmul.f32 %v415, %v483
    %v488 = vsel %vm176, %v484, 0.0
    %v489 = vsel %vm176, %v485, 0.0
    %v490 = vadd.f32 %v488, %v489
    %v491 = vsel %vm176, %v486, 0.0
    %v492 = vadd.f32 %v490, %v491
    %v493 = vsel %vm176, %v487, 0.0
    %v494 = vadd.f32 %v492, %v493
    %v495 = vrot.slane %v494, 4
    %v496 = vadd.f32 %v494, %v495
    %v497 = vrot.slane %v496, 2
    %v498 = vadd.f32 %v496, %v497
    %v499 = vrot.slane %v498, 1
    %v500 = vadd.f32 %v498, %v499
    %v501 = vrcp.pop %v500
    %v502 = vmul.f32 %v500, %v501
    %v503 = vsub.f32 1.0, %v502
    %v504 = vmul.f32 %v501, %v503
    %v505 = vadd.f32 %v501, %v504
    %vm506 = vweird.f32 %v500
    %vm507 = vweird.f32 %v501
    %vm508 = vmor %vm506, %vm507
    %v509 = vsel %vm508, %v501, %v505
    %v510 = vand.u32 2147483647, %v500
    %vm511 = vcmp.eq.f32.partialorder %v510, 8.507059e+37
    %v512 = vand.u32 %v500, 2147483648
    %v513 = vor.u32 1.1754944e-38, %v512
    %v514 = vsel %vm511, %v513, %v509
    %v515 = vmul.f32 %v484, %v514
    %v516 = vmul.f32 %v485, %v514
    %v517 = vmul.f32 %v486, %v514
    %v518 = vmul.f32 %v487, %v514
    %v519 = vsel %vm176, %v515, 0.0
    %520 = vadd.xlane.f32.xlu0 %v519
    %v521 = vpop.xlane.xlu0 %520
    %v522 = vsel %vm176, %v516, 0.0
    %523 = vadd.xlane.f32.xlu0 %v522
    %v524 = vpop.xlane.xlu0 %523
    %v525 = vsel %vm176, %v517, 0.0
    %526 = vadd.xlane.f32.xlu0 %v525
    %v527 = vpop.xlane.xlu0 %526
    %v528 = vsel %vm176, %v518, 0.0
    %529 = vadd.xlane.f32.xlu0 %v528
    %v530 = vpop.xlane.xlu0 %529
    %v531 = vrcp.pop %v521
    %v532 = vmul.f32 %v521, %v531
    %v533 = vsub.f32 1.0, %v532
    %v534 = vmul.f32 %v531, %v533
    %v535 = vadd.f32 %v531, %v534
    %vm536 = vweird.f32 %v521
    %vm537 = vweird.f32 %v531
    %vm538 = vmor %vm536, %vm537
    %v539 = vsel %vm538, %v531, %v535
    %v540 = vand.u32 2147483647, %v521
    %vm541 = vcmp.eq.f32.partialorder %v540, 8.507059e+37
    %v542 = vand.u32 %v521, 2147483648
    %v543 = vor.u32 1.1754944e-38, %v542
    %v544 = vsel %vm541, %v543, %v539
    %v545 = vrcp.pop %v524
    %v546 = vmul.f32 %v524, %v545
    %v547 = vsub.f32 1.0, %v546
    %v548 = vmul.f32 %v545, %v547
    %v549 = vadd.f32 %v545, %v548
    %vm550 = vweird.f32 %v524
    %vm551 = vweird.f32 %v545
    %vm552 = vmor %vm550, %vm551
    %v553 = vsel %vm552, %v545, %v549
    %v554 = vand.u32 2147483647, %v524
    %vm555 = vcmp.eq.f32.partialorder %v554, 8.507059e+37
    %v556 = vand.u32 %v524, 2147483648
    %v557 = vor.u32 1.1754944e-38, %v556
    %v558 = vsel %vm555, %v557, %v553
    %v559 = vrcp.pop %v527
    %v560 = vmul.f32 %v527, %v559
    %v561 = vsub.f32 1.0, %v560
    %v562 = vmul.f32 %v559, %v561
    %v563 = vadd.f32 %v559, %v562
    %vm564 = vweird.f32 %v527
    %vm565 = vweird.f32 %v559
    %vm566 = vmor %vm564, %vm565
    %v567 = vsel %vm566, %v559, %v563
    %v568 = vand.u32 2147483647, %v527
    %vm569 = vcmp.eq.f32.partialorder %v568, 8.507059e+37
    %v570 = vand.u32 %v527, 2147483648
    %v571 = vor.u32 1.1754944e-38, %v570
    %v572 = vsel %vm569, %v571, %v567
    %v573 = vrcp.pop %v530
    %v574 = vmul.f32 %v530, %v573
    %v575 = vsub.f32 1.0, %v574
    %v576 = vmul.f32 %v573, %v575
    %v577 = vadd.f32 %v573, %v576
    %vm578 = vweird.f32 %v530
    %vm579 = vweird.f32 %v573
    %vm580 = vmor %vm578, %vm579
    %v581 = vsel %vm580, %v573, %v577
    %v582 = vand.u32 2147483647, %v530
    %vm583 = vcmp.eq.f32.partialorder %v582, 8.507059e+37
    %v584 = vand.u32 %v530, 2147483648
    %v585 = vor.u32 1.1754944e-38, %v584
    %v586 = vsel %vm583, %v585, %v581
    %v587 = vmul.f32 %v515, %v544
    %v588 = vmul.f32 %v516, %v558
    %v589 = vmul.f32 %v517, %v572
    %v590 = vmul.f32 %v518, %v586
    %v591 = vsel %vm176, %v587, 0.0
    %v592 = vsel %vm176, %v588, 0.0
    %v593 = vadd.f32 %v591, %v592
    %v594 = vsel %vm176, %v589, 0.0
    %v595 = vadd.f32 %v593, %v594
    %v596 = vsel %vm176, %v590, 0.0
    %v597 = vadd.f32 %v595, %v596
    %v598 = vrot.slane %v597, 4
    %v599 = vadd.f32 %v597, %v598
    %v600 = vrot.slane %v599, 2
    %v601 = vadd.f32 %v599, %v600
    %v602 = vrot.slane %v601, 1
    %v603 = vadd.f32 %v601, %v602
    %v604 = vrcp.pop %v603
    %v605 = vmul.f32 %v603, %v604
    %v606 = vsub.f32 1.0, %v605
    %v607 = vmul.f32 %v604, %v606
    %v608 = vadd.f32 %v604, %v607
    %vm609 = vweird.f32 %v603
    %vm610 = vweird.f32 %v604
    %vm611 = vmor %vm609, %vm610
    %v612 = vsel %vm611, %v604, %v608
    %v613 = vand.u32 2147483647, %v603
    %vm614 = vcmp.eq.f32.partialorder %v613, 8.507059e+37
    %v615 = vand.u32 %v603, 2147483648
    %v616 = vor.u32 1.1754944e-38, %v615
    %v617 = vsel %vm614, %v616, %v612
    %v618 = vmul.f32 %v587, %v617
    %v619 = vmul.f32 %v588, %v617
    %v620 = vmul.f32 %v589, %v617
    %v621 = vmul.f32 %v590, %v617
    %v622 = vsel %vm176, %v618, 0.0
    %623 = vadd.xlane.f32.xlu0 %v622
    %v624 = vpop.xlane.xlu0 %623
    %v625 = vsel %vm176, %v619, 0.0
    %626 = vadd.xlane.f32.xlu0 %v625
    %v627 = vpop.xlane.xlu0 %626
    %v628 = vsel %vm176, %v620, 0.0
    %629 = vadd.xlane.f32.xlu0 %v628
    %v630 = vpop.xlane.xlu0 %629
    %v631 = vsel %vm176, %v621, 0.0
    %632 = vadd.xlane.f32.xlu0 %v631
    %v633 = vpop.xlane.xlu0 %632
    %v634 = vrcp.pop %v624
    %v635 = vmul.f32 %v624, %v634
    %v636 = vsub.f32 1.0, %v635
    %v637 = vmul.f32 %v634, %v636
    %v638 = vadd.f32 %v634, %v637
    %vm639 = vweird.f32 %v624
    %vm640 = vweird.f32 %v634
    %vm641 = vmor %vm639, %vm640
    %v642 = vsel %vm641, %v634, %v638
    %v643 = vand.u32 2147483647, %v624
    %vm644 = vcmp.eq.f32.partialorder %v643, 8.507059e+37
    %v645 = vand.u32 %v624, 2147483648
    %v646 = vor.u32 1.1754944e-38, %v645
    %v647 = vsel %vm644, %v646, %v642
    %v648 = vrcp.pop %v627
    %v649 = vmul.f32 %v627, %v648
    %v650 = vsub.f32 1.0, %v649
    %v651 = vmul.f32 %v648, %v650
    %v652 = vadd.f32 %v648, %v651
    %vm653 = vweird.f32 %v627
    %vm654 = vweird.f32 %v648
    %vm655 = vmor %vm653, %vm654
    %v656 = vsel %vm655, %v648, %v652
    %v657 = vand.u32 2147483647, %v627
    %vm658 = vcmp.eq.f32.partialorder %v657, 8.507059e+37
    %v659 = vand.u32 %v627, 2147483648
    %v660 = vor.u32 1.1754944e-38, %v659
    %v661 = vsel %vm658, %v660, %v656
    %v662 = vrcp.pop %v630
    %v663 = vmul.f32 %v630, %v662
    %v664 = vsub.f32 1.0, %v663
    %v665 = vmul.f32 %v662, %v664
    %v666 = vadd.f32 %v662, %v665
    %vm667 = vweird.f32 %v630
    %vm668 = vweird.f32 %v662
    %vm669 = vmor %vm667, %vm668
    %v670 = vsel %vm669, %v662, %v666
    %v671 = vand.u32 2147483647, %v630
    %vm672 = vcmp.eq.f32.partialorder %v671, 8.507059e+37
    %v673 = vand.u32 %v630, 2147483648
    %v674 = vor.u32 1.1754944e-38, %v673
    %v675 = vsel %vm672, %v674, %v670
    %v676 = vrcp.pop %v633
    %v677 = vmul.f32 %v633, %v676
    %v678 = vsub.f32 1.0, %v677
    %v679 = vmul.f32 %v676, %v678
    %v680 = vadd.f32 %v676, %v679
    %vm681 = vweird.f32 %v633
    %vm682 = vweird.f32 %v676
    %vm683 = vmor %vm681, %vm682
    %v684 = vsel %vm683, %v676, %v680
    %v685 = vand.u32 2147483647, %v633
    %vm686 = vcmp.eq.f32.partialorder %v685, 8.507059e+37
    %v687 = vand.u32 %v633, 2147483648
    %v688 = vor.u32 1.1754944e-38, %v687
    %v689 = vsel %vm686, %v688, %v684
    %v690 = vmul.f32 %v618, %v647
    %v691 = vmul.f32 %v619, %v661
    %v692 = vmul.f32 %v620, %v675
    %v693 = vmul.f32 %v621, %v689
    %v694 = vsel %vm176, %v690, 0.0
    %v695 = vsel %vm176, %v691, 0.0
    %v696 = vadd.f32 %v694, %v695
    %v697 = vsel %vm176, %v692, 0.0
    %v698 = vadd.f32 %v696, %v697
    %v699 = vsel %vm176, %v693, 0.0
    %v700 = vadd.f32 %v698, %v699
    %v701 = vrot.slane %v700, 4
    %v702 = vadd.f32 %v700, %v701
    %v703 = vrot.slane %v702, 2
    %v704 = vadd.f32 %v702, %v703
    %v705 = vrot.slane %v704, 1
    %v706 = vadd.f32 %v704, %v705
    %v707 = vrcp.pop %v706
    %v708 = vmul.f32 %v706, %v707
    %v709 = vsub.f32 1.0, %v708
    %v710 = vmul.f32 %v707, %v709
    %v711 = vadd.f32 %v707, %v710
    %vm712 = vweird.f32 %v706
    %vm713 = vweird.f32 %v707
    %vm714 = vmor %vm712, %vm713
    %v715 = vsel %vm714, %v707, %v711
    %v716 = vand.u32 2147483647, %v706
    %vm717 = vcmp.eq.f32.partialorder %v716, 8.507059e+37
    %v718 = vand.u32 %v706, 2147483648
    %v719 = vor.u32 1.1754944e-38, %v718
    %v720 = vsel %vm717, %v719, %v715
    %v721 = vmul.f32 %v690, %v720
    %v722 = vmul.f32 %v691, %v720
    %v723 = vmul.f32 %v692, %v720
    %v724 = vmul.f32 %v693, %v720
    %v725 = vsel %vm176, %v721, 0.0
    %726 = vadd.xlane.f32.xlu0 %v725
    %v727 = vpop.xlane.xlu0 %726
    %v728 = vsel %vm176, %v722, 0.0
    %729 = vadd.xlane.f32.xlu0 %v728
    %v730 = vpop.xlane.xlu0 %729
    %v731 = vsel %vm176, %v723, 0.0
    %732 = vadd.xlane.f32.xlu0 %v731
    %v733 = vpop.xlane.xlu0 %732
    %v734 = vsel %vm176, %v724, 0.0
    %735 = vadd.xlane.f32.xlu0 %v734
    %v736 = vpop.xlane.xlu0 %735
    %v737 = vrcp.pop %v727
    %v738 = vmul.f32 %v727, %v737
    %v739 = vsub.f32 1.0, %v738
    %v740 = vmul.f32 %v737, %v739
    %v741 = vadd.f32 %v737, %v740
    %vm742 = vweird.f32 %v727
    %vm743 = vweird.f32 %v737
    %vm744 = vmor %vm742, %vm743
    %v745 = vsel %vm744, %v737, %v741
    %v746 = vand.u32 2147483647, %v727
    %vm747 = vcmp.eq.f32.partialorder %v746, 8.507059e+37
    %v748 = vand.u32 %v727, 2147483648
    %v749 = vor.u32 1.1754944e-38, %v748
    %v750 = vsel %vm747, %v749, %v745
    %v751 = vrcp.pop %v730
    %v752 = vmul.f32 %v730, %v751
    %v753 = vsub.f32 1.0, %v752
    %v754 = vmul.f32 %v751, %v753
    %v755 = vadd.f32 %v751, %v754
    %vm756 = vweird.f32 %v730
    %vm757 = vweird.f32 %v751
    %vm758 = vmor %vm756, %vm757
    %v759 = vsel %vm758, %v751, %v755
    %v760 = vand.u32 2147483647, %v730
    %vm761 = vcmp.eq.f32.partialorder %v760, 8.507059e+37
    %v762 = vand.u32 %v730, 2147483648
    %v763 = vor.u32 1.1754944e-38, %v762
    %v764 = vsel %vm761, %v763, %v759
    %v765 = vrcp.pop %v733
    %v766 = vmul.f32 %v733, %v765
    %v767 = vsub.f32 1.0, %v766
    %v768 = vmul.f32 %v765, %v767
    %v769 = vadd.f32 %v765, %v768
    %vm770 = vweird.f32 %v733
    %vm771 = vweird.f32 %v765
    %vm772 = vmor %vm770, %vm771
    %v773 = vsel %vm772, %v765, %v769
    %v774 = vand.u32 2147483647, %v733
    %vm775 = vcmp.eq.f32.partialorder %v774, 8.507059e+37
    %v776 = vand.u32 %v733, 2147483648
    %v777 = vor.u32 1.1754944e-38, %v776
    %v778 = vsel %vm775, %v777, %v773
    %v779 = vrcp.pop %v736
    %v780 = vmul.f32 %v736, %v779
    %v781 = vsub.f32 1.0, %v780
    %v782 = vmul.f32 %v779, %v781
    %v783 = vadd.f32 %v779, %v782
    %vm784 = vweird.f32 %v736
    %vm785 = vweird.f32 %v779
    %vm786 = vmor %vm784, %vm785
    %v787 = vsel %vm786, %v779, %v783
    %v788 = vand.u32 2147483647, %v736
    %vm789 = vcmp.eq.f32.partialorder %v788, 8.507059e+37
    %v790 = vand.u32 %v736, 2147483648
    %v791 = vor.u32 1.1754944e-38, %v790
    %v792 = vsel %vm789, %v791, %v787
    %v793 = vmul.f32 %v721, %v750
    %v794 = vmul.f32 %v722, %v764
    %v795 = vmul.f32 %v723, %v778
    %v796 = vmul.f32 %v724, %v792
    %v797 = vsel %vm176, %v793, 0.0
    %v798 = vsel %vm176, %v794, 0.0
    %v799 = vadd.f32 %v797, %v798
    %v800 = vsel %vm176, %v795, 0.0
    %v801 = vadd.f32 %v799, %v800
    %v802 = vsel %vm176, %v796, 0.0
    %v803 = vadd.f32 %v801, %v802
    %v804 = vrot.slane %v803, 4
    %v805 = vadd.f32 %v803, %v804
    %v806 = vrot.slane %v805, 2
    %v807 = vadd.f32 %v805, %v806
    %v808 = vrot.slane %v807, 1
    %v809 = vadd.f32 %v807, %v808
    %v810 = vrcp.pop %v809
    %v811 = vmul.f32 %v809, %v810
    %v812 = vsub.f32 1.0, %v811
    %v813 = vmul.f32 %v810, %v812
    %v814 = vadd.f32 %v810, %v813
    %vm815 = vweird.f32 %v809
    %vm816 = vweird.f32 %v810
    %vm817 = vmor %vm815, %vm816
    %v818 = vsel %vm817, %v810, %v814
    %v819 = vand.u32 2147483647, %v809
    %vm820 = vcmp.eq.f32.partialorder %v819, 8.507059e+37
    %v821 = vand.u32 %v809, 2147483648
    %v822 = vor.u32 1.1754944e-38, %v821
    %v823 = vsel %vm820, %v822, %v818
    %v824 = vmul.f32 %v793, %v823
    %v825 = vmul.f32 %v794, %v823
    %v826 = vmul.f32 %v795, %v823
    %v827 = vmul.f32 %v796, %v823
    %v828 = vsel %vm176, %v824, 0.0
    %829 = vadd.xlane.f32.xlu0 %v828
    %v830 = vpop.xlane.xlu0 %829
    %v831 = vsel %vm176, %v825, 0.0
    %832 = vadd.xlane.f32.xlu0 %v831
    %v833 = vpop.xlane.xlu0 %832
    %v834 = vsel %vm176, %v826, 0.0
    %835 = vadd.xlane.f32.xlu0 %v834
    %v836 = vpop.xlane.xlu0 %835
    %v837 = vsel %vm176, %v827, 0.0
    %838 = vadd.xlane.f32.xlu0 %v837
    %v839 = vpop.xlane.xlu0 %838
    %v840 = vrcp.pop %v830
    %v841 = vmul.f32 %v830, %v840
    %v842 = vsub.f32 1.0, %v841
    %v843 = vmul.f32 %v840, %v842
    %v844 = vadd.f32 %v840, %v843
    %vm845 = vweird.f32 %v830
    %vm846 = vweird.f32 %v840
    %vm847 = vmor %vm845, %vm846
    %v848 = vsel %vm847, %v840, %v844
    %v849 = vand.u32 2147483647, %v830
    %vm850 = vcmp.eq.f32.partialorder %v849, 8.507059e+37
    %v851 = vand.u32 %v830, 2147483648
    %v852 = vor.u32 1.1754944e-38, %v851
    %v853 = vsel %vm850, %v852, %v848
    %v854 = vrcp.pop %v833
    %v855 = vmul.f32 %v833, %v854
    %v856 = vsub.f32 1.0, %v855
    %v857 = vmul.f32 %v854, %v856
    %v858 = vadd.f32 %v854, %v857
    %vm859 = vweird.f32 %v833
    %vm860 = vweird.f32 %v854
    %vm861 = vmor %vm859, %vm860
    %v862 = vsel %vm861, %v854, %v858
    %v863 = vand.u32 2147483647, %v833
    %vm864 = vcmp.eq.f32.partialorder %v863, 8.507059e+37
    %v865 = vand.u32 %v833, 2147483648
    %v866 = vor.u32 1.1754944e-38, %v865
    %v867 = vsel %vm864, %v866, %v862
    %v868 = vrcp.pop %v836
    %v869 = vmul.f32 %v836, %v868
    %v870 = vsub.f32 1.0, %v869
    %v871 = vmul.f32 %v868, %v870
    %v872 = vadd.f32 %v868, %v871
    %vm873 = vweird.f32 %v836
    %vm874 = vweird.f32 %v868
    %vm875 = vmor %vm873, %vm874
    %v876 = vsel %vm875, %v868, %v872
    %v877 = vand.u32 2147483647, %v836
    %vm878 = vcmp.eq.f32.partialorder %v877, 8.507059e+37
    %v879 = vand.u32 %v836, 2147483648
    %v880 = vor.u32 1.1754944e-38, %v879
    %v881 = vsel %vm878, %v880, %v876
    %v882 = vrcp.pop %v839
    %v883 = vmul.f32 %v839, %v882
    %v884 = vsub.f32 1.0, %v883
    %v885 = vmul.f32 %v882, %v884
    %v886 = vadd.f32 %v882, %v885
    %vm887 = vweird.f32 %v839
    %vm888 = vweird.f32 %v882
    %vm889 = vmor %vm887, %vm888
    %v890 = vsel %vm889, %v882, %v886
    %v891 = vand.u32 2147483647, %v839
    %vm892 = vcmp.eq.f32.partialorder %v891, 8.507059e+37
    %v893 = vand.u32 %v839, 2147483648
    %v894 = vor.u32 1.1754944e-38, %v893
    %v895 = vsel %vm892, %v894, %v890
    %v896 = vmul.f32 %v824, %v853
    %v897 = vmul.f32 %v825, %v867
    %v898 = vmul.f32 %v826, %v881
    %v899 = vmul.f32 %v827, %v895
    %v900 = vsel %vm176, %v896, 0.0
    %v901 = vsel %vm176, %v897, 0.0
    %v902 = vadd.f32 %v900, %v901
    %v903 = vsel %vm176, %v898, 0.0
    %v904 = vadd.f32 %v902, %v903
    %v905 = vsel %vm176, %v899, 0.0
    %v906 = vadd.f32 %v904, %v905
    %v907 = vrot.slane %v906, 4
    %v908 = vadd.f32 %v906, %v907
    %v909 = vrot.slane %v908, 2
    %v910 = vadd.f32 %v908, %v909
    %v911 = vrot.slane %v910, 1
    %v912 = vadd.f32 %v910, %v911
    %v913 = vrcp.pop %v912
    %v914 = vmul.f32 %v912, %v913
    %v915 = vsub.f32 1.0, %v914
    %v916 = vmul.f32 %v913, %v915
    %v917 = vadd.f32 %v913, %v916
    %vm918 = vweird.f32 %v912
    %vm919 = vweird.f32 %v913
    %vm920 = vmor %vm918, %vm919
    %v921 = vsel %vm920, %v913, %v917
    %v922 = vand.u32 2147483647, %v912
    %vm923 = vcmp.eq.f32.partialorder %v922, 8.507059e+37
    %v924 = vand.u32 %v912, 2147483648
    %v925 = vor.u32 1.1754944e-38, %v924
    %v926 = vsel %vm923, %v925, %v921
    %v927 = vmul.f32 %v896, %v926
    %v928 = vmul.f32 %v897, %v926
    %v929 = vmul.f32 %v898, %v926
    %v930 = vmul.f32 %v899, %v926
    %v931 = vsel %vm176, %v927, 0.0
    %932 = vadd.xlane.f32.xlu0 %v931
    %v933 = vpop.xlane.xlu0 %932
    %v934 = vsel %vm176, %v928, 0.0
    %935 = vadd.xlane.f32.xlu0 %v934
    %v936 = vpop.xlane.xlu0 %935
    %v937 = vsel %vm176, %v929, 0.0
    %938 = vadd.xlane.f32.xlu0 %v937
    %v939 = vpop.xlane.xlu0 %938
    %v940 = vsel %vm176, %v930, 0.0
    %941 = vadd.xlane.f32.xlu0 %v940
    %v942 = vpop.xlane.xlu0 %941
    %v943 = vrcp.pop %v933
    %v944 = vmul.f32 %v933, %v943
    %v945 = vsub.f32 1.0, %v944
    %v946 = vmul.f32 %v943, %v945
    %v947 = vadd.f32 %v943, %v946
    %vm948 = vweird.f32 %v933
    %vm949 = vweird.f32 %v943
    %vm950 = vmor %vm948, %vm949
    %v951 = vsel %vm950, %v943, %v947
    %v952 = vand.u32 2147483647, %v933
    %vm953 = vcmp.eq.f32.partialorder %v952, 8.507059e+37
    %v954 = vand.u32 %v933, 2147483648
    %v955 = vor.u32 1.1754944e-38, %v954
    %v956 = vsel %vm953, %v955, %v951
    %v957 = vrcp.pop %v936
    %v958 = vmul.f32 %v936, %v957
    %v959 = vsub.f32 1.0, %v958
    %v960 = vmul.f32 %v957, %v959
    %v961 = vadd.f32 %v957, %v960
    %vm962 = vweird.f32 %v936
    %vm963 = vweird.f32 %v957
    %vm964 = vmor %vm962, %vm963
    %v965 = vsel %vm964, %v957, %v961
    %v966 = vand.u32 2147483647, %v936
    %vm967 = vcmp.eq.f32.partialorder %v966, 8.507059e+37
    %v968 = vand.u32 %v936, 2147483648
    %v969 = vor.u32 1.1754944e-38, %v968
    %v970 = vsel %vm967, %v969, %v965
    %v971 = vrcp.pop %v939
    %v972 = vmul.f32 %v939, %v971
    %v973 = vsub.f32 1.0, %v972
    %v974 = vmul.f32 %v971, %v973
    %v975 = vadd.f32 %v971, %v974
    %vm976 = vweird.f32 %v939
    %vm977 = vweird.f32 %v971
    %vm978 = vmor %vm976, %vm977
    %v979 = vsel %vm978, %v971, %v975
    %v980 = vand.u32 2147483647, %v939
    %vm981 = vcmp.eq.f32.partialorder %v980, 8.507059e+37
    %v982 = vand.u32 %v939, 2147483648
    %v983 = vor.u32 1.1754944e-38, %v982
    %v984 = vsel %vm981, %v983, %v979
    %v985 = vrcp.pop %v942
    %v986 = vmul.f32 %v942, %v985
    %v987 = vsub.f32 1.0, %v986
    %v988 = vmul.f32 %v985, %v987
    %v989 = vadd.f32 %v985, %v988
    %vm990 = vweird.f32 %v942
    %vm991 = vweird.f32 %v985
    %vm992 = vmor %vm990, %vm991
    %v993 = vsel %vm992, %v985, %v989
    %v994 = vand.u32 2147483647, %v942
    %vm995 = vcmp.eq.f32.partialorder %v994, 8.507059e+37
    %v996 = vand.u32 %v942, 2147483648
    %v997 = vor.u32 1.1754944e-38, %v996
    %v998 = vsel %vm995, %v997, %v993
    %v999 = vmul.f32 %v927, %v956
    %v1000 = vmul.f32 %v928, %v970
    %v1001 = vmul.f32 %v929, %v984
    %v1002 = vmul.f32 %v930, %v998
    %v1003 = vsel %vm176, %v999, 0.0
    %v1004 = vsel %vm176, %v1000, 0.0
    %v1005 = vadd.f32 %v1003, %v1004
    %v1006 = vsel %vm176, %v1001, 0.0
    %v1007 = vadd.f32 %v1005, %v1006
    %v1008 = vsel %vm176, %v1002, 0.0
    %v1009 = vadd.f32 %v1007, %v1008
    %v1010 = vrot.slane %v1009, 4
    %v1011 = vadd.f32 %v1009, %v1010
    %v1012 = vrot.slane %v1011, 2
    %v1013 = vadd.f32 %v1011, %v1012
    %v1014 = vrot.slane %v1013, 1
    %v1015 = vadd.f32 %v1013, %v1014
    %v1016 = vrcp.pop %v1015
    %v1017 = vmul.f32 %v1015, %v1016
    %v1018 = vsub.f32 1.0, %v1017
    %v1019 = vmul.f32 %v1016, %v1018
    %v1020 = vadd.f32 %v1016, %v1019
    %vm1021 = vweird.f32 %v1015
    %vm1022 = vweird.f32 %v1016
    %vm1023 = vmor %vm1021, %vm1022
    %v1024 = vsel %vm1023, %v1016, %v1020
    %v1025 = vand.u32 2147483647, %v1015
    %vm1026 = vcmp.eq.f32.partialorder %v1025, 8.507059e+37
    %v1027 = vand.u32 %v1015, 2147483648
    %v1028 = vor.u32 1.1754944e-38, %v1027
    %v1029 = vsel %vm1026, %v1028, %v1024
    %v1030 = vmul.f32 %v999, %v1029
    %v1031 = vmul.f32 %v1000, %v1029
    %v1032 = vmul.f32 %v1001, %v1029
    %v1033 = vmul.f32 %v1002, %v1029
    %v1034 = vsel %vm176, %v1030, 0.0
    %1035 = vadd.xlane.f32.xlu0 %v1034
    %v1036 = vpop.xlane.xlu0 %1035
    %v1037 = vsel %vm176, %v1031, 0.0
    %1038 = vadd.xlane.f32.xlu0 %v1037
    %v1039 = vpop.xlane.xlu0 %1038
    %v1040 = vsel %vm176, %v1032, 0.0
    %1041 = vadd.xlane.f32.xlu0 %v1040
    %v1042 = vpop.xlane.xlu0 %1041
    %v1043 = vsel %vm176, %v1033, 0.0
    %1044 = vadd.xlane.f32.xlu0 %v1043
    %v1045 = vpop.xlane.xlu0 %1044
    %v1046 = vrcp.pop %v1036
    %v1047 = vmul.f32 %v1036, %v1046
    %v1048 = vsub.f32 1.0, %v1047
    %v1049 = vmul.f32 %v1046, %v1048
    %v1050 = vadd.f32 %v1046, %v1049
    %vm1051 = vweird.f32 %v1036
    %vm1052 = vweird.f32 %v1046
    %vm1053 = vmor %vm1051, %vm1052
    %v1054 = vsel %vm1053, %v1046, %v1050
    %v1055 = vand.u32 2147483647, %v1036
    %vm1056 = vcmp.eq.f32.partialorder %v1055, 8.507059e+37
    %v1057 = vand.u32 %v1036, 2147483648
    %v1058 = vor.u32 1.1754944e-38, %v1057
    %v1059 = vsel %vm1056, %v1058, %v1054
    %v1060 = vrcp.pop %v1039
    %v1061 = vmul.f32 %v1039, %v1060
    %v1062 = vsub.f32 1.0, %v1061
    %v1063 = vmul.f32 %v1060, %v1062
    %v1064 = vadd.f32 %v1060, %v1063
    %vm1065 = vweird.f32 %v1039
    %vm1066 = vweird.f32 %v1060
    %vm1067 = vmor %vm1065, %vm1066
    %v1068 = vsel %vm1067, %v1060, %v1064
    %v1069 = vand.u32 2147483647, %v1039
    %vm1070 = vcmp.eq.f32.partialorder %v1069, 8.507059e+37
    %v1071 = vand.u32 %v1039, 2147483648
    %v1072 = vor.u32 1.1754944e-38, %v1071
    %v1073 = vsel %vm1070, %v1072, %v1068
    %v1074 = vrcp.pop %v1042
    %v1075 = vmul.f32 %v1042, %v1074
    %v1076 = vsub.f32 1.0, %v1075
    %v1077 = vmul.f32 %v1074, %v1076
    %v1078 = vadd.f32 %v1074, %v1077
    %vm1079 = vweird.f32 %v1042
    %vm1080 = vweird.f32 %v1074
    %vm1081 = vmor %vm1079, %vm1080
    %v1082 = vsel %vm1081, %v1074, %v1078
    %v1083 = vand.u32 2147483647, %v1042
    %vm1084 = vcmp.eq.f32.partialorder %v1083, 8.507059e+37
    %v1085 = vand.u32 %v1042, 2147483648
    %v1086 = vor.u32 1.1754944e-38, %v1085
    %v1087 = vsel %vm1084, %v1086, %v1082
    %v1088 = vrcp.pop %v1045
    %v1089 = vmul.f32 %v1045, %v1088
    %v1090 = vsub.f32 1.0, %v1089
    %v1091 = vmul.f32 %v1088, %v1090
    %v1092 = vadd.f32 %v1088, %v1091
    %vm1093 = vweird.f32 %v1045
    %vm1094 = vweird.f32 %v1088
    %vm1095 = vmor %vm1093, %vm1094
    %v1096 = vsel %vm1095, %v1088, %v1092
    %v1097 = vand.u32 2147483647, %v1045
    %vm1098 = vcmp.eq.f32.partialorder %v1097, 8.507059e+37
    %v1099 = vand.u32 %v1045, 2147483648
    %v1100 = vor.u32 1.1754944e-38, %v1099
    %v1101 = vsel %vm1098, %v1100, %v1096
    %v1102 = vmul.f32 %v1030, %v1059
    %v1103 = vmul.f32 %v1031, %v1073
    %v1104 = vmul.f32 %v1032, %v1087
    %v1105 = vmul.f32 %v1033, %v1101
    %v1106 = vsel %vm176, %v1102, 0.0
    %v1107 = vsel %vm176, %v1103, 0.0
    %v1108 = vadd.f32 %v1106, %v1107
    %v1109 = vsel %vm176, %v1104, 0.0
    %v1110 = vadd.f32 %v1108, %v1109
    %v1111 = vsel %vm176, %v1105, 0.0
    %v1112 = vadd.f32 %v1110, %v1111
    %v1113 = vrot.slane %v1112, 4
    %v1114 = vadd.f32 %v1112, %v1113
    %v1115 = vrot.slane %v1114, 2
    %v1116 = vadd.f32 %v1114, %v1115
    %v1117 = vrot.slane %v1116, 1
    %v1118 = vadd.f32 %v1116, %v1117
    %v1119 = vrcp.pop %v1118
    %v1120 = vmul.f32 %v1118, %v1119
    %v1121 = vsub.f32 1.0, %v1120
    %v1122 = vmul.f32 %v1119, %v1121
    %v1123 = vadd.f32 %v1119, %v1122
    %vm1124 = vweird.f32 %v1118
    %vm1125 = vweird.f32 %v1119
    %vm1126 = vmor %vm1124, %vm1125
    %v1127 = vsel %vm1126, %v1119, %v1123
    %v1128 = vand.u32 2147483647, %v1118
    %vm1129 = vcmp.eq.f32.partialorder %v1128, 8.507059e+37
    %v1130 = vand.u32 %v1118, 2147483648
    %v1131 = vor.u32 1.1754944e-38, %v1130
    %v1132 = vsel %vm1129, %v1131, %v1127
    %v1133 = vmul.f32 %v1102, %v1132
    %v1134 = vmul.f32 %v1103, %v1132
    %v1135 = vmul.f32 %v1104, %v1132
    %v1136 = vmul.f32 %v1105, %v1132
    %v1137 = vsel %vm176, %v1133, 0.0
    %1138 = vadd.xlane.f32.xlu0 %v1137
    %v1139 = vpop.xlane.xlu0 %1138
    %v1140 = vsel %vm176, %v1134, 0.0
    %1141 = vadd.xlane.f32.xlu0 %v1140
    %v1142 = vpop.xlane.xlu0 %1141
    %v1143 = vsel %vm176, %v1135, 0.0
    %1144 = vadd.xlane.f32.xlu0 %v1143
    %v1145 = vpop.xlane.xlu0 %1144
    %v1146 = vsel %vm176, %v1136, 0.0
    %1147 = vadd.xlane.f32.xlu0 %v1146
    %v1148 = vpop.xlane.xlu0 %1147
    %v1149 = vrcp.pop %v1139
    %v1150 = vmul.f32 %v1139, %v1149
    %v1151 = vsub.f32 1.0, %v1150
    %v1152 = vmul.f32 %v1149, %v1151
    %v1153 = vadd.f32 %v1149, %v1152
    %vm1154 = vweird.f32 %v1139
    %vm1155 = vweird.f32 %v1149
    %vm1156 = vmor %vm1154, %vm1155
    %v1157 = vsel %vm1156, %v1149, %v1153
    %v1158 = vand.u32 2147483647, %v1139
    %vm1159 = vcmp.eq.f32.partialorder %v1158, 8.507059e+37
    %v1160 = vand.u32 %v1139, 2147483648
    %v1161 = vor.u32 1.1754944e-38, %v1160
    %v1162 = vsel %vm1159, %v1161, %v1157
    %v1163 = vrcp.pop %v1142
    %v1164 = vmul.f32 %v1142, %v1163
    %v1165 = vsub.f32 1.0, %v1164
    %v1166 = vmul.f32 %v1163, %v1165
    %v1167 = vadd.f32 %v1163, %v1166
    %vm1168 = vweird.f32 %v1142
    %vm1169 = vweird.f32 %v1163
    %vm1170 = vmor %vm1168, %vm1169
    %v1171 = vsel %vm1170, %v1163, %v1167
    %v1172 = vand.u32 2147483647, %v1142
    %vm1173 = vcmp.eq.f32.partialorder %v1172, 8.507059e+37
    %v1174 = vand.u32 %v1142, 2147483648
    %v1175 = vor.u32 1.1754944e-38, %v1174
    %v1176 = vsel %vm1173, %v1175, %v1171
    %v1177 = vrcp.pop %v1145
    %v1178 = vmul.f32 %v1145, %v1177
    %v1179 = vsub.f32 1.0, %v1178
    %v1180 = vmul.f32 %v1177, %v1179
    %v1181 = vadd.f32 %v1177, %v1180
    %vm1182 = vweird.f32 %v1145
    %vm1183 = vweird.f32 %v1177
    %vm1184 = vmor %vm1182, %vm1183
    %v1185 = vsel %vm1184, %v1177, %v1181
    %v1186 = vand.u32 2147483647, %v1145
    %vm1187 = vcmp.eq.f32.partialorder %v1186, 8.507059e+37
    %v1188 = vand.u32 %v1145, 2147483648
    %v1189 = vor.u32 1.1754944e-38, %v1188
    %v1190 = vsel %vm1187, %v1189, %v1185
    %v1191 = vrcp.pop %v1148
    %v1192 = vmul.f32 %v1148, %v1191
    %v1193 = vsub.f32 1.0, %v1192
    %v1194 = vmul.f32 %v1191, %v1193
    %v1195 = vadd.f32 %v1191, %v1194
    %vm1196 = vweird.f32 %v1148
    %vm1197 = vweird.f32 %v1191
    %vm1198 = vmor %vm1196, %vm1197
    %v1199 = vsel %vm1198, %v1191, %v1195
    %v1200 = vand.u32 2147483647, %v1148
    %vm1201 = vcmp.eq.f32.partialorder %v1200, 8.507059e+37
    %v1202 = vand.u32 %v1148, 2147483648
    %v1203 = vor.u32 1.1754944e-38, %v1202
    %v1204 = vsel %vm1201, %v1203, %v1199
    %v1205 = vmul.f32 %v1133, %v1162
    %v1206 = vmul.f32 %v1134, %v1176
    %v1207 = vmul.f32 %v1135, %v1190
    %v1208 = vmul.f32 %v1136, %v1204
    %v1209 = vsel %vm176, %v1205, 0.0
    %v1210 = vsel %vm176, %v1206, 0.0
    %v1211 = vadd.f32 %v1209, %v1210
    %v1212 = vsel %vm176, %v1207, 0.0
    %v1213 = vadd.f32 %v1211, %v1212
    %v1214 = vsel %vm176, %v1208, 0.0
    %v1215 = vadd.f32 %v1213, %v1214
    %v1216 = vrot.slane %v1215, 4
    %v1217 = vadd.f32 %v1215, %v1216
    %v1218 = vrot.slane %v1217, 2
    %v1219 = vadd.f32 %v1217, %v1218
    %v1220 = vrot.slane %v1219, 1
    %v1221 = vadd.f32 %v1219, %v1220
    %v1222 = vrcp.pop %v1221
    %v1223 = vmul.f32 %v1221, %v1222
    %v1224 = vsub.f32 1.0, %v1223
    %v1225 = vmul.f32 %v1222, %v1224
    %v1226 = vadd.f32 %v1222, %v1225
    %vm1227 = vweird.f32 %v1221
    %vm1228 = vweird.f32 %v1222
    %vm1229 = vmor %vm1227, %vm1228
    %v1230 = vsel %vm1229, %v1222, %v1226
    %v1231 = vand.u32 2147483647, %v1221
    %vm1232 = vcmp.eq.f32.partialorder %v1231, 8.507059e+37
    %v1233 = vand.u32 %v1221, 2147483648
    %v1234 = vor.u32 1.1754944e-38, %v1233
    %v1235 = vsel %vm1232, %v1234, %v1230
    %v1236 = vmul.f32 %v1205, %v1235
    %v1237 = vmul.f32 %v1206, %v1235
    %v1238 = vmul.f32 %v1207, %v1235
    %v1239 = vmul.f32 %v1208, %v1235
    %v1240 = vsel %vm176, %v1236, 0.0
    %1241 = vadd.xlane.f32.xlu0 %v1240
    %v1242 = vpop.xlane.xlu0 %1241
    %v1243 = vsel %vm176, %v1237, 0.0
    %1244 = vadd.xlane.f32.xlu0 %v1243
    %v1245 = vpop.xlane.xlu0 %1244
    %v1246 = vsel %vm176, %v1238, 0.0
    %1247 = vadd.xlane.f32.xlu0 %v1246
    %v1248 = vpop.xlane.xlu0 %1247
    %v1249 = vsel %vm176, %v1239, 0.0
    %1250 = vadd.xlane.f32.xlu0 %v1249
    %v1251 = vpop.xlane.xlu0 %1250
    %v1252 = vrcp.pop %v1242
    %v1253 = vmul.f32 %v1242, %v1252
    %v1254 = vsub.f32 1.0, %v1253
    %v1255 = vmul.f32 %v1252, %v1254
    %v1256 = vadd.f32 %v1252, %v1255
    %vm1257 = vweird.f32 %v1242
    %vm1258 = vweird.f32 %v1252
    %vm1259 = vmor %vm1257, %vm1258
    %v1260 = vsel %vm1259, %v1252, %v1256
    %v1261 = vand.u32 2147483647, %v1242
    %vm1262 = vcmp.eq.f32.partialorder %v1261, 8.507059e+37
    %v1263 = vand.u32 %v1242, 2147483648
    %v1264 = vor.u32 1.1754944e-38, %v1263
    %v1265 = vsel %vm1262, %v1264, %v1260
    %v1266 = vrcp.pop %v1245
    %v1267 = vmul.f32 %v1245, %v1266
    %v1268 = vsub.f32 1.0, %v1267
    %v1269 = vmul.f32 %v1266, %v1268
    %v1270 = vadd.f32 %v1266, %v1269
    %vm1271 = vweird.f32 %v1245
    %vm1272 = vweird.f32 %v1266
    %vm1273 = vmor %vm1271, %vm1272
    %v1274 = vsel %vm1273, %v1266, %v1270
    %v1275 = vand.u32 2147483647, %v1245
    %vm1276 = vcmp.eq.f32.partialorder %v1275, 8.507059e+37
    %v1277 = vand.u32 %v1245, 2147483648
    %v1278 = vor.u32 1.1754944e-38, %v1277
    %v1279 = vsel %vm1276, %v1278, %v1274
    %v1280 = vrcp.pop %v1248
    %v1281 = vmul.f32 %v1248, %v1280
    %v1282 = vsub.f32 1.0, %v1281
    %v1283 = vmul.f32 %v1280, %v1282
    %v1284 = vadd.f32 %v1280, %v1283
    %vm1285 = vweird.f32 %v1248
    %vm1286 = vweird.f32 %v1280
    %vm1287 = vmor %vm1285, %vm1286
    %v1288 = vsel %vm1287, %v1280, %v1284
    %v1289 = vand.u32 2147483647, %v1248
    %vm1290 = vcmp.eq.f32.partialorder %v1289, 8.507059e+37
    %v1291 = vand.u32 %v1248, 2147483648
    %v1292 = vor.u32 1.1754944e-38, %v1291
    %v1293 = vsel %vm1290, %v1292, %v1288
    %v1294 = vrcp.pop %v1251
    %v1295 = vmul.f32 %v1251, %v1294
    %v1296 = vsub.f32 1.0, %v1295
    %v1297 = vmul.f32 %v1294, %v1296
    %v1298 = vadd.f32 %v1294, %v1297
    %vm1299 = vweird.f32 %v1251
    %vm1300 = vweird.f32 %v1294
    %vm1301 = vmor %vm1299, %vm1300
    %v1302 = vsel %vm1301, %v1294, %v1298
    %v1303 = vand.u32 2147483647, %v1251
    %vm1304 = vcmp.eq.f32.partialorder %v1303, 8.507059e+37
    %v1305 = vand.u32 %v1251, 2147483648
    %v1306 = vor.u32 1.1754944e-38, %v1305
    %v1307 = vsel %vm1304, %v1306, %v1302
    %v1308 = vmul.f32 %v1236, %v1265
    %v1309 = vmul.f32 %v1237, %v1279
    %v1310 = vmul.f32 %v1238, %v1293
    %v1311 = vmul.f32 %v1239, %v1307
    %v1312 = vsel %vm176, %v1308, 0.0
    %v1313 = vsel %vm176, %v1309, 0.0
    %v1314 = vadd.f32 %v1312, %v1313
    %v1315 = vsel %vm176, %v1310, 0.0
    %v1316 = vadd.f32 %v1314, %v1315
    %v1317 = vsel %vm176, %v1311, 0.0
    %v1318 = vadd.f32 %v1316, %v1317
    %v1319 = vrot.slane %v1318, 4
    %v1320 = vadd.f32 %v1318, %v1319
    %v1321 = vrot.slane %v1320, 2
    %v1322 = vadd.f32 %v1320, %v1321
    %v1323 = vrot.slane %v1322, 1
    %v1324 = vadd.f32 %v1322, %v1323
    %v1325 = vrcp.pop %v1324
    %v1326 = vmul.f32 %v1324, %v1325
    %v1327 = vsub.f32 1.0, %v1326
    %v1328 = vmul.f32 %v1325, %v1327
    %v1329 = vadd.f32 %v1325, %v1328
    %vm1330 = vweird.f32 %v1324
    %vm1331 = vweird.f32 %v1325
    %vm1332 = vmor %vm1330, %vm1331
    %v1333 = vsel %vm1332, %v1325, %v1329
    %v1334 = vand.u32 2147483647, %v1324
    %vm1335 = vcmp.eq.f32.partialorder %v1334, 8.507059e+37
    %v1336 = vand.u32 %v1324, 2147483648
    %v1337 = vor.u32 1.1754944e-38, %v1336
    %v1338 = vsel %vm1335, %v1337, %v1333
    %v1339 = vmul.f32 %v1308, %v1338
    %v1340 = vmul.f32 %v1309, %v1338
    %v1341 = vmul.f32 %v1310, %v1338
    %v1342 = vmul.f32 %v1311, %v1338
    %v1343 = vsel %vm176, %v1339, 0.0
    %1344 = vadd.xlane.f32.xlu0 %v1343
    %v1345 = vpop.xlane.xlu0 %1344
    %v1346 = vsel %vm176, %v1340, 0.0
    %1347 = vadd.xlane.f32.xlu0 %v1346
    %v1348 = vpop.xlane.xlu0 %1347
    %v1349 = vsel %vm176, %v1341, 0.0
    %1350 = vadd.xlane.f32.xlu0 %v1349
    %v1351 = vpop.xlane.xlu0 %1350
    %v1352 = vsel %vm176, %v1342, 0.0
    %1353 = vadd.xlane.f32.xlu0 %v1352
    %v1354 = vpop.xlane.xlu0 %1353
    %v1355 = vrcp.pop %v1345
    %v1356 = vmul.f32 %v1345, %v1355
    %v1357 = vsub.f32 1.0, %v1356
    %v1358 = vmul.f32 %v1355, %v1357
    %v1359 = vadd.f32 %v1355, %v1358
    %vm1360 = vweird.f32 %v1345
    %vm1361 = vweird.f32 %v1355
    %vm1362 = vmor %vm1360, %vm1361
    %v1363 = vsel %vm1362, %v1355, %v1359
    %v1364 = vand.u32 2147483647, %v1345
    %vm1365 = vcmp.eq.f32.partialorder %v1364, 8.507059e+37
    %v1366 = vand.u32 %v1345, 2147483648
    %v1367 = vor.u32 1.1754944e-38, %v1366
    %v1368 = vsel %vm1365, %v1367, %v1363
    %v1369 = vrcp.pop %v1348
    %v1370 = vmul.f32 %v1348, %v1369
    %v1371 = vsub.f32 1.0, %v1370
    %v1372 = vmul.f32 %v1369, %v1371
    %v1373 = vadd.f32 %v1369, %v1372
    %vm1374 = vweird.f32 %v1348
    %vm1375 = vweird.f32 %v1369
    %vm1376 = vmor %vm1374, %vm1375
    %v1377 = vsel %vm1376, %v1369, %v1373
    %v1378 = vand.u32 2147483647, %v1348
    %vm1379 = vcmp.eq.f32.partialorder %v1378, 8.507059e+37
    %v1380 = vand.u32 %v1348, 2147483648
    %v1381 = vor.u32 1.1754944e-38, %v1380
    %v1382 = vsel %vm1379, %v1381, %v1377
    %v1383 = vrcp.pop %v1351
    %v1384 = vmul.f32 %v1351, %v1383
    %v1385 = vsub.f32 1.0, %v1384
    %v1386 = vmul.f32 %v1383, %v1385
    %v1387 = vadd.f32 %v1383, %v1386
    %vm1388 = vweird.f32 %v1351
    %vm1389 = vweird.f32 %v1383
    %vm1390 = vmor %vm1388, %vm1389
    %v1391 = vsel %vm1390, %v1383, %v1387
    %v1392 = vand.u32 2147483647, %v1351
    %vm1393 = vcmp.eq.f32.partialorder %v1392, 8.507059e+37
    %v1394 = vand.u32 %v1351, 2147483648
    %v1395 = vor.u32 1.1754944e-38, %v1394
    %v1396 = vsel %vm1393, %v1395, %v1391
    %v1397 = vrcp.pop %v1354
    %v1398 = vmul.f32 %v1354, %v1397
    %v1399 = vsub.f32 1.0, %v1398
    %v1400 = vmul.f32 %v1397, %v1399
    %v1401 = vadd.f32 %v1397, %v1400
    %vm1402 = vweird.f32 %v1354
    %vm1403 = vweird.f32 %v1397
    %vm1404 = vmor %vm1402, %vm1403
    %v1405 = vsel %vm1404, %v1397, %v1401
    %v1406 = vand.u32 2147483647, %v1354
    %vm1407 = vcmp.eq.f32.partialorder %v1406, 8.507059e+37
    %v1408 = vand.u32 %v1354, 2147483648
    %v1409 = vor.u32 1.1754944e-38, %v1408
    %v1410 = vsel %vm1407, %v1409, %v1405
    %v1411 = vmul.f32 %v1339, %v1368
    %v1412 = vmul.f32 %v1340, %v1382
    %v1413 = vmul.f32 %v1341, %v1396
    %v1414 = vmul.f32 %v1342, %v1410
    %v1415 = vsel %vm176, %v1411, 0.0
    %v1416 = vsel %vm176, %v1412, 0.0
    %v1417 = vadd.f32 %v1415, %v1416
    %v1418 = vsel %vm176, %v1413, 0.0
    %v1419 = vadd.f32 %v1417, %v1418
    %v1420 = vsel %vm176, %v1414, 0.0
    %v1421 = vadd.f32 %v1419, %v1420
    %v1422 = vrot.slane %v1421, 4
    %v1423 = vadd.f32 %v1421, %v1422
    %v1424 = vrot.slane %v1423, 2
    %v1425 = vadd.f32 %v1423, %v1424
    %v1426 = vrot.slane %v1425, 1
    %v1427 = vadd.f32 %v1425, %v1426
    %v1428 = vrcp.pop %v1427
    %v1429 = vmul.f32 %v1427, %v1428
    %v1430 = vsub.f32 1.0, %v1429
    %v1431 = vmul.f32 %v1428, %v1430
    %v1432 = vadd.f32 %v1428, %v1431
    %vm1433 = vweird.f32 %v1427
    %vm1434 = vweird.f32 %v1428
    %vm1435 = vmor %vm1433, %vm1434
    %v1436 = vsel %vm1435, %v1428, %v1432
    %v1437 = vand.u32 2147483647, %v1427
    %vm1438 = vcmp.eq.f32.partialorder %v1437, 8.507059e+37
    %v1439 = vand.u32 %v1427, 2147483648
    %v1440 = vor.u32 1.1754944e-38, %v1439
    %v1441 = vsel %vm1438, %v1440, %v1436
    %v1442 = vmul.f32 %v1411, %v1441
    %v1443 = vmul.f32 %v1412, %v1441
    %v1444 = vmul.f32 %v1413, %v1441
    %v1445 = vmul.f32 %v1414, %v1441
    %v1446 = vsel %vm176, %v1442, 0.0
    %1447 = vadd.xlane.f32.xlu0 %v1446
    %v1448 = vpop.xlane.xlu0 %1447
    %v1449 = vsel %vm176, %v1443, 0.0
    %1450 = vadd.xlane.f32.xlu0 %v1449
    %v1451 = vpop.xlane.xlu0 %1450
    %v1452 = vsel %vm176, %v1444, 0.0
    %1453 = vadd.xlane.f32.xlu0 %v1452
    %v1454 = vpop.xlane.xlu0 %1453
    %v1455 = vsel %vm176, %v1445, 0.0
    %1456 = vadd.xlane.f32.xlu0 %v1455
    %v1457 = vpop.xlane.xlu0 %1456
    %v1458 = vrcp.pop %v1448
    %v1459 = vmul.f32 %v1448, %v1458
    %v1460 = vsub.f32 1.0, %v1459
    %v1461 = vmul.f32 %v1458, %v1460
    %v1462 = vadd.f32 %v1458, %v1461
    %vm1463 = vweird.f32 %v1448
    %vm1464 = vweird.f32 %v1458
    %vm1465 = vmor %vm1463, %vm1464
    %v1466 = vsel %vm1465, %v1458, %v1462
    %v1467 = vand.u32 2147483647, %v1448
    %vm1468 = vcmp.eq.f32.partialorder %v1467, 8.507059e+37
    %v1469 = vand.u32 %v1448, 2147483648
    %v1470 = vor.u32 1.1754944e-38, %v1469
    %v1471 = vsel %vm1468, %v1470, %v1466
    %v1472 = vrcp.pop %v1451
    %v1473 = vmul.f32 %v1451, %v1472
    %v1474 = vsub.f32 1.0, %v1473
    %v1475 = vmul.f32 %v1472, %v1474
    %v1476 = vadd.f32 %v1472, %v1475
    %vm1477 = vweird.f32 %v1451
    %vm1478 = vweird.f32 %v1472
    %vm1479 = vmor %vm1477, %vm1478
    %v1480 = vsel %vm1479, %v1472, %v1476
    %v1481 = vand.u32 2147483647, %v1451
    %vm1482 = vcmp.eq.f32.partialorder %v1481, 8.507059e+37
    %v1483 = vand.u32 %v1451, 2147483648
    %v1484 = vor.u32 1.1754944e-38, %v1483
    %v1485 = vsel %vm1482, %v1484, %v1480
    %v1486 = vrcp.pop %v1454
    %v1487 = vmul.f32 %v1454, %v1486
    %v1488 = vsub.f32 1.0, %v1487
    %v1489 = vmul.f32 %v1486, %v1488
    %v1490 = vadd.f32 %v1486, %v1489
    %vm1491 = vweird.f32 %v1454
    %vm1492 = vweird.f32 %v1486
    %vm1493 = vmor %vm1491, %vm1492
    %v1494 = vsel %vm1493, %v1486, %v1490
    %v1495 = vand.u32 2147483647, %v1454
    %vm1496 = vcmp.eq.f32.partialorder %v1495, 8.507059e+37
    %v1497 = vand.u32 %v1454, 2147483648
    %v1498 = vor.u32 1.1754944e-38, %v1497
    %v1499 = vsel %vm1496, %v1498, %v1494
    %v1500 = vrcp.pop %v1457
    %v1501 = vmul.f32 %v1457, %v1500
    %v1502 = vsub.f32 1.0, %v1501
    %v1503 = vmul.f32 %v1500, %v1502
    %v1504 = vadd.f32 %v1500, %v1503
    %vm1505 = vweird.f32 %v1457
    %vm1506 = vweird.f32 %v1500
    %vm1507 = vmor %vm1505, %vm1506
    %v1508 = vsel %vm1507, %v1500, %v1504
    %v1509 = vand.u32 2147483647, %v1457
    %vm1510 = vcmp.eq.f32.partialorder %v1509, 8.507059e+37
    %v1511 = vand.u32 %v1457, 2147483648
    %v1512 = vor.u32 1.1754944e-38, %v1511
    %v1513 = vsel %vm1510, %v1512, %v1508
    %v1514 = vmul.f32 %v1442, %v1471
    %v1515 = vmul.f32 %v1443, %v1485
    %v1516 = vmul.f32 %v1444, %v1499
    %v1517 = vmul.f32 %v1445, %v1513
    %v1518 = vsel %vm176, %v1514, 0.0
    %v1519 = vsel %vm176, %v1515, 0.0
    %v1520 = vadd.f32 %v1518, %v1519
    %v1521 = vsel %vm176, %v1516, 0.0
    %v1522 = vadd.f32 %v1520, %v1521
    %v1523 = vsel %vm176, %v1517, 0.0
    %v1524 = vadd.f32 %v1522, %v1523
    %v1525 = vrot.slane %v1524, 4
    %v1526 = vadd.f32 %v1524, %v1525
    %v1527 = vrot.slane %v1526, 2
    %v1528 = vadd.f32 %v1526, %v1527
    %v1529 = vrot.slane %v1528, 1
    %v1530 = vadd.f32 %v1528, %v1529
    %v1531 = vrcp.pop %v1530
    %v1532 = vmul.f32 %v1530, %v1531
    %v1533 = vsub.f32 1.0, %v1532
    %v1534 = vmul.f32 %v1531, %v1533
    %v1535 = vadd.f32 %v1531, %v1534
    %vm1536 = vweird.f32 %v1530
    %vm1537 = vweird.f32 %v1531
    %vm1538 = vmor %vm1536, %vm1537
    %v1539 = vsel %vm1538, %v1531, %v1535
    %v1540 = vand.u32 2147483647, %v1530
    %vm1541 = vcmp.eq.f32.partialorder %v1540, 8.507059e+37
    %v1542 = vand.u32 %v1530, 2147483648
    %v1543 = vor.u32 1.1754944e-38, %v1542
    %v1544 = vsel %vm1541, %v1543, %v1539
    %v1545 = vmul.f32 %v1514, %v1544
    %v1546 = vmul.f32 %v1515, %v1544
    %v1547 = vmul.f32 %v1516, %v1544
    %v1548 = vmul.f32 %v1517, %v1544
    %v1549 = vsel %vm176, %v1545, 0.0
    %1550 = vadd.xlane.f32.xlu0 %v1549
    %v1551 = vpop.xlane.xlu0 %1550
    %v1552 = vsel %vm176, %v1546, 0.0
    %1553 = vadd.xlane.f32.xlu0 %v1552
    %v1554 = vpop.xlane.xlu0 %1553
    %v1555 = vsel %vm176, %v1547, 0.0
    %1556 = vadd.xlane.f32.xlu0 %v1555
    %v1557 = vpop.xlane.xlu0 %1556
    %v1558 = vsel %vm176, %v1548, 0.0
    %1559 = vadd.xlane.f32.xlu0 %v1558
    %v1560 = vpop.xlane.xlu0 %1559
    %v1561 = vrcp.pop %v1551
    %v1562 = vmul.f32 %v1551, %v1561
    %v1563 = vsub.f32 1.0, %v1562
    %v1564 = vmul.f32 %v1561, %v1563
    %v1565 = vadd.f32 %v1561, %v1564
    %vm1566 = vweird.f32 %v1551
    %vm1567 = vweird.f32 %v1561
    %vm1568 = vmor %vm1566, %vm1567
    %v1569 = vsel %vm1568, %v1561, %v1565
    %v1570 = vand.u32 2147483647, %v1551
    %vm1571 = vcmp.eq.f32.partialorder %v1570, 8.507059e+37
    %v1572 = vand.u32 %v1551, 2147483648
    %v1573 = vor.u32 1.1754944e-38, %v1572
    %v1574 = vsel %vm1571, %v1573, %v1569
    %v1575 = vrcp.pop %v1554
    %v1576 = vmul.f32 %v1554, %v1575
    %v1577 = vsub.f32 1.0, %v1576
    %v1578 = vmul.f32 %v1575, %v1577
    %v1579 = vadd.f32 %v1575, %v1578
    %vm1580 = vweird.f32 %v1554
    %vm1581 = vweird.f32 %v1575
    %vm1582 = vmor %vm1580, %vm1581
    %v1583 = vsel %vm1582, %v1575, %v1579
    %v1584 = vand.u32 2147483647, %v1554
    %vm1585 = vcmp.eq.f32.partialorder %v1584, 8.507059e+37
    %v1586 = vand.u32 %v1554, 2147483648
    %v1587 = vor.u32 1.1754944e-38, %v1586
    %v1588 = vsel %vm1585, %v1587, %v1583
    %v1589 = vrcp.pop %v1557
    %v1590 = vmul.f32 %v1557, %v1589
    %v1591 = vsub.f32 1.0, %v1590
    %v1592 = vmul.f32 %v1589, %v1591
    %v1593 = vadd.f32 %v1589, %v1592
    %vm1594 = vweird.f32 %v1557
    %vm1595 = vweird.f32 %v1589
    %vm1596 = vmor %vm1594, %vm1595
    %v1597 = vsel %vm1596, %v1589, %v1593
    %v1598 = vand.u32 2147483647, %v1557
    %vm1599 = vcmp.eq.f32.partialorder %v1598, 8.507059e+37
    %v1600 = vand.u32 %v1557, 2147483648
    %v1601 = vor.u32 1.1754944e-38, %v1600
    %v1602 = vsel %vm1599, %v1601, %v1597
    %v1603 = vrcp.pop %v1560
    %v1604 = vmul.f32 %v1560, %v1603
    %v1605 = vsub.f32 1.0, %v1604
    %v1606 = vmul.f32 %v1603, %v1605
    %v1607 = vadd.f32 %v1603, %v1606
    %vm1608 = vweird.f32 %v1560
    %vm1609 = vweird.f32 %v1603
    %vm1610 = vmor %vm1608, %vm1609
    %v1611 = vsel %vm1610, %v1603, %v1607
    %v1612 = vand.u32 2147483647, %v1560
    %vm1613 = vcmp.eq.f32.partialorder %v1612, 8.507059e+37
    %v1614 = vand.u32 %v1560, 2147483648
    %v1615 = vor.u32 1.1754944e-38, %v1614
    %v1616 = vsel %vm1613, %v1615, %v1611
    %v1617 = vmul.f32 %v1545, %v1574
    %v1618 = vmul.f32 %v1546, %v1588
    %v1619 = vmul.f32 %v1547, %v1602
    %v1620 = vmul.f32 %v1548, %v1616
    %v1621 = vsel %vm176, %v1617, 0.0
    %v1622 = vsel %vm176, %v1618, 0.0
    %v1623 = vadd.f32 %v1621, %v1622
    %v1624 = vsel %vm176, %v1619, 0.0
    %v1625 = vadd.f32 %v1623, %v1624
    %v1626 = vsel %vm176, %v1620, 0.0
    %v1627 = vadd.f32 %v1625, %v1626
    %v1628 = vrot.slane %v1627, 4
    %v1629 = vadd.f32 %v1627, %v1628
    %v1630 = vrot.slane %v1629, 2
    %v1631 = vadd.f32 %v1629, %v1630
    %v1632 = vrot.slane %v1631, 1
    %v1633 = vadd.f32 %v1631, %v1632
    %v1634 = vrcp.pop %v1633
    %v1635 = vmul.f32 %v1633, %v1634
    %v1636 = vsub.f32 1.0, %v1635
    %v1637 = vmul.f32 %v1634, %v1636
    %v1638 = vadd.f32 %v1634, %v1637
    %vm1639 = vweird.f32 %v1633
    %vm1640 = vweird.f32 %v1634
    %vm1641 = vmor %vm1639, %vm1640
    %v1642 = vsel %vm1641, %v1634, %v1638
    %v1643 = vand.u32 2147483647, %v1633
    %vm1644 = vcmp.eq.f32.partialorder %v1643, 8.507059e+37
    %v1645 = vand.u32 %v1633, 2147483648
    %v1646 = vor.u32 1.1754944e-38, %v1645
    %v1647 = vsel %vm1644, %v1646, %v1642
    %v1648 = vmul.f32 %v1617, %v1647
    %v1649 = vmul.f32 %v1618, %v1647
    %v1650 = vmul.f32 %v1619, %v1647
    %v1651 = vmul.f32 %v1620, %v1647
    %v1652 = vsel %vm176, %v1648, 0.0
    %1653 = vadd.xlane.f32.xlu0 %v1652
    %v1654 = vpop.xlane.xlu0 %1653
    %v1655 = vsel %vm176, %v1649, 0.0
    %1656 = vadd.xlane.f32.xlu0 %v1655
    %v1657 = vpop.xlane.xlu0 %1656
    %v1658 = vsel %vm176, %v1650, 0.0
    %1659 = vadd.xlane.f32.xlu0 %v1658
    %v1660 = vpop.xlane.xlu0 %1659
    %v1661 = vsel %vm176, %v1651, 0.0
    %1662 = vadd.xlane.f32.xlu0 %v1661
    %v1663 = vpop.xlane.xlu0 %1662
    %v1664 = vrcp.pop %v1654
    %v1665 = vmul.f32 %v1654, %v1664
    %v1666 = vsub.f32 1.0, %v1665
    %v1667 = vmul.f32 %v1664, %v1666
    %v1668 = vadd.f32 %v1664, %v1667
    %vm1669 = vweird.f32 %v1654
    %vm1670 = vweird.f32 %v1664
    %vm1671 = vmor %vm1669, %vm1670
    %v1672 = vsel %vm1671, %v1664, %v1668
    %v1673 = vand.u32 2147483647, %v1654
    %vm1674 = vcmp.eq.f32.partialorder %v1673, 8.507059e+37
    %v1675 = vand.u32 %v1654, 2147483648
    %v1676 = vor.u32 1.1754944e-38, %v1675
    %v1677 = vsel %vm1674, %v1676, %v1672
    %v1678 = vrcp.pop %v1657
    %v1679 = vmul.f32 %v1657, %v1678
    %v1680 = vsub.f32 1.0, %v1679
    %v1681 = vmul.f32 %v1678, %v1680
    %v1682 = vadd.f32 %v1678, %v1681
    %vm1683 = vweird.f32 %v1657
    %vm1684 = vweird.f32 %v1678
    %vm1685 = vmor %vm1683, %vm1684
    %v1686 = vsel %vm1685, %v1678, %v1682
    %v1687 = vand.u32 2147483647, %v1657
    %vm1688 = vcmp.eq.f32.partialorder %v1687, 8.507059e+37
    %v1689 = vand.u32 %v1657, 2147483648
    %v1690 = vor.u32 1.1754944e-38, %v1689
    %v1691 = vsel %vm1688, %v1690, %v1686
    %v1692 = vrcp.pop %v1660
    %v1693 = vmul.f32 %v1660, %v1692
    %v1694 = vsub.f32 1.0, %v1693
    %v1695 = vmul.f32 %v1692, %v1694
    %v1696 = vadd.f32 %v1692, %v1695
    %vm1697 = vweird.f32 %v1660
    %vm1698 = vweird.f32 %v1692
    %vm1699 = vmor %vm1697, %vm1698
    %v1700 = vsel %vm1699, %v1692, %v1696
    %v1701 = vand.u32 2147483647, %v1660
    %vm1702 = vcmp.eq.f32.partialorder %v1701, 8.507059e+37
    %v1703 = vand.u32 %v1660, 2147483648
    %v1704 = vor.u32 1.1754944e-38, %v1703
    %v1705 = vsel %vm1702, %v1704, %v1700
    %v1706 = vrcp.pop %v1663
    %v1707 = vmul.f32 %v1663, %v1706
    %v1708 = vsub.f32 1.0, %v1707
    %v1709 = vmul.f32 %v1706, %v1708
    %v1710 = vadd.f32 %v1706, %v1709
    %vm1711 = vweird.f32 %v1663
    %vm1712 = vweird.f32 %v1706
    %vm1713 = vmor %vm1711, %vm1712
    %v1714 = vsel %vm1713, %v1706, %v1710
    %v1715 = vand.u32 2147483647, %v1663
    %vm1716 = vcmp.eq.f32.partialorder %v1715, 8.507059e+37
    %v1717 = vand.u32 %v1663, 2147483648
    %v1718 = vor.u32 1.1754944e-38, %v1717
    %v1719 = vsel %vm1716, %v1718, %v1714
    %v1720 = vmul.f32 %v1648, %v1677
    %v1721 = vmul.f32 %v1649, %v1691
    %v1722 = vmul.f32 %v1650, %v1705
    %v1723 = vmul.f32 %v1651, %v1719
    %v1724 = vsel %vm176, %v1720, 0.0
    %v1725 = vsel %vm176, %v1721, 0.0
    %v1726 = vadd.f32 %v1724, %v1725
    %v1727 = vsel %vm176, %v1722, 0.0
    %v1728 = vadd.f32 %v1726, %v1727
    %v1729 = vsel %vm176, %v1723, 0.0
    %v1730 = vadd.f32 %v1728, %v1729
    %v1731 = vrot.slane %v1730, 4
    %v1732 = vadd.f32 %v1730, %v1731
    %v1733 = vrot.slane %v1732, 2
    %v1734 = vadd.f32 %v1732, %v1733
    %v1735 = vrot.slane %v1734, 1
    %v1736 = vadd.f32 %v1734, %v1735
    %v1737 = vrcp.pop %v1736
    %v1738 = vmul.f32 %v1736, %v1737
    %v1739 = vsub.f32 1.0, %v1738
    %v1740 = vmul.f32 %v1737, %v1739
    %v1741 = vadd.f32 %v1737, %v1740
    %vm1742 = vweird.f32 %v1736
    %vm1743 = vweird.f32 %v1737
    %vm1744 = vmor %vm1742, %vm1743
    %v1745 = vsel %vm1744, %v1737, %v1741
    %v1746 = vand.u32 2147483647, %v1736
    %vm1747 = vcmp.eq.f32.partialorder %v1746, 8.507059e+37
    %v1748 = vand.u32 %v1736, 2147483648
    %v1749 = vor.u32 1.1754944e-38, %v1748
    %v1750 = vsel %vm1747, %v1749, %v1745
    %v1751 = vmul.f32 %v1720, %v1750
    %v1752 = vmul.f32 %v1721, %v1750
    %v1753 = vmul.f32 %v1722, %v1750
    %v1754 = vmul.f32 %v1723, %v1750
    %v1755 = vsel %vm176, %v1751, 0.0
    %1756 = vadd.xlane.f32.xlu0 %v1755
    %v1757 = vpop.xlane.xlu0 %1756
    %v1758 = vsel %vm176, %v1752, 0.0
    %1759 = vadd.xlane.f32.xlu0 %v1758
    %v1760 = vpop.xlane.xlu0 %1759
    %v1761 = vsel %vm176, %v1753, 0.0
    %1762 = vadd.xlane.f32.xlu0 %v1761
    %v1763 = vpop.xlane.xlu0 %1762
    %v1764 = vsel %vm176, %v1754, 0.0
    %1765 = vadd.xlane.f32.xlu0 %v1764
    %v1766 = vpop.xlane.xlu0 %1765
    %v1767 = vrcp.pop %v1757
    %v1768 = vmul.f32 %v1757, %v1767
    %v1769 = vsub.f32 1.0, %v1768
    %v1770 = vmul.f32 %v1767, %v1769
    %v1771 = vadd.f32 %v1767, %v1770
    %vm1772 = vweird.f32 %v1757
    %vm1773 = vweird.f32 %v1767
    %vm1774 = vmor %vm1772, %vm1773
    %v1775 = vsel %vm1774, %v1767, %v1771
    %v1776 = vand.u32 2147483647, %v1757
    %vm1777 = vcmp.eq.f32.partialorder %v1776, 8.507059e+37
    %v1778 = vand.u32 %v1757, 2147483648
    %v1779 = vor.u32 1.1754944e-38, %v1778
    %v1780 = vsel %vm1777, %v1779, %v1775
    %v1781 = vrcp.pop %v1760
    %v1782 = vmul.f32 %v1760, %v1781
    %v1783 = vsub.f32 1.0, %v1782
    %v1784 = vmul.f32 %v1781, %v1783
    %v1785 = vadd.f32 %v1781, %v1784
    %vm1786 = vweird.f32 %v1760
    %vm1787 = vweird.f32 %v1781
    %vm1788 = vmor %vm1786, %vm1787
    %v1789 = vsel %vm1788, %v1781, %v1785
    %v1790 = vand.u32 2147483647, %v1760
    %vm1791 = vcmp.eq.f32.partialorder %v1790, 8.507059e+37
    %v1792 = vand.u32 %v1760, 2147483648
    %v1793 = vor.u32 1.1754944e-38, %v1792
    %v1794 = vsel %vm1791, %v1793, %v1789
    %v1795 = vrcp.pop %v1763
    %v1796 = vmul.f32 %v1763, %v1795
    %v1797 = vsub.f32 1.0, %v1796
    %v1798 = vmul.f32 %v1795, %v1797
    %v1799 = vadd.f32 %v1795, %v1798
    %vm1800 = vweird.f32 %v1763
    %vm1801 = vweird.f32 %v1795
    %vm1802 = vmor %vm1800, %vm1801
    %v1803 = vsel %vm1802, %v1795, %v1799
    %v1804 = vand.u32 2147483647, %v1763
    %vm1805 = vcmp.eq.f32.partialorder %v1804, 8.507059e+37
    %v1806 = vand.u32 %v1763, 2147483648
    %v1807 = vor.u32 1.1754944e-38, %v1806
    %v1808 = vsel %vm1805, %v1807, %v1803
    %v1809 = vrcp.pop %v1766
    %v1810 = vmul.f32 %v1766, %v1809
    %v1811 = vsub.f32 1.0, %v1810
    %v1812 = vmul.f32 %v1809, %v1811
    %v1813 = vadd.f32 %v1809, %v1812
    %vm1814 = vweird.f32 %v1766
    %vm1815 = vweird.f32 %v1809
    %vm1816 = vmor %vm1814, %vm1815
    %v1817 = vsel %vm1816, %v1809, %v1813
    %v1818 = vand.u32 2147483647, %v1766
    %vm1819 = vcmp.eq.f32.partialorder %v1818, 8.507059e+37
    %v1820 = vand.u32 %v1766, 2147483648
    %v1821 = vor.u32 1.1754944e-38, %v1820
    %v1822 = vsel %vm1819, %v1821, %v1817
    %v1823 = vmul.f32 %v1751, %v1780
    %v1824 = vmul.f32 %v1752, %v1794
    %v1825 = vmul.f32 %v1753, %v1808
    %v1826 = vmul.f32 %v1754, %v1822
    %v1827 = vsel %vm176, %v1823, 0.0
    %v1828 = vsel %vm176, %v1824, 0.0
    %v1829 = vadd.f32 %v1827, %v1828
    %v1830 = vsel %vm176, %v1825, 0.0
    %v1831 = vadd.f32 %v1829, %v1830
    %v1832 = vsel %vm176, %v1826, 0.0
    %v1833 = vadd.f32 %v1831, %v1832
    %v1834 = vrot.slane %v1833, 4
    %v1835 = vadd.f32 %v1833, %v1834
    %v1836 = vrot.slane %v1835, 2
    %v1837 = vadd.f32 %v1835, %v1836
    %v1838 = vrot.slane %v1837, 1
    %v1839 = vadd.f32 %v1837, %v1838
    %v1840 = vrcp.pop %v1839
    %v1841 = vmul.f32 %v1839, %v1840
    %v1842 = vsub.f32 1.0, %v1841
    %v1843 = vmul.f32 %v1840, %v1842
    %v1844 = vadd.f32 %v1840, %v1843
    %vm1845 = vweird.f32 %v1839
    %vm1846 = vweird.f32 %v1840
    %vm1847 = vmor %vm1845, %vm1846
    %v1848 = vsel %vm1847, %v1840, %v1844
    %v1849 = vand.u32 2147483647, %v1839
    %vm1850 = vcmp.eq.f32.partialorder %v1849, 8.507059e+37
    %v1851 = vand.u32 %v1839, 2147483648
    %v1852 = vor.u32 1.1754944e-38, %v1851
    %v1853 = vsel %vm1850, %v1852, %v1848
    %v1854 = vmul.f32 %v1823, %v1853
    %v1855 = vmul.f32 %v1824, %v1853
    %v1856 = vmul.f32 %v1825, %v1853
    %v1857 = vmul.f32 %v1826, %v1853
    %v1858 = vsel %vm176, %v1854, 0.0
    %1859 = vadd.xlane.f32.xlu0 %v1858
    %v1860 = vpop.xlane.xlu0 %1859
    %v1861 = vsel %vm176, %v1855, 0.0
    %1862 = vadd.xlane.f32.xlu0 %v1861
    %v1863 = vpop.xlane.xlu0 %1862
    %v1864 = vsel %vm176, %v1856, 0.0
    %1865 = vadd.xlane.f32.xlu0 %v1864
    %v1866 = vpop.xlane.xlu0 %1865
    %v1867 = vsel %vm176, %v1857, 0.0
    %1868 = vadd.xlane.f32.xlu0 %v1867
    %v1869 = vpop.xlane.xlu0 %1868
    %v1870 = vrcp.pop %v1860
    %v1871 = vmul.f32 %v1860, %v1870
    %v1872 = vsub.f32 1.0, %v1871
    %v1873 = vmul.f32 %v1870, %v1872
    %v1874 = vadd.f32 %v1870, %v1873
    %vm1875 = vweird.f32 %v1860
    %vm1876 = vweird.f32 %v1870
    %vm1877 = vmor %vm1875, %vm1876
    %v1878 = vsel %vm1877, %v1870, %v1874
    %v1879 = vand.u32 2147483647, %v1860
    %vm1880 = vcmp.eq.f32.partialorder %v1879, 8.507059e+37
    %v1881 = vand.u32 %v1860, 2147483648
    %v1882 = vor.u32 1.1754944e-38, %v1881
    %v1883 = vsel %vm1880, %v1882, %v1878
    %v1884 = vrcp.pop %v1863
    %v1885 = vmul.f32 %v1863, %v1884
    %v1886 = vsub.f32 1.0, %v1885
    %v1887 = vmul.f32 %v1884, %v1886
    %v1888 = vadd.f32 %v1884, %v1887
    %vm1889 = vweird.f32 %v1863
    %vm1890 = vweird.f32 %v1884
    %vm1891 = vmor %vm1889, %vm1890
    %v1892 = vsel %vm1891, %v1884, %v1888
    %v1893 = vand.u32 2147483647, %v1863
    %vm1894 = vcmp.eq.f32.partialorder %v1893, 8.507059e+37
    %v1895 = vand.u32 %v1863, 2147483648
    %v1896 = vor.u32 1.1754944e-38, %v1895
    %v1897 = vsel %vm1894, %v1896, %v1892
    %v1898 = vrcp.pop %v1866
    %v1899 = vmul.f32 %v1866, %v1898
    %v1900 = vsub.f32 1.0, %v1899
    %v1901 = vmul.f32 %v1898, %v1900
    %v1902 = vadd.f32 %v1898, %v1901
    %vm1903 = vweird.f32 %v1866
    %vm1904 = vweird.f32 %v1898
    %vm1905 = vmor %vm1903, %vm1904
    %v1906 = vsel %vm1905, %v1898, %v1902
    %v1907 = vand.u32 2147483647, %v1866
    %vm1908 = vcmp.eq.f32.partialorder %v1907, 8.507059e+37
    %v1909 = vand.u32 %v1866, 2147483648
    %v1910 = vor.u32 1.1754944e-38, %v1909
    %v1911 = vsel %vm1908, %v1910, %v1906
    %v1912 = vrcp.pop %v1869
    %v1913 = vmul.f32 %v1869, %v1912
    %v1914 = vsub.f32 1.0, %v1913
    %v1915 = vmul.f32 %v1912, %v1914
    %v1916 = vadd.f32 %v1912, %v1915
    %vm1917 = vweird.f32 %v1869
    %vm1918 = vweird.f32 %v1912
    %vm1919 = vmor %vm1917, %vm1918
    %v1920 = vsel %vm1919, %v1912, %v1916
    %v1921 = vand.u32 2147483647, %v1869
    %vm1922 = vcmp.eq.f32.partialorder %v1921, 8.507059e+37
    %v1923 = vand.u32 %v1869, 2147483648
    %v1924 = vor.u32 1.1754944e-38, %v1923
    %v1925 = vsel %vm1922, %v1924, %v1920
    %v1926 = vmul.f32 %v1854, %v1883
    %v1927 = vmul.f32 %v1855, %v1897
    %v1928 = vmul.f32 %v1856, %v1911
    %v1929 = vmul.f32 %v1857, %v1925
    %v1930 = vsel %vm176, %v1926, 0.0
    %v1931 = vsel %vm176, %v1927, 0.0
    %v1932 = vadd.f32 %v1930, %v1931
    %v1933 = vsel %vm176, %v1928, 0.0
    %v1934 = vadd.f32 %v1932, %v1933
    %v1935 = vsel %vm176, %v1929, 0.0
    %v1936 = vadd.f32 %v1934, %v1935
    %v1937 = vrot.slane %v1936, 4
    %v1938 = vadd.f32 %v1936, %v1937
    %v1939 = vrot.slane %v1938, 2
    %v1940 = vadd.f32 %v1938, %v1939
    %v1941 = vrot.slane %v1940, 1
    %v1942 = vadd.f32 %v1940, %v1941
    %v1943 = vrcp.pop %v1942
    %v1944 = vmul.f32 %v1942, %v1943
    %v1945 = vsub.f32 1.0, %v1944
    %v1946 = vmul.f32 %v1943, %v1945
    %v1947 = vadd.f32 %v1943, %v1946
    %vm1948 = vweird.f32 %v1942
    %vm1949 = vweird.f32 %v1943
    %vm1950 = vmor %vm1948, %vm1949
    %v1951 = vsel %vm1950, %v1943, %v1947
    %v1952 = vand.u32 2147483647, %v1942
    %vm1953 = vcmp.eq.f32.partialorder %v1952, 8.507059e+37
    %v1954 = vand.u32 %v1942, 2147483648
    %v1955 = vor.u32 1.1754944e-38, %v1954
    %v1956 = vsel %vm1953, %v1955, %v1951
    %v1957 = vmul.f32 %v1926, %v1956
    %v1958 = vmul.f32 %v1927, %v1956
    %v1959 = vmul.f32 %v1928, %v1956
    %v1960 = vmul.f32 %v1929, %v1956
    %v1961 = vsel %vm176, %v1957, 0.0
    %1962 = vadd.xlane.f32.xlu0 %v1961
    %v1963 = vpop.xlane.xlu0 %1962
    %v1964 = vsel %vm176, %v1958, 0.0
    %1965 = vadd.xlane.f32.xlu0 %v1964
    %v1966 = vpop.xlane.xlu0 %1965
    %v1967 = vsel %vm176, %v1959, 0.0
    %1968 = vadd.xlane.f32.xlu0 %v1967
    %v1969 = vpop.xlane.xlu0 %1968
    %v1970 = vsel %vm176, %v1960, 0.0
    %1971 = vadd.xlane.f32.xlu0 %v1970
    %v1972 = vpop.xlane.xlu0 %1971
    %v1973 = vrcp.pop %v1963
    %v1974 = vmul.f32 %v1963, %v1973
    %v1975 = vsub.f32 1.0, %v1974
    %v1976 = vmul.f32 %v1973, %v1975
    %v1977 = vadd.f32 %v1973, %v1976
    %vm1978 = vweird.f32 %v1963
    %vm1979 = vweird.f32 %v1973
    %vm1980 = vmor %vm1978, %vm1979
    %v1981 = vsel %vm1980, %v1973, %v1977
    %v1982 = vand.u32 2147483647, %v1963
    %vm1983 = vcmp.eq.f32.partialorder %v1982, 8.507059e+37
    %v1984 = vand.u32 %v1963, 2147483648
    %v1985 = vor.u32 1.1754944e-38, %v1984
    %v1986 = vsel %vm1983, %v1985, %v1981
    %v1987 = vrcp.pop %v1966
    %v1988 = vmul.f32 %v1966, %v1987
    %v1989 = vsub.f32 1.0, %v1988
    %v1990 = vmul.f32 %v1987, %v1989
    %v1991 = vadd.f32 %v1987, %v1990
    %vm1992 = vweird.f32 %v1966
    %vm1993 = vweird.f32 %v1987
    %vm1994 = vmor %vm1992, %vm1993
    %v1995 = vsel %vm1994, %v1987, %v1991
    %v1996 = vand.u32 2147483647, %v1966
    %vm1997 = vcmp.eq.f32.partialorder %v1996, 8.507059e+37
    %v1998 = vand.u32 %v1966, 2147483648
    %v1999 = vor.u32 1.1754944e-38, %v1998
    %v2000 = vsel %vm1997, %v1999, %v1995
    %v2001 = vrcp.pop %v1969
    %v2002 = vmul.f32 %v1969, %v2001
    %v2003 = vsub.f32 1.0, %v2002
    %v2004 = vmul.f32 %v2001, %v2003
    %v2005 = vadd.f32 %v2001, %v2004
    %vm2006 = vweird.f32 %v1969
    %vm2007 = vweird.f32 %v2001
    %vm2008 = vmor %vm2006, %vm2007
    %v2009 = vsel %vm2008, %v2001, %v2005
    %v2010 = vand.u32 2147483647, %v1969
    %vm2011 = vcmp.eq.f32.partialorder %v2010, 8.507059e+37
    %v2012 = vand.u32 %v1969, 2147483648
    %v2013 = vor.u32 1.1754944e-38, %v2012
    %v2014 = vsel %vm2011, %v2013, %v2009
    %v2015 = vrcp.pop %v1972
    %v2016 = vmul.f32 %v1972, %v2015
    %v2017 = vsub.f32 1.0, %v2016
    %v2018 = vmul.f32 %v2015, %v2017
    %v2019 = vadd.f32 %v2015, %v2018
    %vm2020 = vweird.f32 %v1972
    %vm2021 = vweird.f32 %v2015
    %vm2022 = vmor %vm2020, %vm2021
    %v2023 = vsel %vm2022, %v2015, %v2019
    %v2024 = vand.u32 2147483647, %v1972
    %vm2025 = vcmp.eq.f32.partialorder %v2024, 8.507059e+37
    %v2026 = vand.u32 %v1972, 2147483648
    %v2027 = vor.u32 1.1754944e-38, %v2026
    %v2028 = vsel %vm2025, %v2027, %v2023
    %v2029 = vmul.f32 %v1957, %v1986
    %v2030 = vmul.f32 %v1958, %v2000
    %v2031 = vmul.f32 %v1959, %v2014
    %v2032 = vmul.f32 %v1960, %v2028
    %v2033 = vsel %vm176, %v2029, 0.0
    %v2034 = vsel %vm176, %v2030, 0.0
    %v2035 = vadd.f32 %v2033, %v2034
    %v2036 = vsel %vm176, %v2031, 0.0
    %v2037 = vadd.f32 %v2035, %v2036
    %v2038 = vsel %vm176, %v2032, 0.0
    %v2039 = vadd.f32 %v2037, %v2038
    %v2040 = vrot.slane %v2039, 4
    %v2041 = vadd.f32 %v2039, %v2040
    %v2042 = vrot.slane %v2041, 2
    %v2043 = vadd.f32 %v2041, %v2042
    %v2044 = vrot.slane %v2043, 1
    %v2045 = vadd.f32 %v2043, %v2044
    %v2046 = vrcp.pop %v2045
    %v2047 = vmul.f32 %v2045, %v2046
    %v2048 = vsub.f32 1.0, %v2047
    %v2049 = vmul.f32 %v2046, %v2048
    %v2050 = vadd.f32 %v2046, %v2049
    %vm2051 = vweird.f32 %v2045
    %vm2052 = vweird.f32 %v2046
    %vm2053 = vmor %vm2051, %vm2052
    %v2054 = vsel %vm2053, %v2046, %v2050
    %v2055 = vand.u32 2147483647, %v2045
    %vm2056 = vcmp.eq.f32.partialorder %v2055, 8.507059e+37
    %v2057 = vand.u32 %v2045, 2147483648
    %v2058 = vor.u32 1.1754944e-38, %v2057
    %v2059 = vsel %vm2056, %v2058, %v2054
    %v2060 = vmul.f32 %v2029, %v2059
    %v2061 = vmul.f32 %v2030, %v2059
    %v2062 = vmul.f32 %v2031, %v2059
    %v2063 = vmul.f32 %v2032, %v2059
    %v2064 = vsel %vm176, %v2060, 0.0
    %2065 = vadd.xlane.f32.xlu0 %v2064
    %v2066 = vpop.xlane.xlu0 %2065
    %v2067 = vsel %vm176, %v2061, 0.0
    %2068 = vadd.xlane.f32.xlu0 %v2067
    %v2069 = vpop.xlane.xlu0 %2068
    %v2070 = vsel %vm176, %v2062, 0.0
    %2071 = vadd.xlane.f32.xlu0 %v2070
    %v2072 = vpop.xlane.xlu0 %2071
    %v2073 = vsel %vm176, %v2063, 0.0
    %2074 = vadd.xlane.f32.xlu0 %v2073
    %v2075 = vpop.xlane.xlu0 %2074
    %v2076 = vrcp.pop %v2066
    %v2077 = vmul.f32 %v2066, %v2076
    %v2078 = vsub.f32 1.0, %v2077
    %v2079 = vmul.f32 %v2076, %v2078
    %v2080 = vadd.f32 %v2076, %v2079
    %vm2081 = vweird.f32 %v2066
    %vm2082 = vweird.f32 %v2076
    %vm2083 = vmor %vm2081, %vm2082
    %v2084 = vsel %vm2083, %v2076, %v2080
    %v2085 = vand.u32 2147483647, %v2066
    %vm2086 = vcmp.eq.f32.partialorder %v2085, 8.507059e+37
    %v2087 = vand.u32 %v2066, 2147483648
    %v2088 = vor.u32 1.1754944e-38, %v2087
    %v2089 = vsel %vm2086, %v2088, %v2084
    %v2090 = vrcp.pop %v2069
    %v2091 = vmul.f32 %v2069, %v2090
    %v2092 = vsub.f32 1.0, %v2091
    %v2093 = vmul.f32 %v2090, %v2092
    %v2094 = vadd.f32 %v2090, %v2093
    %vm2095 = vweird.f32 %v2069
    %vm2096 = vweird.f32 %v2090
    %vm2097 = vmor %vm2095, %vm2096
    %v2098 = vsel %vm2097, %v2090, %v2094
    %v2099 = vand.u32 2147483647, %v2069
    %vm2100 = vcmp.eq.f32.partialorder %v2099, 8.507059e+37
    %v2101 = vand.u32 %v2069, 2147483648
    %v2102 = vor.u32 1.1754944e-38, %v2101
    %v2103 = vsel %vm2100, %v2102, %v2098
    %v2104 = vrcp.pop %v2072
    %v2105 = vmul.f32 %v2072, %v2104
    %v2106 = vsub.f32 1.0, %v2105
    %v2107 = vmul.f32 %v2104, %v2106
    %v2108 = vadd.f32 %v2104, %v2107
    %vm2109 = vweird.f32 %v2072
    %vm2110 = vweird.f32 %v2104
    %vm2111 = vmor %vm2109, %vm2110
    %v2112 = vsel %vm2111, %v2104, %v2108
    %v2113 = vand.u32 2147483647, %v2072
    %vm2114 = vcmp.eq.f32.partialorder %v2113, 8.507059e+37
    %v2115 = vand.u32 %v2072, 2147483648
    %v2116 = vor.u32 1.1754944e-38, %v2115
    %v2117 = vsel %vm2114, %v2116, %v2112
    %v2118 = vrcp.pop %v2075
    %v2119 = vmul.f32 %v2075, %v2118
    %v2120 = vsub.f32 1.0, %v2119
    %v2121 = vmul.f32 %v2118, %v2120
    %v2122 = vadd.f32 %v2118, %v2121
    %vm2123 = vweird.f32 %v2075
    %vm2124 = vweird.f32 %v2118
    %vm2125 = vmor %vm2123, %vm2124
    %v2126 = vsel %vm2125, %v2118, %v2122
    %v2127 = vand.u32 2147483647, %v2075
    %vm2128 = vcmp.eq.f32.partialorder %v2127, 8.507059e+37
    %v2129 = vand.u32 %v2075, 2147483648
    %v2130 = vor.u32 1.1754944e-38, %v2129
    %v2131 = vsel %vm2128, %v2130, %v2126
    %v2132 = vmul.f32 %v2060, %v2089
    %v2133 = vmul.f32 %v2061, %v2103
    %v2134 = vmul.f32 %v2062, %v2117
    %v2135 = vmul.f32 %v2063, %v2131
    %v2136 = vsel %vm176, %v2132, 0.0
    %v2137 = vsel %vm176, %v2133, 0.0
    %v2138 = vadd.f32 %v2136, %v2137
    %v2139 = vsel %vm176, %v2134, 0.0
    %v2140 = vadd.f32 %v2138, %v2139
    %v2141 = vsel %vm176, %v2135, 0.0
    %v2142 = vadd.f32 %v2140, %v2141
    %v2143 = vrot.slane %v2142, 4
    %v2144 = vadd.f32 %v2142, %v2143
    %v2145 = vrot.slane %v2144, 2
    %v2146 = vadd.f32 %v2144, %v2145
    %v2147 = vrot.slane %v2146, 1
    %v2148 = vadd.f32 %v2146, %v2147
    %v2149 = vrcp.pop %v2148
    %v2150 = vmul.f32 %v2148, %v2149
    %v2151 = vsub.f32 1.0, %v2150
    %v2152 = vmul.f32 %v2149, %v2151
    %v2153 = vadd.f32 %v2149, %v2152
    %vm2154 = vweird.f32 %v2148
    %vm2155 = vweird.f32 %v2149
    %vm2156 = vmor %vm2154, %vm2155
    %v2157 = vsel %vm2156, %v2149, %v2153
    %v2158 = vand.u32 2147483647, %v2148
    %vm2159 = vcmp.eq.f32.partialorder %v2158, 8.507059e+37
    %v2160 = vand.u32 %v2148, 2147483648
    %v2161 = vor.u32 1.1754944e-38, %v2160
    %v2162 = vsel %vm2159, %v2161, %v2157
    %v2163 = vmul.f32 %v2132, %v2162
    %v2164 = vmul.f32 %v2133, %v2162
    %v2165 = vmul.f32 %v2134, %v2162
    %v2166 = vmul.f32 %v2135, %v2162
    %v2167 = vsel %vm176, %v2163, 0.0
    %2168 = vadd.xlane.f32.xlu0 %v2167
    %v2169 = vpop.xlane.xlu0 %2168
    %v2170 = vsel %vm176, %v2164, 0.0
    %2171 = vadd.xlane.f32.xlu0 %v2170
    %v2172 = vpop.xlane.xlu0 %2171
    %v2173 = vsel %vm176, %v2165, 0.0
    %2174 = vadd.xlane.f32.xlu0 %v2173
    %v2175 = vpop.xlane.xlu0 %2174
    %v2176 = vsel %vm176, %v2166, 0.0
    %2177 = vadd.xlane.f32.xlu0 %v2176
    %v2178 = vpop.xlane.xlu0 %2177
    %v2179 = vrcp.pop %v2169
    %v2180 = vmul.f32 %v2169, %v2179
    %v2181 = vsub.f32 1.0, %v2180
    %v2182 = vmul.f32 %v2179, %v2181
    %v2183 = vadd.f32 %v2179, %v2182
    %vm2184 = vweird.f32 %v2169
    %vm2185 = vweird.f32 %v2179
    %vm2186 = vmor %vm2184, %vm2185
    %v2187 = vsel %vm2186, %v2179, %v2183
    %v2188 = vand.u32 2147483647, %v2169
    %vm2189 = vcmp.eq.f32.partialorder %v2188, 8.507059e+37
    %v2190 = vand.u32 %v2169, 2147483648
    %v2191 = vor.u32 1.1754944e-38, %v2190
    %v2192 = vsel %vm2189, %v2191, %v2187
    %v2193 = vrcp.pop %v2172
    %v2194 = vmul.f32 %v2172, %v2193
    %v2195 = vsub.f32 1.0, %v2194
    %v2196 = vmul.f32 %v2193, %v2195
    %v2197 = vadd.f32 %v2193, %v2196
    %vm2198 = vweird.f32 %v2172
    %vm2199 = vweird.f32 %v2193
    %vm2200 = vmor %vm2198, %vm2199
    %v2201 = vsel %vm2200, %v2193, %v2197
    %v2202 = vand.u32 2147483647, %v2172
    %vm2203 = vcmp.eq.f32.partialorder %v2202, 8.507059e+37
    %v2204 = vand.u32 %v2172, 2147483648
    %v2205 = vor.u32 1.1754944e-38, %v2204
    %v2206 = vsel %vm2203, %v2205, %v2201
    %v2207 = vrcp.pop %v2175
    %v2208 = vmul.f32 %v2175, %v2207
    %v2209 = vsub.f32 1.0, %v2208
    %v2210 = vmul.f32 %v2207, %v2209
    %v2211 = vadd.f32 %v2207, %v2210
    %vm2212 = vweird.f32 %v2175
    %vm2213 = vweird.f32 %v2207
    %vm2214 = vmor %vm2212, %vm2213
    %v2215 = vsel %vm2214, %v2207, %v2211
    %v2216 = vand.u32 2147483647, %v2175
    %vm2217 = vcmp.eq.f32.partialorder %v2216, 8.507059e+37
    %v2218 = vand.u32 %v2175, 2147483648
    %v2219 = vor.u32 1.1754944e-38, %v2218
    %v2220 = vsel %vm2217, %v2219, %v2215
    %v2221 = vrcp.pop %v2178
    %v2222 = vmul.f32 %v2178, %v2221
    %v2223 = vsub.f32 1.0, %v2222
    %v2224 = vmul.f32 %v2221, %v2223
    %v2225 = vadd.f32 %v2221, %v2224
    %vm2226 = vweird.f32 %v2178
    %vm2227 = vweird.f32 %v2221
    %vm2228 = vmor %vm2226, %vm2227
    %v2229 = vsel %vm2228, %v2221, %v2225
    %v2230 = vand.u32 2147483647, %v2178
    %vm2231 = vcmp.eq.f32.partialorder %v2230, 8.507059e+37
    %v2232 = vand.u32 %v2178, 2147483648
    %v2233 = vor.u32 1.1754944e-38, %v2232
    %v2234 = vsel %vm2231, %v2233, %v2229
    %v2235 = vmul.f32 %v2163, %v2192
    %v2236 = vmul.f32 %v2164, %v2206
    %v2237 = vmul.f32 %v2165, %v2220
    %v2238 = vmul.f32 %v2166, %v2234
    %v2239 = vsel %vm176, %v2235, 0.0
    %v2240 = vsel %vm176, %v2236, 0.0
    %v2241 = vadd.f32 %v2239, %v2240
    %v2242 = vsel %vm176, %v2237, 0.0
    %v2243 = vadd.f32 %v2241, %v2242
    %v2244 = vsel %vm176, %v2238, 0.0
    %v2245 = vadd.f32 %v2243, %v2244
    %v2246 = vrot.slane %v2245, 4
    %v2247 = vadd.f32 %v2245, %v2246
    %v2248 = vrot.slane %v2247, 2
    %v2249 = vadd.f32 %v2247, %v2248
    %v2250 = vrot.slane %v2249, 1
    %v2251 = vadd.f32 %v2249, %v2250
    %v2252 = vrcp.pop %v2251
    %v2253 = vmul.f32 %v2251, %v2252
    %v2254 = vsub.f32 1.0, %v2253
    %v2255 = vmul.f32 %v2252, %v2254
    %v2256 = vadd.f32 %v2252, %v2255
    %vm2257 = vweird.f32 %v2251
    %vm2258 = vweird.f32 %v2252
    %vm2259 = vmor %vm2257, %vm2258
    %v2260 = vsel %vm2259, %v2252, %v2256
    %v2261 = vand.u32 2147483647, %v2251
    %vm2262 = vcmp.eq.f32.partialorder %v2261, 8.507059e+37
    %v2263 = vand.u32 %v2251, 2147483648
    %v2264 = vor.u32 1.1754944e-38, %v2263
    %v2265 = vsel %vm2262, %v2264, %v2260
    %v2266 = vmul.f32 %v2235, %v2265
    %v2267 = vmul.f32 %v2236, %v2265
    %v2268 = vmul.f32 %v2237, %v2265
    %v2269 = vmul.f32 %v2238, %v2265
    %v2270 = vld [vmem:[#allocation4] sm:$0xff]
    %v2271 = vld [vmem:[#allocation4 + $0x8] sm:$0xff]
    %v2272 = vld [vmem:[#allocation4 + $0x10] sm:$0xff]
    %v2273 = vld [vmem:[#allocation4 + $0x18] sm:$0xff]
    %v2275 = vsel %vm176, %v2266, 0
    %v2278 = vsel %vm176, %v2267, 0
    %v2281 = vsel %vm176, %v2268, 0
    %v2284 = vsel %vm176, %v2269, 0
    %2286 = vmatpush.msra.mxu0 0.0
    %2287 = vmatpush.msra.mxu0 0.0
    %2288 = vmatpush.msra.mxu0 0.0
    %2289 = vmatpush.msra.mxu0 0.0
    %2290 = vmatpush.msra.mxu0 0.0
    %2291 = vmatpush.msra.mxu0 0.0
    %2292 = vmatpush.msra.mxu0 0.0
    %2293 = vmatpush.msra.mxu0 0.0
    %2294 = vmatpush.msra.mxu0 0.0
    %2295 = vmatpush.msra.mxu0 0.0
    %2296 = vmatpush.msra.mxu0 0.0
    %2297 = vmatpush.msra.mxu0 0.0
    %2298 = vmatpush.msra.mxu0 %v2273
    %2299 = vmatpush.msra.mxu0 %v2272
    %2300 = vmatpush.msra.mxu0 %v2271
    %2301 = vmatpush.msra.mxu0 %v2270
    %2302 = vmatmul.f32.gmra.mxu0 %v2275
    %v2303 = vpop.f32.mrf.mxu0
    %v2304 = vadd.f32 0.0, %v2303
    %2305 = vmatmul.f32.gmra.mxu0 %v2278
    %v2306 = vpop.f32.mrf.mxu0
    %v2307 = vadd.f32 0.0, %v2306
    %2308 = vmatmul.f32.gmra.mxu0 %v2281
    %v2309 = vpop.f32.mrf.mxu0
    %v2310 = vadd.f32 0.0, %v2309
    %2311 = vmatmul.f32.gmra.mxu0 %v2284
    %v2312 = vpop.f32.mrf.mxu0
    %v2313 = vadd.f32 0.0, %v2312
    %2314 = vdwg.mxu0
    %v2316 = vsel %vm176, %v2304, 0
    %v2319 = vsel %vm176, %v2307, 0
    %v2322 = vsel %vm176, %v2310, 0
    %v2325 = vsel %vm176, %v2313, 0
    %2327 = vmatpush.xpose.msra.mxu0 0.0
    %2328 = vmatpush.xpose.msra.mxu0 0.0
    %2329 = vmatpush.xpose.msra.mxu0 0.0
    %2330 = vmatpush.xpose.msra.mxu0 0.0
    %2331 = vmatpush.xpose.msra.mxu0 0.0
    %2332 = vmatpush.xpose.msra.mxu0 0.0
    %2333 = vmatpush.xpose.msra.mxu0 0.0
    %2334 = vmatpush.xpose.msra.mxu0 0.0
    %2335 = vmatpush.xpose.msra.mxu0 0.0
    %2336 = vmatpush.xpose.msra.mxu0 0.0
    %2337 = vmatpush.xpose.msra.mxu0 0.0
    %2338 = vmatpush.xpose.msra.mxu0 0.0
    %2339 = vmatpush.xpose.msra.mxu0 %v2325
    %2340 = vmatpush.xpose.msra.mxu0 %v2322
    %2341 = vmatpush.xpose.msra.mxu0 %v2319
    %2342 = vmatpush.xpose.msra.mxu0 %v2316
    %2343 = vmatmul.f32.gmra.mxu0 %v2275
    %v2344 = vpop.f32.mrf.mxu0
    %v2345 = vadd.f32 0.0, %v2344
    %2346 = vmatmul.f32.gmra.mxu0 %v2278
    %v2347 = vpop.f32.mrf.mxu0
    %v2348 = vadd.f32 0.0, %v2347
    %2349 = vmatmul.f32.gmra.mxu0 %v2281
    %v2350 = vpop.f32.mrf.mxu0
    %v2351 = vadd.f32 0.0, %v2350
    %2352 = vmatmul.f32.gmra.mxu0 %v2284
    %v2353 = vpop.f32.mrf.mxu0
    %v2354 = vadd.f32 0.0, %v2353
    %2355 = vdwg.mxu0
    %v2356 = vld [vmem:[#allocation6] sm:$0xff]
    %v2357 = vld [vmem:[#allocation6 + $0x8] sm:$0xff]
    %v2358 = vld [vmem:[#allocation6 + $0x10] sm:$0xff]
    %v2359 = vld [vmem:[#allocation6 + $0x18] sm:$0xff]
    %v2360 = vmul.f32 %v2356, %v2345
    %v2361 = vmul.f32 %v2357, %v2348
    %v2362 = vmul.f32 %v2358, %v2351
    %v2363 = vmul.f32 %v2359, %v2354
    %v2364 = vld [vmem:[#allocation7] sm:$0xff]
    %v2365 = vld [vmem:[#allocation7 + $0x8] sm:$0xff]
    %v2366 = vld [vmem:[#allocation7 + $0x10] sm:$0xff]
    %v2367 = vld [vmem:[#allocation7 + $0x18] sm:$0xff]
    %v2368 = vmul.f32 %v2364, %v2345
    %v2369 = vmul.f32 %v2365, %v2348
    %v2370 = vmul.f32 %v2366, %v2351
    %v2371 = vmul.f32 %v2367, %v2354
    %v2372 = vld [vmem:[#allocation9] sm:$0xff]
    %v2373 = vld [vmem:[#allocation9 + $0x8] sm:$0xff]
    %v2374 = vld [vmem:[#allocation9 + $0x10] sm:$0xff]
    %v2375 = vld [vmem:[#allocation9 + $0x18] sm:$0xff]
    %v2376 = vmul.f32 %v2372, %v2345
    %v2377 = vmul.f32 %v2373, %v2348
    %v2378 = vmul.f32 %v2374, %v2351
    %v2379 = vmul.f32 %v2375, %v2354
    %2384 = vrot.lane.b32.xlu0 %v2368, 32
    %v2385 = vpop.permute.xlu0 %2384
    %2386 = vrot.lane.b32.xlu0 %v2369, 32
    %v2387 = vpop.permute.xlu0 %2386
    %2388 = vrot.lane.b32.xlu0 %v2370, 32
    %v2389 = vpop.permute.xlu0 %2388
    %2390 = vrot.lane.b32.xlu0 %v2371, 32
    %v2391 = vpop.permute.xlu0 %2390
    %2400 = vrot.lane.b32.xlu0 %v2376, 64
    %v2401 = vpop.permute.xlu0 %2400
    %2402 = vrot.lane.b32.xlu0 %v2377, 64
    %v2403 = vpop.permute.xlu0 %2402
    %2404 = vrot.lane.b32.xlu0 %v2378, 64
    %v2405 = vpop.permute.xlu0 %2404
    %2406 = vrot.lane.b32.xlu0 %v2379, 64
    %v2407 = vpop.permute.xlu0 %2406
    %v2412 = vsel %vm176, %v2360, %v2385
    %v2413 = vsel %vm176, %v2361, %v2387
    %v2414 = vsel %vm176, %v2362, %v2389
    %v2415 = vsel %vm176, %v2363, %v2391
    %vm2416 = vcmask 523264
    %v2417 = vsel %vm2416, %v2412, %v2401
    %v2418 = vsel %vm2416, %v2413, %v2403
    %v2419 = vsel %vm2416, %v2414, %v2405
    %v2420 = vsel %vm2416, %v2415, %v2407
    %v2421 = vld [vmem:[#allocation10] sm:$0xff]
    %v2422 = vld [vmem:[#allocation10 + $0x8] sm:$0xff]
    %v2423 = vld [vmem:[#allocation10 + $0x10] sm:$0xff]
    %v2424 = vld [vmem:[#allocation10 + $0x18] sm:$0xff]
    %v2425 = vmul.f32 %v2421, %v2345
    %v2426 = vmul.f32 %v2422, %v2348
    %v2427 = vmul.f32 %v2423, %v2351
    %v2428 = vmul.f32 %v2424, %v2354
    %v2429 = vld [vmem:[#allocation12] sm:$0xff]
    %v2430 = vld [vmem:[#allocation12 + $0x8] sm:$0xff]
    %v2431 = vld [vmem:[#allocation12 + $0x10] sm:$0xff]
    %v2432 = vld [vmem:[#allocation12 + $0x18] sm:$0xff]
    %v2433 = vmul.f32 %v2429, %v2345
    %v2434 = vmul.f32 %v2430, %v2348
    %v2435 = vmul.f32 %v2431, %v2351
    %v2436 = vmul.f32 %v2432, %v2354
    %2441 = vrot.lane.b32.xlu0 %v2433, 32
    %v2442 = vpop.permute.xlu0 %2441
    %2443 = vrot.lane.b32.xlu0 %v2434, 32
    %v2444 = vpop.permute.xlu0 %2443
    %2445 = vrot.lane.b32.xlu0 %v2435, 32
    %v2446 = vpop.permute.xlu0 %2445
    %2447 = vrot.lane.b32.xlu0 %v2436, 32
    %v2448 = vpop.permute.xlu0 %2447
    %v2453 = vsel %vm176, %v2425, %v2442
    %v2454 = vsel %vm176, %v2426, %v2444
    %v2455 = vsel %vm176, %v2427, %v2446
    %v2456 = vsel %vm176, %v2428, %v2448
    %v2457 = vld [vmem:[#allocation13] sm:$0xff]
    %v2458 = vld [vmem:[#allocation13 + $0x8] sm:$0xff]
    %v2459 = vld [vmem:[#allocation13 + $0x10] sm:$0xff]
    %v2460 = vld [vmem:[#allocation13 + $0x18] sm:$0xff]
    %v2461 = vmul.f32 %v2457, %v2345
    %v2462 = vmul.f32 %v2458, %v2348
    %v2463 = vmul.f32 %v2459, %v2351
    %v2464 = vmul.f32 %v2460, %v2354
    %v2465 = vld [vmem:[#allocation15] sm:$0xff]
    %v2466 = vld [vmem:[#allocation15 + $0x8] sm:$0xff]
    %v2468 = vsel %vm176, %v2465, 0
    %v2471 = vsel %vm176, %v2466, 0
    %2473 = vmatpush.msra.mxu0 0.0
    %2474 = vmatpush.msra.mxu0 0.0
    %2475 = vmatpush.msra.mxu0 0.0
    %2476 = vmatpush.msra.mxu0 0.0
    %2477 = vmatpush.msra.mxu0 0.0
    %2478 = vmatpush.msra.mxu0 0.0
    %2479 = vmatpush.msra.mxu0 0.0
    %2480 = vmatpush.msra.mxu0 0.0
    %2481 = vmatpush.msra.mxu0 0.0
    %2482 = vmatpush.msra.mxu0 0.0
    %2483 = vmatpush.msra.mxu0 0.0
    %2484 = vmatpush.msra.mxu0 0.0
    %2485 = vmatpush.msra.mxu0 %v2420
    %2486 = vmatpush.msra.mxu0 %v2419
    %2487 = vmatpush.msra.mxu0 %v2418
    %2488 = vmatpush.msra.mxu0 %v2417
    %2489 = vmatmul.f32.gmra.mxu0 %v2468
    %v2490 = vpop.f32.mrf.mxu0
    %v2491 = vadd.f32 0.0, %v2490
    %2492 = vmatmul.f32.gmra.mxu0 %v2471
    %v2493 = vpop.f32.mrf.mxu0
    %v2494 = vadd.f32 0.0, %v2493
    %2495 = vdwg.mxu0
    %v2497 = vsel %vm176, 0.0, 0
    %2499 = vmatpush.msra.mxu0 0.0
    %2500 = vmatpush.msra.mxu0 0.0
    %2501 = vmatpush.msra.mxu0 0.0
    %2502 = vmatpush.msra.mxu0 0.0
    %2503 = vmatpush.msra.mxu0 0.0
    %2504 = vmatpush.msra.mxu0 0.0
    %2505 = vmatpush.msra.mxu0 0.0
    %2506 = vmatpush.msra.mxu0 0.0
    %2507 = vmatpush.msra.mxu0 0.0
    %2508 = vmatpush.msra.mxu0 0.0
    %2509 = vmatpush.msra.mxu0 0.0
    %2510 = vmatpush.msra.mxu0 0.0
    %2511 = vmatpush.msra.mxu0 %v2456
    %2512 = vmatpush.msra.mxu0 %v2455
    %2513 = vmatpush.msra.mxu0 %v2454
    %2514 = vmatpush.msra.mxu0 %v2453
    %2515 = vmatmul.f32.gmra.mxu0 %v2497
    %v2516 = vpop.f32.mrf.mxu0
    %v2517 = vadd.f32 0.0, %v2516
    %2518 = vdwg.mxu0
    %v2519 = vadd.f32 %v2491, %v2517
    %v2520 = vxor.u32 %v2519, 2147483648
    %v2521 = vmul.f32 %v2520, 1.442695
    %v2522 = vpow.pop %v2521
    %v2523 = vadd.f32 %v2522, 1.0
    %v2524 = vrcp.pop %v2523
    %v2525 = vmul.f32 %v2523, %v2524
    %v2526 = vsub.f32 1.0, %v2525
    %v2527 = vmul.f32 %v2524, %v2526
    %v2528 = vadd.f32 %v2524, %v2527
    %vm2529 = vweird.f32 %v2523
    %vm2530 = vweird.f32 %v2524
    %vm2531 = vmor %vm2529, %vm2530
    %v2532 = vsel %vm2531, %v2524, %v2528
    %v2533 = vand.u32 2147483647, %v2523
    %vm2534 = vcmp.eq.f32.partialorder %v2533, 8.507059e+37
    %v2535 = vand.u32 %v2523, 2147483648
    %v2536 = vor.u32 1.1754944e-38, %v2535
    %v2537 = vsel %vm2534, %v2536, %v2532
    %v2538 = vmul.f32 1.0, %v2537
    %v2539 = vmul.f32 %v2538, 0.0
    %v2541 = vsel %vm176, %v2539, 0
    %2543 = vmatpush.msra.mxu0 0.0
    %2544 = vmatpush.msra.mxu0 0.0
    %2545 = vmatpush.msra.mxu0 0.0
    %2546 = vmatpush.msra.mxu0 0.0
    %2547 = vmatpush.msra.mxu0 0.0
    %2548 = vmatpush.msra.mxu0 0.0
    %2549 = vmatpush.msra.mxu0 0.0
    %2550 = vmatpush.msra.mxu0 0.0
    %2551 = vmatpush.msra.mxu0 0.0
    %2552 = vmatpush.msra.mxu0 0.0
    %2553 = vmatpush.msra.mxu0 0.0
    %2554 = vmatpush.msra.mxu0 0.0
    %2555 = vmatpush.msra.mxu0 %v2464
    %2556 = vmatpush.msra.mxu0 %v2463
    %2557 = vmatpush.msra.mxu0 %v2462
    %2558 = vmatpush.msra.mxu0 %v2461
    %2559 = vmatmul.f32.gmra.mxu0 %v2541
    %v2560 = vpop.f32.mrf.mxu0
    %v2561 = vadd.f32 0.0, %v2560
    %2562 = vdwg.mxu0
    %2564 = vrot.lane.b32.xlu0 %v2561, 64
    %v2565 = vpop.permute.xlu0 %2564
    %v2567 = vadd.f32 %v2491, %v2565
    %v2568 = vtanh.pop %v2567
    %v2569 = vsub.f32 0.0, %v2568
    %2571 = vrot.lane.b32.xlu0 %v2569, 96
    %v2572 = vpop.permute.xlu0 %2571
    %v2574 = vmul.f32 %v2538, %v2572
    %2576 = vrot.lane.b32.xlu0 %v2574, 32
    %v2577 = vpop.permute.xlu0 %2576
    %v2579 = vadd.f32 %v2568, %v2577
    %2581 = vrot.lane.b32.xlu0 %v2579, 64
    %v2582 = vpop.permute.xlu0 %2581
    %vm2584 = vcmask 254976
    %2585 = vst.msk [vmem:[%s9] sm:$0x3] %vm2584, %v2582
    %v2586 = vsel %vm176, %v2582, 0
    %2588 = vmatpush.msra.mxu0 0.0
    %2589 = vmatpush.msra.mxu0 0.0
    %2590 = vmatpush.msra.mxu0 0.0
    %2591 = vmatpush.msra.mxu0 0.0
    %2592 = vmatpush.msra.mxu0 0.0
    %2593 = vmatpush.msra.mxu0 0.0
    %2594 = vmatpush.msra.mxu0 0.0
    %2595 = vmatpush.msra.mxu0 0.0
    %2596 = vmatpush.msra.mxu0 0.0
    %2597 = vmatpush.msra.mxu0 0.0
    %2598 = vmatpush.msra.mxu0 0.0
    %2599 = vmatpush.msra.mxu0 0.0
    %2600 = vmatpush.msra.mxu0 %v2456
    %2601 = vmatpush.msra.mxu0 %v2455
    %2602 = vmatpush.msra.mxu0 %v2454
    %2603 = vmatpush.msra.mxu0 %v2453
    %2604 = vmatmul.f32.gmra.mxu0 %v2586
    %v2605 = vpop.f32.mrf.mxu0
    %v2606 = vadd.f32 0.0, %v2605
    %2607 = vdwg.mxu0
    %v2609 = vrot.slane %v2606, 6
    %v2611 = vadd.f32 %v2491, %v2609
    %v2612 = vxor.u32 %v2611, 2147483648
    %v2613 = vmul.f32 %v2612, 1.442695
    %v2614 = vpow.pop %v2613
    %v2615 = vadd.f32 %v2614, 1.0
    %v2616 = vrcp.pop %v2615
    %v2617 = vmul.f32 %v2615, %v2616
    %v2618 = vsub.f32 1.0, %v2617
    %v2619 = vmul.f32 %v2616, %v2618
    %v2620 = vadd.f32 %v2616, %v2619
    %vm2621 = vweird.f32 %v2615
    %vm2622 = vweird.f32 %v2616
    %vm2623 = vmor %vm2621, %vm2622
    %v2624 = vsel %vm2623, %v2616, %v2620
    %v2625 = vand.u32 2147483647, %v2615
    %vm2626 = vcmp.eq.f32.partialorder %v2625, 8.507059e+37
    %v2627 = vand.u32 %v2615, 2147483648
    %v2628 = vor.u32 1.1754944e-38, %v2627
    %v2629 = vsel %vm2626, %v2628, %v2624
    %v2630 = vmul.f32 1.0, %v2629
    %v2631 = vrot.slane %v2579, 6
    %2632 = vrot.lane.b32.xlu0 %v2631, 64
    %v2633 = vpop.permute.xlu0 %2632
    %v2635 = vmul.f32 %v2630, %v2633
    %v2637 = vrot.slane %v2635, 2
    %v2638 = vsel %vm176, %v2637, 0
    %2640 = vmatpush.msra.mxu0 0.0
    %2641 = vmatpush.msra.mxu0 0.0
    %2642 = vmatpush.msra.mxu0 0.0
    %2643 = vmatpush.msra.mxu0 0.0
    %2644 = vmatpush.msra.mxu0 0.0
    %2645 = vmatpush.msra.mxu0 0.0
    %2646 = vmatpush.msra.mxu0 0.0
    %2647 = vmatpush.msra.mxu0 0.0
    %2648 = vmatpush.msra.mxu0 0.0
    %2649 = vmatpush.msra.mxu0 0.0
    %2650 = vmatpush.msra.mxu0 0.0
    %2651 = vmatpush.msra.mxu0 0.0
    %2652 = vmatpush.msra.mxu0 %v2464
    %2653 = vmatpush.msra.mxu0 %v2463
    %2654 = vmatpush.msra.mxu0 %v2462
    %2655 = vmatpush.msra.mxu0 %v2461
    %2656 = vmatmul.f32.gmra.mxu0 %v2638
    %v2657 = vpop.f32.mrf.mxu0
    %v2658 = vadd.f32 0.0, %v2657
    %2659 = vdwg.mxu0
    %v2661 = vrot.slane %v2658, 6
    %2662 = vrot.lane.b32.xlu0 %v2661, 64
    %v2663 = vpop.permute.xlu0 %2662
    %v2665 = vadd.f32 %v2491, %v2663
    %v2666 = vtanh.pop %v2665
    %v2668 = vrot.slane %v2666, 2
    %v2670 = vsub.f32 %v2579, %v2668
    %v2672 = vrot.slane %v2670, 6
    %2673 = vrot.lane.b32.xlu0 %v2672, 96
    %v2674 = vpop.permute.xlu0 %2673
    %v2676 = vmul.f32 %v2630, %v2674
    %2678 = vrot.lane.b32.xlu0 %v2676, 32
    %v2679 = vpop.permute.xlu0 %2678
    %v2681 = vadd.f32 %v2666, %v2679
    %2683 = vrot.lane.b32.xlu0 %v2681, 64
    %v2684 = vpop.permute.xlu0 %2683
    %vm2686 = vcmask 257026
    %2687 = vst.msk [vmem:[%s9] sm:$0xc] %vm2686, %v2684
    %v2688 = vrot.slane %v2681, 2
    %2689 = vrot.lane.b32.xlu0 %v2688, 64
    %v2690 = vpop.permute.xlu0 %2689
    %v2691 = vsel %vm176, %v2690, 0
    %2693 = vmatpush.msra.mxu0 0.0
    %2694 = vmatpush.msra.mxu0 0.0
    %2695 = vmatpush.msra.mxu0 0.0
    %2696 = vmatpush.msra.mxu0 0.0
    %2697 = vmatpush.msra.mxu0 0.0
    %2698 = vmatpush.msra.mxu0 0.0
    %2699 = vmatpush.msra.mxu0 0.0
    %2700 = vmatpush.msra.mxu0 0.0
    %2701 = vmatpush.msra.mxu0 0.0
    %2702 = vmatpush.msra.mxu0 0.0
    %2703 = vmatpush.msra.mxu0 0.0
    %2704 = vmatpush.msra.mxu0 0.0
    %2705 = vmatpush.msra.mxu0 %v2456
    %2706 = vmatpush.msra.mxu0 %v2455
    %2707 = vmatpush.msra.mxu0 %v2454
    %2708 = vmatpush.msra.mxu0 %v2453
    %2709 = vmatmul.f32.gmra.mxu0 %v2691
    %v2710 = vpop.f32.mrf.mxu0
    %v2711 = vadd.f32 0.0, %v2710
    %2712 = vdwg.mxu0
    %v2714 = vrot.slane %v2711, 4
    %v2716 = vadd.f32 %v2491, %v2714
    %v2717 = vxor.u32 %v2716, 2147483648
    %v2718 = vmul.f32 %v2717, 1.442695
    %v2719 = vpow.pop %v2718
    %v2720 = vadd.f32 %v2719, 1.0
    %v2721 = vrcp.pop %v2720
    %v2722 = vmul.f32 %v2720, %v2721
    %v2723 = vsub.f32 1.0, %v2722
    %v2724 = vmul.f32 %v2721, %v2723
    %v2725 = vadd.f32 %v2721, %v2724
    %vm2726 = vweird.f32 %v2720
    %vm2727 = vweird.f32 %v2721
    %vm2728 = vmor %vm2726, %vm2727
    %v2729 = vsel %vm2728, %v2721, %v2725
    %v2730 = vand.u32 2147483647, %v2720
    %vm2731 = vcmp.eq.f32.partialorder %v2730, 8.507059e+37
    %v2732 = vand.u32 %v2720, 2147483648
    %v2733 = vor.u32 1.1754944e-38, %v2732
    %v2734 = vsel %vm2731, %v2733, %v2729
    %v2735 = vmul.f32 1.0, %v2734
    %v2736 = vrot.slane %v2681, 6
    %2737 = vrot.lane.b32.xlu0 %v2736, 64
    %v2738 = vpop.permute.xlu0 %2737
    %v2740 = vmul.f32 %v2735, %v2738
    %v2742 = vrot.slane %v2740, 4
    %v2743 = vsel %vm176, %v2742, 0
    %2745 = vmatpush.msra.mxu0 0.0
    %2746 = vmatpush.msra.mxu0 0.0
    %2747 = vmatpush.msra.mxu0 0.0
    %2748 = vmatpush.msra.mxu0 0.0
    %2749 = vmatpush.msra.mxu0 0.0
    %2750 = vmatpush.msra.mxu0 0.0
    %2751 = vmatpush.msra.mxu0 0.0
    %2752 = vmatpush.msra.mxu0 0.0
    %2753 = vmatpush.msra.mxu0 0.0
    %2754 = vmatpush.msra.mxu0 0.0
    %2755 = vmatpush.msra.mxu0 0.0
    %2756 = vmatpush.msra.mxu0 0.0
    %2757 = vmatpush.msra.mxu0 %v2464
    %2758 = vmatpush.msra.mxu0 %v2463
    %2759 = vmatpush.msra.mxu0 %v2462
    %2760 = vmatpush.msra.mxu0 %v2461
    %2761 = vmatmul.f32.gmra.mxu0 %v2743
    %v2762 = vpop.f32.mrf.mxu0
    %v2763 = vadd.f32 0.0, %v2762
    %2764 = vdwg.mxu0
    %v2766 = vrot.slane %v2763, 4
    %2767 = vrot.lane.b32.xlu0 %v2766, 64
    %v2768 = vpop.permute.xlu0 %2767
    %v2770 = vadd.f32 %v2491, %v2768
    %v2771 = vtanh.pop %v2770
    %v2773 = vrot.slane %v2771, 2
    %v2775 = vsub.f32 %v2681, %v2773
    %v2777 = vrot.slane %v2775, 6
    %2778 = vrot.lane.b32.xlu0 %v2777, 96
    %v2779 = vpop.permute.xlu0 %2778
    %v2781 = vmul.f32 %v2735, %v2779
    %2783 = vrot.lane.b32.xlu0 %v2781, 32
    %v2784 = vpop.permute.xlu0 %2783
    %v2786 = vadd.f32 %v2771, %v2784
    %2788 = vrot.lane.b32.xlu0 %v2786, 64
    %v2789 = vpop.permute.xlu0 %2788
    %vm2791 = vcmask 259076
    %2792 = vst.msk [vmem:[%s9] sm:$0x30] %vm2791, %v2789
    %v2793 = vrot.slane %v2786, 4
    %2794 = vrot.lane.b32.xlu0 %v2793, 64
    %v2795 = vpop.permute.xlu0 %2794
    %v2796 = vsel %vm176, %v2795, 0
    %2798 = vmatpush.msra.mxu0 0.0
    %2799 = vmatpush.msra.mxu0 0.0
    %2800 = vmatpush.msra.mxu0 0.0
    %2801 = vmatpush.msra.mxu0 0.0
    %2802 = vmatpush.msra.mxu0 0.0
    %2803 = vmatpush.msra.mxu0 0.0
    %2804 = vmatpush.msra.mxu0 0.0
    %2805 = vmatpush.msra.mxu0 0.0
    %2806 = vmatpush.msra.mxu0 0.0
    %2807 = vmatpush.msra.mxu0 0.0
    %2808 = vmatpush.msra.mxu0 0.0
    %2809 = vmatpush.msra.mxu0 0.0
    %2810 = vmatpush.msra.mxu0 %v2456
    %2811 = vmatpush.msra.mxu0 %v2455
    %2812 = vmatpush.msra.mxu0 %v2454
    %2813 = vmatpush.msra.mxu0 %v2453
    %2814 = vmatmul.f32.gmra.mxu0 %v2796
    %v2815 = vpop.f32.mrf.mxu0
    %v2816 = vadd.f32 0.0, %v2815
    %2817 = vdwg.mxu0
    %v2819 = vrot.slane %v2816, 2
    %v2821 = vadd.f32 %v2491, %v2819
    %v2822 = vxor.u32 %v2821, 2147483648
    %v2823 = vmul.f32 %v2822, 1.442695
    %v2824 = vpow.pop %v2823
    %v2825 = vadd.f32 %v2824, 1.0
    %v2826 = vrcp.pop %v2825
    %v2827 = vmul.f32 %v2825, %v2826
    %v2828 = vsub.f32 1.0, %v2827
    %v2829 = vmul.f32 %v2826, %v2828
    %v2830 = vadd.f32 %v2826, %v2829
    %vm2831 = vweird.f32 %v2825
    %vm2832 = vweird.f32 %v2826
    %vm2833 = vmor %vm2831, %vm2832
    %v2834 = vsel %vm2833, %v2826, %v2830
    %v2835 = vand.u32 2147483647, %v2825
    %vm2836 = vcmp.eq.f32.partialorder %v2835, 8.507059e+37
    %v2837 = vand.u32 %v2825, 2147483648
    %v2838 = vor.u32 1.1754944e-38, %v2837
    %v2839 = vsel %vm2836, %v2838, %v2834
    %v2840 = vmul.f32 1.0, %v2839
    %v2841 = vrot.slane %v2786, 6
    %2842 = vrot.lane.b32.xlu0 %v2841, 64
    %v2843 = vpop.permute.xlu0 %2842
    %v2845 = vmul.f32 %v2840, %v2843
    %v2847 = vrot.slane %v2845, 6
    %v2848 = vsel %vm176, %v2847, 0
    %2850 = vmatpush.msra.mxu0 0.0
    %2851 = vmatpush.msra.mxu0 0.0
    %2852 = vmatpush.msra.mxu0 0.0
    %2853 = vmatpush.msra.mxu0 0.0
    %2854 = vmatpush.msra.mxu0 0.0
    %2855 = vmatpush.msra.mxu0 0.0
    %2856 = vmatpush.msra.mxu0 0.0
    %2857 = vmatpush.msra.mxu0 0.0
    %2858 = vmatpush.msra.mxu0 0.0
    %2859 = vmatpush.msra.mxu0 0.0
    %2860 = vmatpush.msra.mxu0 0.0
    %2861 = vmatpush.msra.mxu0 0.0
    %2862 = vmatpush.msra.mxu0 %v2464
    %2863 = vmatpush.msra.mxu0 %v2463
    %2864 = vmatpush.msra.mxu0 %v2462
    %2865 = vmatpush.msra.mxu0 %v2461
    %2866 = vmatmul.f32.gmra.mxu0 %v2848
    %v2867 = vpop.f32.mrf.mxu0
    %v2868 = vadd.f32 0.0, %v2867
    %2869 = vdwg.mxu0
    %v2871 = vrot.slane %v2868, 2
    %2872 = vrot.lane.b32.xlu0 %v2871, 64
    %v2873 = vpop.permute.xlu0 %2872
    %v2875 = vadd.f32 %v2491, %v2873
    %v2876 = vtanh.pop %v2875
    %v2878 = vrot.slane %v2876, 2
    %v2880 = vsub.f32 %v2786, %v2878
    %v2882 = vrot.slane %v2880, 6
    %2883 = vrot.lane.b32.xlu0 %v2882, 96
    %v2884 = vpop.permute.xlu0 %2883
    %v2886 = vmul.f32 %v2840, %v2884
    %2888 = vrot.lane.b32.xlu0 %v2886, 32
    %v2889 = vpop.permute.xlu0 %2888
    %v2891 = vadd.f32 %v2876, %v2889
    %2893 = vrot.lane.b32.xlu0 %v2891, 64
    %v2894 = vpop.permute.xlu0 %2893
    %vm2896 = vcmask 261126
    %2897 = vst.msk [vmem:[%s9] sm:$0xc0] %vm2896, %v2894
    %v2898 = vrot.slane %v2891, 6
    %2899 = vrot.lane.b32.xlu0 %v2898, 64
    %v2900 = vpop.permute.xlu0 %2899
    %v2901 = vsel %vm176, %v2900, 0
    %2903 = vmatpush.msra.mxu0 0.0
    %2904 = vmatpush.msra.mxu0 0.0
    %2905 = vmatpush.msra.mxu0 0.0
    %2906 = vmatpush.msra.mxu0 0.0
    %2907 = vmatpush.msra.mxu0 0.0
    %2908 = vmatpush.msra.mxu0 0.0
    %2909 = vmatpush.msra.mxu0 0.0
    %2910 = vmatpush.msra.mxu0 0.0
    %2911 = vmatpush.msra.mxu0 0.0
    %2912 = vmatpush.msra.mxu0 0.0
    %2913 = vmatpush.msra.mxu0 0.0
    %2914 = vmatpush.msra.mxu0 0.0
    %2915 = vmatpush.msra.mxu0 %v2456
    %2916 = vmatpush.msra.mxu0 %v2455
    %2917 = vmatpush.msra.mxu0 %v2454
    %2918 = vmatpush.msra.mxu0 %v2453
    %2919 = vmatmul.f32.gmra.mxu0 %v2901
    %v2920 = vpop.f32.mrf.mxu0
    %v2921 = vadd.f32 0.0, %v2920
    %2922 = vdwg.mxu0
    %v2923 = vadd.f32 %v2494, %v2921
    %v2924 = vxor.u32 %v2923, 2147483648
    %v2925 = vmul.f32 %v2924, 1.442695
    %v2926 = vpow.pop %v2925
    %v2927 = vadd.f32 %v2926, 1.0
    %v2928 = vrcp.pop %v2927
    %v2929 = vmul.f32 %v2927, %v2928
    %v2930 = vsub.f32 1.0, %v2929
    %v2931 = vmul.f32 %v2928, %v2930
    %v2932 = vadd.f32 %v2928, %v2931
    %vm2933 = vweird.f32 %v2927
    %vm2934 = vweird.f32 %v2928
    %vm2935 = vmor %vm2933, %vm2934
    %v2936 = vsel %vm2935, %v2928, %v2932
    %v2937 = vand.u32 2147483647, %v2927
    %vm2938 = vcmp.eq.f32.partialorder %v2937, 8.507059e+37
    %v2939 = vand.u32 %v2927, 2147483648
    %v2940 = vor.u32 1.1754944e-38, %v2939
    %v2941 = vsel %vm2938, %v2940, %v2936
    %v2942 = vmul.f32 1.0, %v2941
    %v2944 = vmul.f32 %v2942, %v2900
    %v2946 = vsel %vm176, %v2944, 0
    %2948 = vmatpush.msra.mxu0 0.0
    %2949 = vmatpush.msra.mxu0 0.0
    %2950 = vmatpush.msra.mxu0 0.0
    %2951 = vmatpush.msra.mxu0 0.0
    %2952 = vmatpush.msra.mxu0 0.0
    %2953 = vmatpush.msra.mxu0 0.0
    %2954 = vmatpush.msra.mxu0 0.0
    %2955 = vmatpush.msra.mxu0 0.0
    %2956 = vmatpush.msra.mxu0 0.0
    %2957 = vmatpush.msra.mxu0 0.0
    %2958 = vmatpush.msra.mxu0 0.0
    %2959 = vmatpush.msra.mxu0 0.0
    %2960 = vmatpush.msra.mxu0 %v2464
    %2961 = vmatpush.msra.mxu0 %v2463
    %2962 = vmatpush.msra.mxu0 %v2462
    %2963 = vmatpush.msra.mxu0 %v2461
    %2964 = vmatmul.f32.gmra.mxu0 %v2946
    %v2965 = vpop.f32.mrf.mxu0
    %v2966 = vadd.f32 0.0, %v2965
    %2967 = vdwg.mxu0
    %2969 = vrot.lane.b32.xlu0 %v2966, 64
    %v2970 = vpop.permute.xlu0 %2969
    %v2972 = vadd.f32 %v2494, %v2970
    %v2973 = vtanh.pop %v2972
    %v2975 = vrot.slane %v2973, 2
    %v2977 = vsub.f32 %v2891, %v2975
    %v2979 = vrot.slane %v2977, 6
    %2980 = vrot.lane.b32.xlu0 %v2979, 96
    %v2981 = vpop.permute.xlu0 %2980
    %v2983 = vmul.f32 %v2942, %v2981
    %2985 = vrot.lane.b32.xlu0 %v2983, 32
    %v2986 = vpop.permute.xlu0 %2985
    %v2988 = vadd.f32 %v2973, %v2986
    %2990 = vrot.lane.b32.xlu0 %v2988, 64
    %v2991 = vpop.permute.xlu0 %2990
    %2993 = vst.msk [vmem:[%s9 + $0x8] sm:$0x3] %vm2584, %v2991
    %v2994 = vsel %vm176, %v2991, 0
    %2996 = vmatpush.msra.mxu0 0.0
    %2997 = vmatpush.msra.mxu0 0.0
    %2998 = vmatpush.msra.mxu0 0.0
    %2999 = vmatpush.msra.mxu0 0.0
    %3000 = vmatpush.msra.mxu0 0.0
    %3001 = vmatpush.msra.mxu0 0.0
    %3002 = vmatpush.msra.mxu0 0.0
    %3003 = vmatpush.msra.mxu0 0.0
    %3004 = vmatpush.msra.mxu0 0.0
    %3005 = vmatpush.msra.mxu0 0.0
    %3006 = vmatpush.msra.mxu0 0.0
    %3007 = vmatpush.msra.mxu0 0.0
    %3008 = vmatpush.msra.mxu0 %v2456
    %3009 = vmatpush.msra.mxu0 %v2455
    %3010 = vmatpush.msra.mxu0 %v2454
    %3011 = vmatpush.msra.mxu0 %v2453
    %3012 = vmatmul.f32.gmra.mxu0 %v2994
    %v3013 = vpop.f32.mrf.mxu0
    %v3014 = vadd.f32 0.0, %v3013
    %3015 = vdwg.mxu0
    %v3017 = vrot.slane %v3014, 6
    %v3019 = vadd.f32 %v2494, %v3017
    %v3020 = vxor.u32 %v3019, 2147483648
    %v3021 = vmul.f32 %v3020, 1.442695
    %v3022 = vpow.pop %v3021
    %v3023 = vadd.f32 %v3022, 1.0
    %v3024 = vrcp.pop %v3023
    %v3025 = vmul.f32 %v3023, %v3024
    %v3026 = vsub.f32 1.0, %v3025
    %v3027 = vmul.f32 %v3024, %v3026
    %v3028 = vadd.f32 %v3024, %v3027
    %vm3029 = vweird.f32 %v3023
    %vm3030 = vweird.f32 %v3024
    %vm3031 = vmor %vm3029, %vm3030
    %v3032 = vsel %vm3031, %v3024, %v3028
    %v3033 = vand.u32 2147483647, %v3023
    %vm3034 = vcmp.eq.f32.partialorder %v3033, 8.507059e+37
    %v3035 = vand.u32 %v3023, 2147483648
    %v3036 = vor.u32 1.1754944e-38, %v3035
    %v3037 = vsel %vm3034, %v3036, %v3032
    %v3038 = vmul.f32 1.0, %v3037
    %v3039 = vrot.slane %v2988, 6
    %3040 = vrot.lane.b32.xlu0 %v3039, 64
    %v3041 = vpop.permute.xlu0 %3040
    %v3043 = vmul.f32 %v3038, %v3041
    %v3045 = vrot.slane %v3043, 2
    %v3046 = vsel %vm176, %v3045, 0
    %3048 = vmatpush.msra.mxu0 0.0
    %3049 = vmatpush.msra.mxu0 0.0
    %3050 = vmatpush.msra.mxu0 0.0
    %3051 = vmatpush.msra.mxu0 0.0
    %3052 = vmatpush.msra.mxu0 0.0
    %3053 = vmatpush.msra.mxu0 0.0
    %3054 = vmatpush.msra.mxu0 0.0
    %3055 = vmatpush.msra.mxu0 0.0
    %3056 = vmatpush.msra.mxu0 0.0
    %3057 = vmatpush.msra.mxu0 0.0
    %3058 = vmatpush.msra.mxu0 0.0
    %3059 = vmatpush.msra.mxu0 0.0
    %3060 = vmatpush.msra.mxu0 %v2464
    %3061 = vmatpush.msra.mxu0 %v2463
    %3062 = vmatpush.msra.mxu0 %v2462
    %3063 = vmatpush.msra.mxu0 %v2461
    %3064 = vmatmul.f32.gmra.mxu0 %v3046
    %v3065 = vpop.f32.mrf.mxu0
    %v3066 = vadd.f32 0.0, %v3065
    %3067 = vdwg.mxu0
    %v3069 = vrot.slane %v3066, 6
    %3070 = vrot.lane.b32.xlu0 %v3069, 64
    %v3071 = vpop.permute.xlu0 %3070
    %v3073 = vadd.f32 %v2494, %v3071
    %v3074 = vtanh.pop %v3073
    %v3076 = vrot.slane %v3074, 2
    %v3078 = vsub.f32 %v2988, %v3076
    %v3080 = vrot.slane %v3078, 6
    %3081 = vrot.lane.b32.xlu0 %v3080, 96
    %v3082 = vpop.permute.xlu0 %3081
    %v3084 = vmul.f32 %v3038, %v3082
    %3086 = vrot.lane.b32.xlu0 %v3084, 32
    %v3087 = vpop.permute.xlu0 %3086
    %v3089 = vadd.f32 %v3074, %v3087
    %3091 = vrot.lane.b32.xlu0 %v3089, 64
    %v3092 = vpop.permute.xlu0 %3091
    %3094 = vst.msk [vmem:[%s9 + $0x8] sm:$0xc] %vm2686, %v3092
    %v3095 = vrot.slane %v3089, 2
    %3096 = vrot.lane.b32.xlu0 %v3095, 64
    %v3097 = vpop.permute.xlu0 %3096
    %v3098 = vsel %vm176, %v3097, 0
    %3100 = vmatpush.msra.mxu0 0.0
    %3101 = vmatpush.msra.mxu0 0.0
    %3102 = vmatpush.msra.mxu0 0.0
    %3103 = vmatpush.msra.mxu0 0.0
    %3104 = vmatpush.msra.mxu0 0.0
    %3105 = vmatpush.msra.mxu0 0.0
    %3106 = vmatpush.msra.mxu0 0.0
    %3107 = vmatpush.msra.mxu0 0.0
    %3108 = vmatpush.msra.mxu0 0.0
    %3109 = vmatpush.msra.mxu0 0.0
    %3110 = vmatpush.msra.mxu0 0.0
    %3111 = vmatpush.msra.mxu0 0.0
    %3112 = vmatpush.msra.mxu0 %v2456
    %3113 = vmatpush.msra.mxu0 %v2455
    %3114 = vmatpush.msra.mxu0 %v2454
    %3115 = vmatpush.msra.mxu0 %v2453
    %3116 = vmatmul.f32.gmra.mxu0 %v3098
    %v3117 = vpop.f32.mrf.mxu0
    %v3118 = vadd.f32 0.0, %v3117
    %3119 = vdwg.mxu0
    %v3121 = vrot.slane %v3118, 4
    %v3123 = vadd.f32 %v2494, %v3121
    %v3124 = vxor.u32 %v3123, 2147483648
    %v3125 = vmul.f32 %v3124, 1.442695
    %v3126 = vpow.pop %v3125
    %v3127 = vadd.f32 %v3126, 1.0
    %v3128 = vrcp.pop %v3127
    %v3129 = vmul.f32 %v3127, %v3128
    %v3130 = vsub.f32 1.0, %v3129
    %v3131 = vmul.f32 %v3128, %v3130
    %v3132 = vadd.f32 %v3128, %v3131
    %vm3133 = vweird.f32 %v3127
    %vm3134 = vweird.f32 %v3128
    %vm3135 = vmor %vm3133, %vm3134
    %v3136 = vsel %vm3135, %v3128, %v3132
    %v3137 = vand.u32 2147483647, %v3127
    %vm3138 = vcmp.eq.f32.partialorder %v3137, 8.507059e+37
    %v3139 = vand.u32 %v3127, 2147483648
    %v3140 = vor.u32 1.1754944e-38, %v3139
    %v3141 = vsel %vm3138, %v3140, %v3136
    %v3142 = vmul.f32 1.0, %v3141
    %v3143 = vrot.slane %v3089, 6
    %3144 = vrot.lane.b32.xlu0 %v3143, 64
    %v3145 = vpop.permute.xlu0 %3144
    %v3147 = vmul.f32 %v3142, %v3145
    %v3149 = vrot.slane %v3147, 4
    %v3150 = vsel %vm176, %v3149, 0
    %3152 = vmatpush.msra.mxu0 0.0
    %3153 = vmatpush.msra.mxu0 0.0
    %3154 = vmatpush.msra.mxu0 0.0
    %3155 = vmatpush.msra.mxu0 0.0
    %3156 = vmatpush.msra.mxu0 0.0
    %3157 = vmatpush.msra.mxu0 0.0
    %3158 = vmatpush.msra.mxu0 0.0
    %3159 = vmatpush.msra.mxu0 0.0
    %3160 = vmatpush.msra.mxu0 0.0
    %3161 = vmatpush.msra.mxu0 0.0
    %3162 = vmatpush.msra.mxu0 0.0
    %3163 = vmatpush.msra.mxu0 0.0
    %3164 = vmatpush.msra.mxu0 %v2464
    %3165 = vmatpush.msra.mxu0 %v2463
    %3166 = vmatpush.msra.mxu0 %v2462
    %3167 = vmatpush.msra.mxu0 %v2461
    %3168 = vmatmul.f32.gmra.mxu0 %v3150
    %v3169 = vpop.f32.mrf.mxu0
    %v3170 = vadd.f32 0.0, %v3169
    %3171 = vdwg.mxu0
    %v3173 = vrot.slane %v3170, 4
    %3174 = vrot.lane.b32.xlu0 %v3173, 64
    %v3175 = vpop.permute.xlu0 %3174
    %v3177 = vadd.f32 %v2494, %v3175
    %v3178 = vtanh.pop %v3177
    %v3180 = vrot.slane %v3178, 2
    %v3182 = vsub.f32 %v3089, %v3180
    %v3184 = vrot.slane %v3182, 6
    %3185 = vrot.lane.b32.xlu0 %v3184, 96
    %v3186 = vpop.permute.xlu0 %3185
    %v3188 = vmul.f32 %v3142, %v3186
    %3190 = vrot.lane.b32.xlu0 %v3188, 32
    %v3191 = vpop.permute.xlu0 %3190
    %v3193 = vadd.f32 %v3178, %v3191
    %3195 = vrot.lane.b32.xlu0 %v3193, 64
    %v3196 = vpop.permute.xlu0 %3195
    %3198 = vst.msk [vmem:[%s9 + $0x8] sm:$0x30] %vm2791, %v3196
    %v3199 = vrot.slane %v3193, 4
    %3200 = vrot.lane.b32.xlu0 %v3199, 64
    %v3201 = vpop.permute.xlu0 %3200
    %v3202 = vsel %vm176, %v3201, 0
    %3204 = vmatpush.msra.mxu0 0.0
    %3205 = vmatpush.msra.mxu0 0.0
    %3206 = vmatpush.msra.mxu0 0.0
    %3207 = vmatpush.msra.mxu0 0.0
    %3208 = vmatpush.msra.mxu0 0.0
    %3209 = vmatpush.msra.mxu0 0.0
    %3210 = vmatpush.msra.mxu0 0.0
    %3211 = vmatpush.msra.mxu0 0.0
    %3212 = vmatpush.msra.mxu0 0.0
    %3213 = vmatpush.msra.mxu0 0.0
    %3214 = vmatpush.msra.mxu0 0.0
    %3215 = vmatpush.msra.mxu0 0.0
    %3216 = vmatpush.msra.mxu0 %v2456
    %3217 = vmatpush.msra.mxu0 %v2455
    %3218 = vmatpush.msra.mxu0 %v2454
    %3219 = vmatpush.msra.mxu0 %v2453
    %3220 = vmatmul.f32.gmra.mxu0 %v3202
    %v3221 = vpop.f32.mrf.mxu0
    %v3222 = vadd.f32 0.0, %v3221
    %3223 = vdwg.mxu0
    %v3225 = vrot.slane %v3222, 2
    %v3227 = vadd.f32 %v2494, %v3225
    %v3228 = vxor.u32 %v3227, 2147483648
    %v3229 = vmul.f32 %v3228, 1.442695
    %v3230 = vpow.pop %v3229
    %v3231 = vadd.f32 %v3230, 1.0
    %v3232 = vrcp.pop %v3231
    %v3233 = vmul.f32 %v3231, %v3232
    %v3234 = vsub.f32 1.0, %v3233
    %v3235 = vmul.f32 %v3232, %v3234
    %v3236 = vadd.f32 %v3232, %v3235
    %vm3237 = vweird.f32 %v3231
    %vm3238 = vweird.f32 %v3232
    %vm3239 = vmor %vm3237, %vm3238
    %v3240 = vsel %vm3239, %v3232, %v3236
    %v3241 = vand.u32 2147483647, %v3231
    %vm3242 = vcmp.eq.f32.partialorder %v3241, 8.507059e+37
    %v3243 = vand.u32 %v3231, 2147483648
    %v3244 = vor.u32 1.1754944e-38, %v3243
    %v3245 = vsel %vm3242, %v3244, %v3240
    %v3246 = vmul.f32 1.0, %v3245
    %v3247 = vrot.slane %v3193, 6
    %3248 = vrot.lane.b32.xlu0 %v3247, 64
    %v3249 = vpop.permute.xlu0 %3248
    %v3251 = vmul.f32 %v3246, %v3249
    %v3253 = vrot.slane %v3251, 6
    %v3254 = vsel %vm176, %v3253, 0
    %3256 = vmatpush.msra.mxu0 0.0
    %3257 = vmatpush.msra.mxu0 0.0
    %3258 = vmatpush.msra.mxu0 0.0
    %3259 = vmatpush.msra.mxu0 0.0
    %3260 = vmatpush.msra.mxu0 0.0
    %3261 = vmatpush.msra.mxu0 0.0
    %3262 = vmatpush.msra.mxu0 0.0
    %3263 = vmatpush.msra.mxu0 0.0
    %3264 = vmatpush.msra.mxu0 0.0
    %3265 = vmatpush.msra.mxu0 0.0
    %3266 = vmatpush.msra.mxu0 0.0
    %3267 = vmatpush.msra.mxu0 0.0
    %3268 = vmatpush.msra.mxu0 %v2464
    %3269 = vmatpush.msra.mxu0 %v2463
    %3270 = vmatpush.msra.mxu0 %v2462
    %3271 = vmatpush.msra.mxu0 %v2461
    %3272 = vmatmul.f32.gmra.mxu0 %v3254
    %v3273 = vpop.f32.mrf.mxu0
    %v3274 = vadd.f32 0.0, %v3273
    %3275 = vdwg.mxu0
    %v3277 = vrot.slane %v3274, 2
    %3278 = vrot.lane.b32.xlu0 %v3277, 64
    %v3279 = vpop.permute.xlu0 %3278
    %v3281 = vadd.f32 %v2494, %v3279
    %v3282 = vtanh.pop %v3281
    %v3284 = vrot.slane %v3282, 2
    %v3286 = vsub.f32 %v3193, %v3284
    %v3288 = vrot.slane %v3286, 6
    %3289 = vrot.lane.b32.xlu0 %v3288, 96
    %v3290 = vpop.permute.xlu0 %3289
    %v3292 = vmul.f32 %v3246, %v3290
    %3294 = vrot.lane.b32.xlu0 %v3292, 32
    %v3295 = vpop.permute.xlu0 %3294
    %v3297 = vadd.f32 %v3282, %v3295
    %3299 = vrot.lane.b32.xlu0 %v3297, 64
    %v3300 = vpop.permute.xlu0 %3299
    %3302 = vst.msk [vmem:[%s9 + $0x8] sm:$0xc0] %vm2896, %v3300
    // Predicated region
    $region74: #{permuted_gru_forward.1} parent=1 // pred_check
      _
    $region75: #{permuted_gru_forward.1} parent=1 // pred_check_branch
      %3304 = sbr.rel (0) target = $region77
    $region76: #{permuted_gru_forward.1} parent=1 // pred_region
      _
    $region77: #{permuted_gru_forward.1} parent=1 // pred_fallthru
      _
    // Predicated region
    $region78: #{permuted_gru_forward.1} parent=1 // pred_check
      _
    $region79: #{permuted_gru_forward.1} parent=1 // pred_check_branch
      %3306 = sbr.rel (0) target = $region81
    $region80: #{permuted_gru_forward.1} parent=1 // pred_region
      _
    $region81: #{permuted_gru_forward.1} parent=1 // pred_fallthru
      _
    %3307 = vsyncpa [#allocation3], 1
    %3308 = vsyncpa [#allocation5], 1
    %3309 = vsyncpa [#allocation8], 1
    %3310 = vsyncpa [#allocation11], 1
    %3311 = vsyncpa [#allocation14], 1

</llo_original>
